<compile_context>
chip_gen: v5e
topology: v5e:2x2
jax: 0.10.0
libtpu: 0.0.40
codegen_flags: <defaults>
</compile_context>

<pallas_src>
import jax
import jax.numpy as jnp
from jax import lax
from jax.experimental import pallas as pl
from jax.experimental.pallas import tpu as pltpu

OUT_HW = 64                 # nn.Upsample(size=(64, 64))
HW = OUT_HW * OUT_HW


# ---------------------------------------------------------------------------
# Fused kernel factory.
# ---------------------------------------------------------------------------
def _make_fused_kernel(num_layers, T, B, H, out_hw):
    hw = out_hw * out_hw
    assert out_hw & (out_hw - 1) == 0, "out_hw must be a power of two"
    shift = out_hw.bit_length() - 1

    def kernel(*refs):
        # inputs
        x_ref = refs[0]                                   # [T*B, D_in]  f32
        layer_refs = refs[1:1 + 3 * num_layers]           # per layer: wih, whh, b
        wdec_ref = refs[1 + 3 * num_layers]                # [H, 9] bf16 (decomposed taps)
        convb_ref = refs[2 + 3 * num_layers]               # SMEM (1,) f32
        # output / scratch
        out_ref = refs[3 + 3 * num_layers]                 # [B, hw] f32
        proj_ref = refs[4 + 3 * num_layers]                # [T*B, 4*H] f32 scratch

        wih0_ref, whh0_ref, b0_ref = layer_refs[0], layer_refs[1], layer_refs[2]

        # ---- hoisted layer-0 input projection (all timesteps, bias folded) ----
        # f32 operands: off the serial critical path, keeps numerics tight.
        proj_ref[...] = (
            jnp.dot(x_ref[...], wih0_ref[...], preferred_element_type=jnp.float32)
            + b0_ref[...])

        def cell(gates, c):
            # one lane-dense sigmoid over the whole [B, 4H] gate block;
            # the candidate gate's weights were pre-scaled by 2 so that
            # g = 2*sigmoid(2x) - 1 == tanh(x).
            sg = jax.nn.sigmoid(gates)
            i = sg[:, 0 * H:1 * H]
            f = sg[:, 1 * H:2 * H]
            g = 2.0 * sg[:, 2 * H:3 * H] - 1.0
            o = sg[:, 3 * H:4 * H]
            c_new = f * c + i * g
            return o * jnp.tanh(c_new), c_new

        h = [jnp.zeros((B, H), jnp.float32) for _ in range(num_layers)]
        c = [jnp.zeros((B, H), jnp.float32) for _ in range(num_layers)]

        # statically unrolled recurrence (T known at trace time; switch to
        # lax.fori_loop + pl.ds if T grows beyond ~32 steps).
        for t in range(T):
            g0 = (proj_ref[t * B:(t + 1) * B, :]
                  + jnp.dot(h[0].astype(jnp.bfloat16), whh0_ref[...],
                            preferred_element_type=jnp.float32))
            h[0], c[0] = cell(g0, c[0])
            for l in range(1, num_layers):
                wih_l = layer_refs[3 * l]
                whh_l = layer_refs[3 * l + 1]
                b_l = layer_refs[3 * l + 2]
                gl = (jnp.dot(h[l - 1].astype(jnp.bfloat16), wih_l[...],
                              preferred_element_type=jnp.float32)
                      + jnp.dot(h[l].astype(jnp.bfloat16), whh_l[...],
                                preferred_element_type=jnp.float32)
                      + b_l[...])
                h[l], c[l] = cell(gl, c[l])

        h_last = h[num_layers - 1]                         # [B, H] f32

        # ---- decoder: constant-image 3x3 conv, analytic boundary form ----
        # wdec columns: [allsum, toprow, botrow, leftcol, rightcol,
        #                tap(0,0), tap(0,2), tap(2,0), tap(2,2)]
        s = jnp.dot(h_last.astype(jnp.bfloat16), wdec_ref[...],
                    preferred_element_type=jnp.float32)    # [B, 9]
        bias = convb_ref[0]
        base = s[:, 0:1] + bias                            # interior value  [B,1]
        top, bot = s[:, 1:2], s[:, 2:3]
        left, right = s[:, 3:4], s[:, 4:5]
        ctl, ctr, cbl, cbr = s[:, 5:6], s[:, 6:7], s[:, 7:8], s[:, 8:9]

        # 9 distinct region values per batch row -> exact global min / max.
        v_mid = base
        v_top, v_bot = base - top, base - bot
        v_left, v_right = base - left, base - right
        v_tl = base - top - left + ctl
        v_tr = base - top - right + ctr
        v_bl = base - bot - left + cbl
        v_br = base - bot - right + cbr
        vals = [v_mid, v_top, v_bot, v_left, v_right, v_tl, v_tr, v_bl, v_br]
        mn_b, mx_b = vals[0], vals[0]
        for v in vals[1:]:
            mn_b = jnp.minimum(mn_b, v)
            mx_b = jnp.maximum(mx_b, v)
        mn = jnp.min(mn_b, axis=0, keepdims=True)          # [1,1]
        mx = jnp.max(mx_b, axis=0, keepdims=True)          # [1,1]
        inv = pl.reciprocal(mx - mn + 1e-5, approx=True)   # EUP slot

        # Build the normalized [B, 4096] plane (row-major pixel index y*64+x)
        # with boundary corrections via cheap vselects on iota masks.
        pix = lax.broadcasted_iota(jnp.int32, (1, hw), 1)
        y = jnp.right_shift(pix, shift)
        x = jnp.bitwise_and(pix, out_hw - 1)
        y0 = y == 0
        y1 = y == out_hw - 1
        x0 = x == 0
        x1 = x == out_hw - 1
        corr = (jnp.where(y0, -top, 0.0) + jnp.where(y1, -bot, 0.0)
                + jnp.where(x0, -left, 0.0) + jnp.where(x1, -right, 0.0)
                + jnp.where(y0 & x0, ctl, 0.0) + jnp.where(y0 & x1, ctr, 0.0)
                + jnp.where(y1 & x0, cbl, 0.0) + jnp.where(y1 & x1, cbr, 0.0))
        out_ref[...] = ((base - mn) + corr) * inv

    return kernel


# ---------------------------------------------------------------------------
# Wrapper: specs, cost estimate, tight VMEM limit.
# ---------------------------------------------------------------------------
def run_fused_model(x2d, kparams, *, T, B, H):
    num_layers = len(kparams["layers"])
    kernel = _make_fused_kernel(num_layers, T, B, H, OUT_HW)

    args = [x2d]
    for (wih, whh, b) in kparams["layers"]:
        args += [wih, whh, b]
    args += [kparams["wdec"], kparams["conv_b"]]

    n_vmem_inputs = len(args) - 1      # all but the SMEM conv bias
    in_specs = ([pl.BlockSpec(memory_space=pltpu.MemorySpace.VMEM)] * n_vmem_inputs
                + [pl.BlockSpec(memory_space=pltpu.MemorySpace.SMEM)])
    scratch_shapes = [pltpu.VMEM((T * B, 4 * H), jnp.float32)]   # hoisted proj

    d_in = x2d.shape[1]
    flops = 2 * T * B * d_in * 4 * H             # hoisted layer-0 projection
    flops += 2 * T * B * H * 4 * H               # layer-0 recurrence
    flops += (num_layers - 1) * 2 * T * B * (2 * H) * 4 * H
    flops += 2 * B * H * 9 + 10 * B * HW         # decoder matmul + plane build
    transcendentals = num_layers * T * B * 5 * H
    io_bytes = sum(int(a.size) * a.dtype.itemsize for a in args) + 4 * B * HW
    cost = pl.CostEstimate(flops=int(flops),
                           transcendentals=int(transcendentals),
                           bytes_accessed=int(io_bytes))

    # Real working set is tiny (~0.2 MiB weights + 16 KiB proj + 32 KiB out
    # + small intermediates); request a tight budget with headroom instead of
    # grabbing 32-64 MiB (matters on v7x's 64 MiB VMEM).
    footprint = io_bytes + 4 * T * B * 4 * H + (2 << 20)
    vmem_limit = int(min(max(4 * footprint, 8 << 20), 32 << 20))

    return pl.pallas_call(
        kernel,
        out_shape=jax.ShapeDtypeStruct((B, HW), jnp.float32),
        in_specs=in_specs,
        out_specs=pl.BlockSpec(memory_space=pltpu.MemorySpace.VMEM),
        scratch_shapes=scratch_shapes,
        compiler_params=pltpu.CompilerParams(vmem_limit_bytes=vmem_limit),
        cost_estimate=cost,
    )(*args)


# ---------------------------------------------------------------------------
# Parameters: raw (PyTorch-like) + kernel-prepared versions.
# ---------------------------------------------------------------------------
def init_params(key, input_dim, hidden_dim, num_layers):
    params = {"lstm": []}
    k = 1.0 / float(hidden_dim) ** 0.5
    for layer in range(num_layers):
        d_in = input_dim if layer == 0 else hidden_dim
        key, k1, k2, k3, k4 = jax.random.split(key, 5)
        w_ih = jax.random.uniform(k1, (4 * hidden_dim, d_in), jnp.float32, -k, k)
        w_hh = jax.random.uniform(k2, (4 * hidden_dim, hidden_dim), jnp.float32, -k, k)
        b_ih = jax.random.uniform(k3, (4 * hidden_dim,), jnp.float32, -k, k)
        b_hh = jax.random.uniform(k4, (4 * hidden_dim,), jnp.float32, -k, k)
        # pre-transpose weights, fold the two biases (gate order i, f, g, o)
        params["lstm"].append((w_ih.T, w_hh.T, (b_ih + b_hh)[None, :]))
    key, kc1, kc2 = jax.random.split(key, 3)
    kcw = 1.0 / float(hidden_dim * 9) ** 0.5
    conv_w = jax.random.uniform(kc1, (1, hidden_dim, 3, 3), jnp.float32, -kcw, kcw)
    conv_b = jax.random.uniform(kc2, (1,), jnp.float32, -kcw, kcw)
    params["conv_w_taps"] = conv_w.reshape(hidden_dim, 9)   # [C, 9], tap = ky*3+kx
    params["conv_b"] = conv_b
    return params


def prepare_kernel_params(params, hidden_dim):
    """bf16 recurrent weights, g-gate tanh->sigmoid rescale, decoder matrix."""
    H = hidden_dim

    def scale_g(w):  # scale the candidate-gate (g) columns by 2: tanh(x)=2*sig(2x)-1
        return w.at[:, 2 * H:3 * H].multiply(2.0)

    kp = {"layers": []}
    for li, (wih_t, whh_t, b) in enumerate(params["lstm"]):
        wih_s = scale_g(wih_t)
        whh_s = scale_g(whh_t)
        b_s = scale_g(b).astype(jnp.float32)
        if li == 0:
            # layer-0 input projection is hoisted & off the critical path: keep f32
            kp["layers"].append((wih_s.astype(jnp.float32),
                                 whh_s.astype(jnp.bfloat16), b_s))
        else:
            kp["layers"].append((wih_s.astype(jnp.bfloat16),
                                 whh_s.astype(jnp.bfloat16), b_s))

    # Decoder decomposition columns: allsum, top row, bottom row, left col,
    # right col, and the four corner taps (for corner add-backs).
    taps = params["conv_w_taps"]                       # [H, 9], tap = ky*3+kx
    allsum = taps.sum(axis=1, keepdims=True)
    top = taps[:, [0, 1, 2]].sum(axis=1, keepdims=True)
    bot = taps[:, [6, 7, 8]].sum(axis=1, keepdims=True)
    left = taps[:, [0, 3, 6]].sum(axis=1, keepdims=True)
    right = taps[:, [2, 5, 8]].sum(axis=1, keepdims=True)
    wdec = jnp.concatenate(
        [allsum, top, bot, left, right,
         taps[:, [0]], taps[:, [2]], taps[:, [6]], taps[:, [8]]], axis=1)  # [H,9]
    kp["wdec"] = wdec.astype(jnp.bfloat16)
    kp["conv_b"] = params["conv_b"].astype(jnp.float32)
    return kp


# ---------------------------------------------------------------------------
# Model forward + pure-JAX reference.
# ---------------------------------------------------------------------------
def lstm_model_forward(input_seq, kparams, hidden_dim=64):
    B, T, C, Hh, Ww = input_seq.shape
    d_in = C * Hh * Ww
    x2d = (input_seq.astype(jnp.float32)
           .reshape(B, T, d_in)
           .transpose(1, 0, 2)          # [T, B, D]
           .reshape(T * B, d_in))       # row t*B + b
    out_flat = run_fused_model(x2d, kparams, T=T, B=B, H=hidden_dim)
    return out_flat.reshape(B, 1, OUT_HW, OUT_HW)


def reference_forward(input_seq, params):
    """Pure-JAX f32 reference (real 3x3 conv on the broadcast image)."""
    B, T, C, Hh, Ww = input_seq.shape
    x = input_seq.reshape(B, T, C * Hh * Ww).astype(jnp.float32)
    hs = x
    for (wih_t, whh_t, b) in params["lstm"]:
        Hd = whh_t.shape[0]
        h = jnp.zeros((B, Hd), jnp.float32)
        c = jnp.zeros((B, Hd), jnp.float32)
        outs = []
        for t in range(T):
            gates = hs[:, t] @ wih_t + h @ whh_t + b
            i = jax.nn.sigmoid(gates[:, :Hd])
            f = jax.nn.sigmoid(gates[:, Hd:2 * Hd])
            g = jnp.tanh(gates[:, 2 * Hd:3 * Hd])
            o = jax.nn.sigmoid(gates[:, 3 * Hd:])
            c = f * c + i * g
            h = o * jnp.tanh(c)
            outs.append(h)
        hs = jnp.stack(outs, axis=1)
    last = hs[:, -1]
    img = jnp.broadcast_to(last[:, :, None, None],
                           (B, last.shape[1], OUT_HW, OUT_HW))
    w = params["conv_w_taps"].reshape(1, last.shape[1], 3, 3)
    out = lax.conv_general_dilated(img, w, (1, 1), ((1, 1), (1, 1)),
                                   dimension_numbers=("NCHW", "OIHW", "NCHW"))
    out = out + params["conv_b"][0]
    return (out - out.min()) / (out.max() - out.min() + 1e-5)


if __name__ == "__main__":
    # Small shapes consistent with the module's forward().
    B, T, C, Hh, Ww = 2, 8, 2, 4, 4
    input_dim = C * Hh * Ww          # 32
    hidden_dim = 64                  # must match conv_decoder's in_channels
    num_layers = 2
    fusion_dim = 32                  # unused by forward()

    key = jax.random.PRNGKey(0)
    k_params, k_x = jax.random.split(key)
    params = init_params(k_params, input_dim, hidden_dim, num_layers)
    kparams = prepare_kernel_params(params, hidden_dim)
    x = jax.random.normal(k_x, (B, T, C, Hh, Ww), jnp.float32)

    out = jax.block_until_ready(lstm_model_forward(x, kparams, hidden_dim))
    ref = jax.block_until_ready(reference_forward(x, params))

    assert out.shape == (B, 1, OUT_HW, OUT_HW)
    assert bool(jnp.all(jnp.isfinite(out)))
    err = float(jnp.max(jnp.abs(out - ref)))
    assert err < 5e-2, err
    print("KERNEL_OK")
</pallas_src>

<mosaic_0001>
module attributes {stable_mosaic.version = 11 : i64} {
  func.func @kernel(%arg0: memref<16x32xf32, #tpu.memory_space<vmem>>, %arg1: memref<32x256xf32, #tpu.memory_space<vmem>>, %arg2: memref<64x256xbf16, #tpu.memory_space<vmem>>, %arg3: memref<1x256xf32, #tpu.memory_space<vmem>>, %arg4: memref<64x256xbf16, #tpu.memory_space<vmem>>, %arg5: memref<64x256xbf16, #tpu.memory_space<vmem>>, %arg6: memref<1x256xf32, #tpu.memory_space<vmem>>, %arg7: memref<64x9xbf16, #tpu.memory_space<vmem>>, %arg8: memref<1xf32, #tpu.memory_space<smem>>, %arg9: memref<2x4096xf32, #tpu.memory_space<vmem>>, %arg10: memref<16x256xf32, #tpu.memory_space<vmem>>) attributes {dimension_semantics = [], scalar_prefetch = 0 : i64, scratch_operands = 1 : i64, tpu.core_type = #tpu.core_type<tc>} {
    %c0 = arith.constant 0 : index
    %c0_0 = arith.constant 0 : index
    %0 = vector.load %arg0[%c0, %c0_0] : memref<16x32xf32, #tpu.memory_space<vmem>>, vector<16x32xf32>
    %c0_1 = arith.constant 0 : index
    %c0_2 = arith.constant 0 : index
    %1 = vector.load %arg1[%c0_1, %c0_2] : memref<32x256xf32, #tpu.memory_space<vmem>>, vector<32x256xf32>
    %cst = arith.constant dense<0.000000e+00> : vector<16x256xf32>
    %2 = tpu.matmul %0, %1, %cst {dimension_numbers = #tpu.dot_dimension_numbers<[1], [0], [0], [1], [0, 0, 1, 1], [], []>} : vector<16x32xf32>, vector<32x256xf32>, vector<16x256xf32> -> vector<16x256xf32>
    %c0_3 = arith.constant 0 : index
    %c0_4 = arith.constant 0 : index
    %3 = vector.load %arg3[%c0_3, %c0_4] : memref<1x256xf32, #tpu.memory_space<vmem>>, vector<1x256xf32>
    %4 = vector.broadcast %3 : vector<1x256xf32> to vector<16x256xf32>
    %5 = arith.addf %2, %4 : vector<16x256xf32>
    %c0_5 = arith.constant 0 : index
    %c0_6 = arith.constant 0 : index
    %6 = vector.load %arg10[%c0_5, %c0_6] : memref<16x256xf32, #tpu.memory_space<vmem>>, vector<16x256xf32>
    tpu.vector_store %arg10[%c0_5, %c0_6], %5 {strides = array<i32>} : memref<16x256xf32, #tpu.memory_space<vmem>>, vector<16x256xf32>,
    %cst_7 = arith.constant 0.000000e+00 : f32
    %7 = vector.broadcast %cst_7 : f32 to vector<2x64xf32>
    %cst_8 = arith.constant 0.000000e+00 : f32
    %8 = vector.broadcast %cst_8 : f32 to vector<2x64xf32>
    %cst_9 = arith.constant 0.000000e+00 : f32
    %9 = vector.broadcast %cst_9 : f32 to vector<2x64xf32>
    %cst_10 = arith.constant 0.000000e+00 : f32
    %10 = vector.broadcast %cst_10 : f32 to vector<2x64xf32>
    %c0_11 = arith.constant 0 : index
    %c0_12 = arith.constant 0 : index
    %11 = vector.load %arg10[%c0_11, %c0_12] : memref<16x256xf32, #tpu.memory_space<vmem>>, vector<2x256xf32>
    %12 = arith.truncf %7 : vector<2x64xf32> to vector<2x64xbf16>
    %c0_13 = arith.constant 0 : index
    %c0_14 = arith.constant 0 : index
    %13 = vector.load %arg2[%c0_13, %c0_14] : memref<64x256xbf16, #tpu.memory_space<vmem>>, vector<64x256xbf16>
    %cst_15 = arith.constant dense<0.000000e+00> : vector<2x256xf32>
    %14 = tpu.matmul %12, %13, %cst_15 {dimension_numbers = #tpu.dot_dimension_numbers<[1], [0], [0], [1], [0, 0, 1, 1], [], []>} : vector<2x64xbf16>, vector<64x256xbf16>, vector<2x256xf32> -> vector<2x256xf32>
    %15 = arith.addf %11, %14 : vector<2x256xf32>
    %16 = arith.negf %15 : vector<2x256xf32>
    %17 = math.exp %16 : vector<2x256xf32>
    %cst_16 = arith.constant 1.000000e+00 : f32
    %18 = vector.broadcast %cst_16 : f32 to vector<2x256xf32>
    %19 = arith.addf %18, %17 : vector<2x256xf32>
    %20 = arith.divf %18, %19 : vector<2x256xf32>
    %21 = vector.extract_strided_slice %20 {offsets = [0, 0], sizes = [2, 64], strides = [1, 1]} : vector<2x256xf32> to vector<2x64xf32>
    %22 = vector.extract_strided_slice %20 {offsets = [0, 64], sizes = [2, 64], strides = [1, 1]} : vector<2x256xf32> to vector<2x64xf32>
    %23 = vector.extract_strided_slice %20 {offsets = [0, 128], sizes = [2, 64], strides = [1, 1]} : vector<2x256xf32> to vector<2x64xf32>
    %cst_17 = arith.constant 2.000000e+00 : f32
    %24 = vector.broadcast %cst_17 : f32 to vector<2x64xf32>
    %25 = arith.mulf %24, %23 : vector<2x64xf32>
    %cst_18 = arith.constant 1.000000e+00 : f32
    %26 = vector.broadcast %cst_18 : f32 to vector<2x64xf32>
    %27 = arith.subf %25, %26 : vector<2x64xf32>
    %28 = vector.extract_strided_slice %20 {offsets = [0, 192], sizes = [2, 64], strides = [1, 1]} : vector<2x256xf32> to vector<2x64xf32>
    %29 = arith.mulf %22, %9 : vector<2x64xf32>
    %30 = arith.mulf %21, %27 : vector<2x64xf32>
    %31 = arith.addf %29, %30 : vector<2x64xf32>
    %32 = math.tanh %31 : vector<2x64xf32>
    %33 = arith.mulf %28, %32 : vector<2x64xf32>
    %34 = arith.truncf %33 : vector<2x64xf32> to vector<2x64xbf16>
    %c0_19 = arith.constant 0 : index
    %c0_20 = arith.constant 0 : index
    %35 = vector.load %arg4[%c0_19, %c0_20] : memref<64x256xbf16, #tpu.memory_space<vmem>>, vector<64x256xbf16>
    %cst_21 = arith.constant dense<0.000000e+00> : vector<2x256xf32>
    %36 = tpu.matmul %34, %35, %cst_21 {dimension_numbers = #tpu.dot_dimension_numbers<[1], [0], [0], [1], [0, 0, 1, 1], [], []>} : vector<2x64xbf16>, vector<64x256xbf16>, vector<2x256xf32> -> vector<2x256xf32>
    %37 = arith.truncf %8 : vector<2x64xf32> to vector<2x64xbf16>
    %c0_22 = arith.constant 0 : index
    %c0_23 = arith.constant 0 : index
    %38 = vector.load %arg5[%c0_22, %c0_23] : memref<64x256xbf16, #tpu.memory_space<vmem>>, vector<64x256xbf16>
    %cst_24 = arith.constant dense<0.000000e+00> : vector<2x256xf32>
    %39 = tpu.matmul %37, %38, %cst_24 {dimension_numbers = #tpu.dot_dimension_numbers<[1], [0], [0], [1], [0, 0, 1, 1], [], []>} : vector<2x64xbf16>, vector<64x256xbf16>, vector<2x256xf32> -> vector<2x256xf32>
    %40 = arith.addf %36, %39 : vector<2x256xf32>
    %c0_25 = arith.constant 0 : index
    %c0_26 = arith.constant 0 : index
    %41 = vector.load %arg6[%c0_25, %c0_26] : memref<1x256xf32, #tpu.memory_space<vmem>>, vector<1x256xf32>
    %42 = vector.broadcast %41 : vector<1x256xf32> to vector<2x256xf32>
    %43 = arith.addf %40, %42 : vector<2x256xf32>
    %44 = arith.negf %43 : vector<2x256xf32>
    %45 = math.exp %44 : vector<2x256xf32>
    %cst_27 = arith.constant 1.000000e+00 : f32
    %46 = vector.broadcast %cst_27 : f32 to vector<2x256xf32>
    %47 = arith.addf %46, %45 : vector<2x256xf32>
    %48 = arith.divf %46, %47 : vector<2x256xf32>
    %49 = vector.extract_strided_slice %48 {offsets = [0, 0], sizes = [2, 64], strides = [1, 1]} : vector<2x256xf32> to vector<2x64xf32>
    %50 = vector.extract_strided_slice %48 {offsets = [0, 64], sizes = [2, 64], strides = [1, 1]} : vector<2x256xf32> to vector<2x64xf32>
    %51 = vector.extract_strided_slice %48 {offsets = [0, 128], sizes = [2, 64], strides = [1, 1]} : vector<2x256xf32> to vector<2x64xf32>
    %cst_28 = arith.constant 2.000000e+00 : f32
    %52 = vector.broadcast %cst_28 : f32 to vector<2x64xf32>
    %53 = arith.mulf %52, %51 : vector<2x64xf32>
    %cst_29 = arith.constant 1.000000e+00 : f32
    %54 = vector.broadcast %cst_29 : f32 to vector<2x64xf32>
    %55 = arith.subf %53, %54 : vector<2x64xf32>
    %56 = vector.extract_strided_slice %48 {offsets = [0, 192], sizes = [2, 64], strides = [1, 1]} : vector<2x256xf32> to vector<2x64xf32>
    %57 = arith.mulf %50, %10 : vector<2x64xf32>
    %58 = arith.mulf %49, %55 : vector<2x64xf32>
    %59 = arith.addf %57, %58 : vector<2x64xf32>
    %60 = math.tanh %59 : vector<2x64xf32>
    %61 = arith.mulf %56, %60 : vector<2x64xf32>
    %c2 = arith.constant 2 : index
    %c0_30 = arith.constant 0 : index
    %62 = vector.load %arg10[%c2, %c0_30] : memref<16x256xf32, #tpu.memory_space<vmem>>, vector<2x256xf32>
    %63 = arith.truncf %33 : vector<2x64xf32> to vector<2x64xbf16>
    %c0_31 = arith.constant 0 : index
    %c0_32 = arith.constant 0 : index
    %64 = vector.load %arg2[%c0_31, %c0_32] : memref<64x256xbf16, #tpu.memory_space<vmem>>, vector<64x256xbf16>
    %cst_33 = arith.constant dense<0.000000e+00> : vector<2x256xf32>
    %65 = tpu.matmul %63, %64, %cst_33 {dimension_numbers = #tpu.dot_dimension_numbers<[1], [0], [0], [1], [0, 0, 1, 1], [], []>} : vector<2x64xbf16>, vector<64x256xbf16>, vector<2x256xf32> -> vector<2x256xf32>
    %66 = arith.addf %62, %65 : vector<2x256xf32>
    %67 = arith.negf %66 : vector<2x256xf32>
    %68 = math.exp %67 : vector<2x256xf32>
    %cst_34 = arith.constant 1.000000e+00 : f32
    %69 = vector.broadcast %cst_34 : f32 to vector<2x256xf32>
    %70 = arith.addf %69, %68 : vector<2x256xf32>
    %71 = arith.divf %69, %70 : vector<2x256xf32>
    %72 = vector.extract_strided_slice %71 {offsets = [0, 0], sizes = [2, 64], strides = [1, 1]} : vector<2x256xf32> to vector<2x64xf32>
    %73 = vector.extract_strided_slice %71 {offsets = [0, 64], sizes = [2, 64], strides = [1, 1]} : vector<2x256xf32> to vector<2x64xf32>
    %74 = vector.extract_strided_slice %71 {offsets = [0, 128], sizes = [2, 64], strides = [1, 1]} : vector<2x256xf32> to vector<2x64xf32>
    %cst_35 = arith.constant 2.000000e+00 : f32
    %75 = vector.broadcast %cst_35 : f32 to vector<2x64xf32>
    %76 = arith.mulf %75, %74 : vector<2x64xf32>
    %cst_36 = arith.constant 1.000000e+00 : f32
    %77 = vector.broadcast %cst_36 : f32 to vector<2x64xf32>
    %78 = arith.subf %76, %77 : vector<2x64xf32>
    %79 = vector.extract_strided_slice %71 {offsets = [0, 192], sizes = [2, 64], strides = [1, 1]} : vector<2x256xf32> to vector<2x64xf32>
    %80 = arith.mulf %73, %31 : vector<2x64xf32>
    %81 = arith.mulf %72, %78 : vector<2x64xf32>
    %82 = arith.addf %80, %81 : vector<2x64xf32>
    %83 = math.tanh %82 : vector<2x64xf32>
    %84 = arith.mulf %79, %83 : vector<2x64xf32>
    %85 = arith.truncf %84 : vector<2x64xf32> to vector<2x64xbf16>
    %c0_37 = arith.constant 0 : index
    %c0_38 = arith.constant 0 : index
    %86 = vector.load %arg4[%c0_37, %c0_38] : memref<64x256xbf16, #tpu.memory_space<vmem>>, vector<64x256xbf16>
    %cst_39 = arith.constant dense<0.000000e+00> : vector<2x256xf32>
    %87 = tpu.matmul %85, %86, %cst_39 {dimension_numbers = #tpu.dot_dimension_numbers<[1], [0], [0], [1], [0, 0, 1, 1], [], []>} : vector<2x64xbf16>, vector<64x256xbf16>, vector<2x256xf32> -> vector<2x256xf32>
    %88 = arith.truncf %61 : vector<2x64xf32> to vector<2x64xbf16>
    %c0_40 = arith.constant 0 : index
    %c0_41 = arith.constant 0 : index
    %89 = vector.load %arg5[%c0_40, %c0_41] : memref<64x256xbf16, #tpu.memory_space<vmem>>, vector<64x256xbf16>
    %cst_42 = arith.constant dense<0.000000e+00> : vector<2x256xf32>
    %90 = tpu.matmul %88, %89, %cst_42 {dimension_numbers = #tpu.dot_dimension_numbers<[1], [0], [0], [1], [0, 0, 1, 1], [], []>} : vector<2x64xbf16>, vector<64x256xbf16>, vector<2x256xf32> -> vector<2x256xf32>
    %91 = arith.addf %87, %90 : vector<2x256xf32>
    %c0_43 = arith.constant 0 : index
    %c0_44 = arith.constant 0 : index
    %92 = vector.load %arg6[%c0_43, %c0_44] : memref<1x256xf32, #tpu.memory_space<vmem>>, vector<1x256xf32>
    %93 = vector.broadcast %92 : vector<1x256xf32> to vector<2x256xf32>
    %94 = arith.addf %91, %93 : vector<2x256xf32>
    %95 = arith.negf %94 : vector<2x256xf32>
    %96 = math.exp %95 : vector<2x256xf32>
    %cst_45 = arith.constant 1.000000e+00 : f32
    %97 = vector.broadcast %cst_45 : f32 to vector<2x256xf32>
    %98 = arith.addf %97, %96 : vector<2x256xf32>
    %99 = arith.divf %97, %98 : vector<2x256xf32>
    %100 = vector.extract_strided_slice %99 {offsets = [0, 0], sizes = [2, 64], strides = [1, 1]} : vector<2x256xf32> to vector<2x64xf32>
    %101 = vector.extract_strided_slice %99 {offsets = [0, 64], sizes = [2, 64], strides = [1, 1]} : vector<2x256xf32> to vector<2x64xf32>
    %102 = vector.extract_strided_slice %99 {offsets = [0, 128], sizes = [2, 64], strides = [1, 1]} : vector<2x256xf32> to vector<2x64xf32>
    %cst_46 = arith.constant 2.000000e+00 : f32
    %103 = vector.broadcast %cst_46 : f32 to vector<2x64xf32>
    %104 = arith.mulf %103, %102 : vector<2x64xf32>
    %cst_47 = arith.constant 1.000000e+00 : f32
    %105 = vector.broadcast %cst_47 : f32 to vector<2x64xf32>
    %106 = arith.subf %104, %105 : vector<2x64xf32>
    %107 = vector.extract_strided_slice %99 {offsets = [0, 192], sizes = [2, 64], strides = [1, 1]} : vector<2x256xf32> to vector<2x64xf32>
    %108 = arith.mulf %101, %59 : vector<2x64xf32>
    %109 = arith.mulf %100, %106 : vector<2x64xf32>
    %110 = arith.addf %108, %109 : vector<2x64xf32>
    %111 = math.tanh %110 : vector<2x64xf32>
    %112 = arith.mulf %107, %111 : vector<2x64xf32>
    %c4 = arith.constant 4 : index
    %c0_48 = arith.constant 0 : index
    %113 = vector.load %arg10[%c4, %c0_48] : memref<16x256xf32, #tpu.memory_space<vmem>>, vector<2x256xf32>
    %114 = arith.truncf %84 : vector<2x64xf32> to vector<2x64xbf16>
    %c0_49 = arith.constant 0 : index
    %c0_50 = arith.constant 0 : index
    %115 = vector.load %arg2[%c0_49, %c0_50] : memref<64x256xbf16, #tpu.memory_space<vmem>>, vector<64x256xbf16>
    %cst_51 = arith.constant dense<0.000000e+00> : vector<2x256xf32>
    %116 = tpu.matmul %114, %115, %cst_51 {dimension_numbers = #tpu.dot_dimension_numbers<[1], [0], [0], [1], [0, 0, 1, 1], [], []>} : vector<2x64xbf16>, vector<64x256xbf16>, vector<2x256xf32> -> vector<2x256xf32>
    %117 = arith.addf %113, %116 : vector<2x256xf32>
    %118 = arith.negf %117 : vector<2x256xf32>
    %119 = math.exp %118 : vector<2x256xf32>
    %cst_52 = arith.constant 1.000000e+00 : f32
    %120 = vector.broadcast %cst_52 : f32 to vector<2x256xf32>
    %121 = arith.addf %120, %119 : vector<2x256xf32>
    %122 = arith.divf %120, %121 : vector<2x256xf32>
    %123 = vector.extract_strided_slice %122 {offsets = [0, 0], sizes = [2, 64], strides = [1, 1]} : vector<2x256xf32> to vector<2x64xf32>
    %124 = vector.extract_strided_slice %122 {offsets = [0, 64], sizes = [2, 64], strides = [1, 1]} : vector<2x256xf32> to vector<2x64xf32>
    %125 = vector.extract_strided_slice %122 {offsets = [0, 128], sizes = [2, 64], strides = [1, 1]} : vector<2x256xf32> to vector<2x64xf32>
    %cst_53 = arith.constant 2.000000e+00 : f32
    %126 = vector.broadcast %cst_53 : f32 to vector<2x64xf32>
    %127 = arith.mulf %126, %125 : vector<2x64xf32>
    %cst_54 = arith.constant 1.000000e+00 : f32
    %128 = vector.broadcast %cst_54 : f32 to vector<2x64xf32>
    %129 = arith.subf %127, %128 : vector<2x64xf32>
    %130 = vector.extract_strided_slice %122 {offsets = [0, 192], sizes = [2, 64], strides = [1, 1]} : vector<2x256xf32> to vector<2x64xf32>
    %131 = arith.mulf %124, %82 : vector<2x64xf32>
    %132 = arith.mulf %123, %129 : vector<2x64xf32>
    %133 = arith.addf %131, %132 : vector<2x64xf32>
    %134 = math.tanh %133 : vector<2x64xf32>
    %135 = arith.mulf %130, %134 : vector<2x64xf32>
    %136 = arith.truncf %135 : vector<2x64xf32> to vector<2x64xbf16>
    %c0_55 = arith.constant 0 : index
    %c0_56 = arith.constant 0 : index
    %137 = vector.load %arg4[%c0_55, %c0_56] : memref<64x256xbf16, #tpu.memory_space<vmem>>, vector<64x256xbf16>
    %cst_57 = arith.constant dense<0.000000e+00> : vector<2x256xf32>
    %138 = tpu.matmul %136, %137, %cst_57 {dimension_numbers = #tpu.dot_dimension_numbers<[1], [0], [0], [1], [0, 0, 1, 1], [], []>} : vector<2x64xbf16>, vector<64x256xbf16>, vector<2x256xf32> -> vector<2x256xf32>
    %139 = arith.truncf %112 : vector<2x64xf32> to vector<2x64xbf16>
    %c0_58 = arith.constant 0 : index
    %c0_59 = arith.constant 0 : index
    %140 = vector.load %arg5[%c0_58, %c0_59] : memref<64x256xbf16, #tpu.memory_space<vmem>>, vector<64x256xbf16>
    %cst_60 = arith.constant dense<0.000000e+00> : vector<2x256xf32>
    %141 = tpu.matmul %139, %140, %cst_60 {dimension_numbers = #tpu.dot_dimension_numbers<[1], [0], [0], [1], [0, 0, 1, 1], [], []>} : vector<2x64xbf16>, vector<64x256xbf16>, vector<2x256xf32> -> vector<2x256xf32>
    %142 = arith.addf %138, %141 : vector<2x256xf32>
    %c0_61 = arith.constant 0 : index
    %c0_62 = arith.constant 0 : index
    %143 = vector.load %arg6[%c0_61, %c0_62] : memref<1x256xf32, #tpu.memory_space<vmem>>, vector<1x256xf32>
    %144 = vector.broadcast %143 : vector<1x256xf32> to vector<2x256xf32>
    %145 = arith.addf %142, %144 : vector<2x256xf32>
    %146 = arith.negf %145 : vector<2x256xf32>
    %147 = math.exp %146 : vector<2x256xf32>
    %cst_63 = arith.constant 1.000000e+00 : f32
    %148 = vector.broadcast %cst_63 : f32 to vector<2x256xf32>
    %149 = arith.addf %148, %147 : vector<2x256xf32>
    %150 = arith.divf %148, %149 : vector<2x256xf32>
    %151 = vector.extract_strided_slice %150 {offsets = [0, 0], sizes = [2, 64], strides = [1, 1]} : vector<2x256xf32> to vector<2x64xf32>
    %152 = vector.extract_strided_slice %150 {offsets = [0, 64], sizes = [2, 64], strides = [1, 1]} : vector<2x256xf32> to vector<2x64xf32>
    %153 = vector.extract_strided_slice %150 {offsets = [0, 128], sizes = [2, 64], strides = [1, 1]} : vector<2x256xf32> to vector<2x64xf32>
    %cst_64 = arith.constant 2.000000e+00 : f32
    %154 = vector.broadcast %cst_64 : f32 to vector<2x64xf32>
    %155 = arith.mulf %154, %153 : vector<2x64xf32>
    %cst_65 = arith.constant 1.000000e+00 : f32
    %156 = vector.broadcast %cst_65 : f32 to vector<2x64xf32>
    %157 = arith.subf %155, %156 : vector<2x64xf32>
    %158 = vector.extract_strided_slice %150 {offsets = [0, 192], sizes = [2, 64], strides = [1, 1]} : vector<2x256xf32> to vector<2x64xf32>
    %159 = arith.mulf %152, %110 : vector<2x64xf32>
    %160 = arith.mulf %151, %157 : vector<2x64xf32>
    %161 = arith.addf %159, %160 : vector<2x64xf32>
    %162 = math.tanh %161 : vector<2x64xf32>
    %163 = arith.mulf %158, %162 : vector<2x64xf32>
    %c6 = arith.constant 6 : index
    %c0_66 = arith.constant 0 : index
    %164 = vector.load %arg10[%c6, %c0_66] : memref<16x256xf32, #tpu.memory_space<vmem>>, vector<2x256xf32>
    %165 = arith.truncf %135 : vector<2x64xf32> to vector<2x64xbf16>
    %c0_67 = arith.constant 0 : index
    %c0_68 = arith.constant 0 : index
    %166 = vector.load %arg2[%c0_67, %c0_68] : memref<64x256xbf16, #tpu.memory_space<vmem>>, vector<64x256xbf16>
    %cst_69 = arith.constant dense<0.000000e+00> : vector<2x256xf32>
    %167 = tpu.matmul %165, %166, %cst_69 {dimension_numbers = #tpu.dot_dimension_numbers<[1], [0], [0], [1], [0, 0, 1, 1], [], []>} : vector<2x64xbf16>, vector<64x256xbf16>, vector<2x256xf32> -> vector<2x256xf32>
    %168 = arith.addf %164, %167 : vector<2x256xf32>
    %169 = arith.negf %168 : vector<2x256xf32>
    %170 = math.exp %169 : vector<2x256xf32>
    %cst_70 = arith.constant 1.000000e+00 : f32
    %171 = vector.broadcast %cst_70 : f32 to vector<2x256xf32>
    %172 = arith.addf %171, %170 : vector<2x256xf32>
    %173 = arith.divf %171, %172 : vector<2x256xf32>
    %174 = vector.extract_strided_slice %173 {offsets = [0, 0], sizes = [2, 64], strides = [1, 1]} : vector<2x256xf32> to vector<2x64xf32>
    %175 = vector.extract_strided_slice %173 {offsets = [0, 64], sizes = [2, 64], strides = [1, 1]} : vector<2x256xf32> to vector<2x64xf32>
    %176 = vector.extract_strided_slice %173 {offsets = [0, 128], sizes = [2, 64], strides = [1, 1]} : vector<2x256xf32> to vector<2x64xf32>
    %cst_71 = arith.constant 2.000000e+00 : f32
    %177 = vector.broadcast %cst_71 : f32 to vector<2x64xf32>
    %178 = arith.mulf %177, %176 : vector<2x64xf32>
    %cst_72 = arith.constant 1.000000e+00 : f32
    %179 = vector.broadcast %cst_72 : f32 to vector<2x64xf32>
    %180 = arith.subf %178, %179 : vector<2x64xf32>
    %181 = vector.extract_strided_slice %173 {offsets = [0, 192], sizes = [2, 64], strides = [1, 1]} : vector<2x256xf32> to vector<2x64xf32>
    %182 = arith.mulf %175, %133 : vector<2x64xf32>
    %183 = arith.mulf %174, %180 : vector<2x64xf32>
    %184 = arith.addf %182, %183 : vector<2x64xf32>
    %185 = math.tanh %184 : vector<2x64xf32>
    %186 = arith.mulf %181, %185 : vector<2x64xf32>
    %187 = arith.truncf %186 : vector<2x64xf32> to vector<2x64xbf16>
    %c0_73 = arith.constant 0 : index
    %c0_74 = arith.constant 0 : index
    %188 = vector.load %arg4[%c0_73, %c0_74] : memref<64x256xbf16, #tpu.memory_space<vmem>>, vector<64x256xbf16>
    %cst_75 = arith.constant dense<0.000000e+00> : vector<2x256xf32>
    %189 = tpu.matmul %187, %188, %cst_75 {dimension_numbers = #tpu.dot_dimension_numbers<[1], [0], [0], [1], [0, 0, 1, 1], [], []>} : vector<2x64xbf16>, vector<64x256xbf16>, vector<2x256xf32> -> vector<2x256xf32>
    %190 = arith.truncf %163 : vector<2x64xf32> to vector<2x64xbf16>
    %c0_76 = arith.constant 0 : index
    %c0_77 = arith.constant 0 : index
    %191 = vector.load %arg5[%c0_76, %c0_77] : memref<64x256xbf16, #tpu.memory_space<vmem>>, vector<64x256xbf16>
    %cst_78 = arith.constant dense<0.000000e+00> : vector<2x256xf32>
    %192 = tpu.matmul %190, %191, %cst_78 {dimension_numbers = #tpu.dot_dimension_numbers<[1], [0], [0], [1], [0, 0, 1, 1], [], []>} : vector<2x64xbf16>, vector<64x256xbf16>, vector<2x256xf32> -> vector<2x256xf32>
    %193 = arith.addf %189, %192 : vector<2x256xf32>
    %c0_79 = arith.constant 0 : index
    %c0_80 = arith.constant 0 : index
    %194 = vector.load %arg6[%c0_79, %c0_80] : memref<1x256xf32, #tpu.memory_space<vmem>>, vector<1x256xf32>
    %195 = vector.broadcast %194 : vector<1x256xf32> to vector<2x256xf32>
    %196 = arith.addf %193, %195 : vector<2x256xf32>
    %197 = arith.negf %196 : vector<2x256xf32>
    %198 = math.exp %197 : vector<2x256xf32>
    %cst_81 = arith.constant 1.000000e+00 : f32
    %199 = vector.broadcast %cst_81 : f32 to vector<2x256xf32>
    %200 = arith.addf %199, %198 : vector<2x256xf32>
    %201 = arith.divf %199, %200 : vector<2x256xf32>
    %202 = vector.extract_strided_slice %201 {offsets = [0, 0], sizes = [2, 64], strides = [1, 1]} : vector<2x256xf32> to vector<2x64xf32>
    %203 = vector.extract_strided_slice %201 {offsets = [0, 64], sizes = [2, 64], strides = [1, 1]} : vector<2x256xf32> to vector<2x64xf32>
    %204 = vector.extract_strided_slice %201 {offsets = [0, 128], sizes = [2, 64], strides = [1, 1]} : vector<2x256xf32> to vector<2x64xf32>
    %cst_82 = arith.constant 2.000000e+00 : f32
    %205 = vector.broadcast %cst_82 : f32 to vector<2x64xf32>
    %206 = arith.mulf %205, %204 : vector<2x64xf32>
    %cst_83 = arith.constant 1.000000e+00 : f32
    %207 = vector.broadcast %cst_83 : f32 to vector<2x64xf32>
    %208 = arith.subf %206, %207 : vector<2x64xf32>
    %209 = vector.extract_strided_slice %201 {offsets = [0, 192], sizes = [2, 64], strides = [1, 1]} : vector<2x256xf32> to vector<2x64xf32>
    %210 = arith.mulf %203, %161 : vector<2x64xf32>
    %211 = arith.mulf %202, %208 : vector<2x64xf32>
    %212 = arith.addf %210, %211 : vector<2x64xf32>
    %213 = math.tanh %212 : vector<2x64xf32>
    %214 = arith.mulf %209, %213 : vector<2x64xf32>
    %c8 = arith.constant 8 : index
    %c0_84 = arith.constant 0 : index
    %215 = vector.load %arg10[%c8, %c0_84] : memref<16x256xf32, #tpu.memory_space<vmem>>, vector<2x256xf32>
    %216 = arith.truncf %186 : vector<2x64xf32> to vector<2x64xbf16>
    %c0_85 = arith.constant 0 : index
    %c0_86 = arith.constant 0 : index
    %217 = vector.load %arg2[%c0_85, %c0_86] : memref<64x256xbf16, #tpu.memory_space<vmem>>, vector<64x256xbf16>
    %cst_87 = arith.constant dense<0.000000e+00> : vector<2x256xf32>
    %218 = tpu.matmul %216, %217, %cst_87 {dimension_numbers = #tpu.dot_dimension_numbers<[1], [0], [0], [1], [0, 0, 1, 1], [], []>} : vector<2x64xbf16>, vector<64x256xbf16>, vector<2x256xf32> -> vector<2x256xf32>
    %219 = arith.addf %215, %218 : vector<2x256xf32>
    %220 = arith.negf %219 : vector<2x256xf32>
    %221 = math.exp %220 : vector<2x256xf32>
    %cst_88 = arith.constant 1.000000e+00 : f32
    %222 = vector.broadcast %cst_88 : f32 to vector<2x256xf32>
    %223 = arith.addf %222, %221 : vector<2x256xf32>
    %224 = arith.divf %222, %223 : vector<2x256xf32>
    %225 = vector.extract_strided_slice %224 {offsets = [0, 0], sizes = [2, 64], strides = [1, 1]} : vector<2x256xf32> to vector<2x64xf32>
    %226 = vector.extract_strided_slice %224 {offsets = [0, 64], sizes = [2, 64], strides = [1, 1]} : vector<2x256xf32> to vector<2x64xf32>
    %227 = vector.extract_strided_slice %224 {offsets = [0, 128], sizes = [2, 64], strides = [1, 1]} : vector<2x256xf32> to vector<2x64xf32>
    %cst_89 = arith.constant 2.000000e+00 : f32
    %228 = vector.broadcast %cst_89 : f32 to vector<2x64xf32>
    %229 = arith.mulf %228, %227 : vector<2x64xf32>
    %cst_90 = arith.constant 1.000000e+00 : f32
    %230 = vector.broadcast %cst_90 : f32 to vector<2x64xf32>
    %231 = arith.subf %229, %230 : vector<2x64xf32>
    %232 = vector.extract_strided_slice %224 {offsets = [0, 192], sizes = [2, 64], strides = [1, 1]} : vector<2x256xf32> to vector<2x64xf32>
    %233 = arith.mulf %226, %184 : vector<2x64xf32>
    %234 = arith.mulf %225, %231 : vector<2x64xf32>
    %235 = arith.addf %233, %234 : vector<2x64xf32>
    %236 = math.tanh %235 : vector<2x64xf32>
    %237 = arith.mulf %232, %236 : vector<2x64xf32>
    %238 = arith.truncf %237 : vector<2x64xf32> to vector<2x64xbf16>
    %c0_91 = arith.constant 0 : index
    %c0_92 = arith.constant 0 : index
    %239 = vector.load %arg4[%c0_91, %c0_92] : memref<64x256xbf16, #tpu.memory_space<vmem>>, vector<64x256xbf16>
    %cst_93 = arith.constant dense<0.000000e+00> : vector<2x256xf32>
    %240 = tpu.matmul %238, %239, %cst_93 {dimension_numbers = #tpu.dot_dimension_numbers<[1], [0], [0], [1], [0, 0, 1, 1], [], []>} : vector<2x64xbf16>, vector<64x256xbf16>, vector<2x256xf32> -> vector<2x256xf32>
    %241 = arith.truncf %214 : vector<2x64xf32> to vector<2x64xbf16>
    %c0_94 = arith.constant 0 : index
    %c0_95 = arith.constant 0 : index
    %242 = vector.load %arg5[%c0_94, %c0_95] : memref<64x256xbf16, #tpu.memory_space<vmem>>, vector<64x256xbf16>
    %cst_96 = arith.constant dense<0.000000e+00> : vector<2x256xf32>
    %243 = tpu.matmul %241, %242, %cst_96 {dimension_numbers = #tpu.dot_dimension_numbers<[1], [0], [0], [1], [0, 0, 1, 1], [], []>} : vector<2x64xbf16>, vector<64x256xbf16>, vector<2x256xf32> -> vector<2x256xf32>
    %244 = arith.addf %240, %243 : vector<2x256xf32>
    %c0_97 = arith.constant 0 : index
    %c0_98 = arith.constant 0 : index
    %245 = vector.load %arg6[%c0_97, %c0_98] : memref<1x256xf32, #tpu.memory_space<vmem>>, vector<1x256xf32>
    %246 = vector.broadcast %245 : vector<1x256xf32> to vector<2x256xf32>
    %247 = arith.addf %244, %246 : vector<2x256xf32>
    %248 = arith.negf %247 : vector<2x256xf32>
    %249 = math.exp %248 : vector<2x256xf32>
    %cst_99 = arith.constant 1.000000e+00 : f32
    %250 = vector.broadcast %cst_99 : f32 to vector<2x256xf32>
    %251 = arith.addf %250, %249 : vector<2x256xf32>
    %252 = arith.divf %250, %251 : vector<2x256xf32>
    %253 = vector.extract_strided_slice %252 {offsets = [0, 0], sizes = [2, 64], strides = [1, 1]} : vector<2x256xf32> to vector<2x64xf32>
    %254 = vector.extract_strided_slice %252 {offsets = [0, 64], sizes = [2, 64], strides = [1, 1]} : vector<2x256xf32> to vector<2x64xf32>
    %255 = vector.extract_strided_slice %252 {offsets = [0, 128], sizes = [2, 64], strides = [1, 1]} : vector<2x256xf32> to vector<2x64xf32>
    %cst_100 = arith.constant 2.000000e+00 : f32
    %256 = vector.broadcast %cst_100 : f32 to vector<2x64xf32>
    %257 = arith.mulf %256, %255 : vector<2x64xf32>
    %cst_101 = arith.constant 1.000000e+00 : f32
    %258 = vector.broadcast %cst_101 : f32 to vector<2x64xf32>
    %259 = arith.subf %257, %258 : vector<2x64xf32>
    %260 = vector.extract_strided_slice %252 {offsets = [0, 192], sizes = [2, 64], strides = [1, 1]} : vector<2x256xf32> to vector<2x64xf32>
    %261 = arith.mulf %254, %212 : vector<2x64xf32>
    %262 = arith.mulf %253, %259 : vector<2x64xf32>
    %263 = arith.addf %261, %262 : vector<2x64xf32>
    %264 = math.tanh %263 : vector<2x64xf32>
    %265 = arith.mulf %260, %264 : vector<2x64xf32>
    %c10 = arith.constant 10 : index
    %c0_102 = arith.constant 0 : index
    %266 = vector.load %arg10[%c10, %c0_102] : memref<16x256xf32, #tpu.memory_space<vmem>>, vector<2x256xf32>
    %267 = arith.truncf %237 : vector<2x64xf32> to vector<2x64xbf16>
    %c0_103 = arith.constant 0 : index
    %c0_104 = arith.constant 0 : index
    %268 = vector.load %arg2[%c0_103, %c0_104] : memref<64x256xbf16, #tpu.memory_space<vmem>>, vector<64x256xbf16>
    %cst_105 = arith.constant dense<0.000000e+00> : vector<2x256xf32>
    %269 = tpu.matmul %267, %268, %cst_105 {dimension_numbers = #tpu.dot_dimension_numbers<[1], [0], [0], [1], [0, 0, 1, 1], [], []>} : vector<2x64xbf16>, vector<64x256xbf16>, vector<2x256xf32> -> vector<2x256xf32>
    %270 = arith.addf %266, %269 : vector<2x256xf32>
    %271 = arith.negf %270 : vector<2x256xf32>
    %272 = math.exp %271 : vector<2x256xf32>
    %cst_106 = arith.constant 1.000000e+00 : f32
    %273 = vector.broadcast %cst_106 : f32 to vector<2x256xf32>
    %274 = arith.addf %273, %272 : vector<2x256xf32>
    %275 = arith.divf %273, %274 : vector<2x256xf32>
    %276 = vector.extract_strided_slice %275 {offsets = [0, 0], sizes = [2, 64], strides = [1, 1]} : vector<2x256xf32> to vector<2x64xf32>
    %277 = vector.extract_strided_slice %275 {offsets = [0, 64], sizes = [2, 64], strides = [1, 1]} : vector<2x256xf32> to vector<2x64xf32>
    %278 = vector.extract_strided_slice %275 {offsets = [0, 128], sizes = [2, 64], strides = [1, 1]} : vector<2x256xf32> to vector<2x64xf32>
    %cst_107 = arith.constant 2.000000e+00 : f32
    %279 = vector.broadcast %cst_107 : f32 to vector<2x64xf32>
    %280 = arith.mulf %279, %278 : vector<2x64xf32>
    %cst_108 = arith.constant 1.000000e+00 : f32
    %281 = vector.broadcast %cst_108 : f32 to vector<2x64xf32>
    %282 = arith.subf %280, %281 : vector<2x64xf32>
    %283 = vector.extract_strided_slice %275 {offsets = [0, 192], sizes = [2, 64], strides = [1, 1]} : vector<2x256xf32> to vector<2x64xf32>
    %284 = arith.mulf %277, %235 : vector<2x64xf32>
    %285 = arith.mulf %276, %282 : vector<2x64xf32>
    %286 = arith.addf %284, %285 : vector<2x64xf32>
    %287 = math.tanh %286 : vector<2x64xf32>
    %288 = arith.mulf %283, %287 : vector<2x64xf32>
    %289 = arith.truncf %288 : vector<2x64xf32> to vector<2x64xbf16>
    %c0_109 = arith.constant 0 : index
    %c0_110 = arith.constant 0 : index
    %290 = vector.load %arg4[%c0_109, %c0_110] : memref<64x256xbf16, #tpu.memory_space<vmem>>, vector<64x256xbf16>
    %cst_111 = arith.constant dense<0.000000e+00> : vector<2x256xf32>
    %291 = tpu.matmul %289, %290, %cst_111 {dimension_numbers = #tpu.dot_dimension_numbers<[1], [0], [0], [1], [0, 0, 1, 1], [], []>} : vector<2x64xbf16>, vector<64x256xbf16>, vector<2x256xf32> -> vector<2x256xf32>
    %292 = arith.truncf %265 : vector<2x64xf32> to vector<2x64xbf16>
    %c0_112 = arith.constant 0 : index
    %c0_113 = arith.constant 0 : index
    %293 = vector.load %arg5[%c0_112, %c0_113] : memref<64x256xbf16, #tpu.memory_space<vmem>>, vector<64x256xbf16>
    %cst_114 = arith.constant dense<0.000000e+00> : vector<2x256xf32>
    %294 = tpu.matmul %292, %293, %cst_114 {dimension_numbers = #tpu.dot_dimension_numbers<[1], [0], [0], [1], [0, 0, 1, 1], [], []>} : vector<2x64xbf16>, vector<64x256xbf16>, vector<2x256xf32> -> vector<2x256xf32>
    %295 = arith.addf %291, %294 : vector<2x256xf32>
    %c0_115 = arith.constant 0 : index
    %c0_116 = arith.constant 0 : index
    %296 = vector.load %arg6[%c0_115, %c0_116] : memref<1x256xf32, #tpu.memory_space<vmem>>, vector<1x256xf32>
    %297 = vector.broadcast %296 : vector<1x256xf32> to vector<2x256xf32>
    %298 = arith.addf %295, %297 : vector<2x256xf32>
    %299 = arith.negf %298 : vector<2x256xf32>
    %300 = math.exp %299 : vector<2x256xf32>
    %cst_117 = arith.constant 1.000000e+00 : f32
    %301 = vector.broadcast %cst_117 : f32 to vector<2x256xf32>
    %302 = arith.addf %301, %300 : vector<2x256xf32>
    %303 = arith.divf %301, %302 : vector<2x256xf32>
    %304 = vector.extract_strided_slice %303 {offsets = [0, 0], sizes = [2, 64], strides = [1, 1]} : vector<2x256xf32> to vector<2x64xf32>
    %305 = vector.extract_strided_slice %303 {offsets = [0, 64], sizes = [2, 64], strides = [1, 1]} : vector<2x256xf32> to vector<2x64xf32>
    %306 = vector.extract_strided_slice %303 {offsets = [0, 128], sizes = [2, 64], strides = [1, 1]} : vector<2x256xf32> to vector<2x64xf32>
    %cst_118 = arith.constant 2.000000e+00 : f32
    %307 = vector.broadcast %cst_118 : f32 to vector<2x64xf32>
    %308 = arith.mulf %307, %306 : vector<2x64xf32>
    %cst_119 = arith.constant 1.000000e+00 : f32
    %309 = vector.broadcast %cst_119 : f32 to vector<2x64xf32>
    %310 = arith.subf %308, %309 : vector<2x64xf32>
    %311 = vector.extract_strided_slice %303 {offsets = [0, 192], sizes = [2, 64], strides = [1, 1]} : vector<2x256xf32> to vector<2x64xf32>
    %312 = arith.mulf %305, %263 : vector<2x64xf32>
    %313 = arith.mulf %304, %310 : vector<2x64xf32>
    %314 = arith.addf %312, %313 : vector<2x64xf32>
    %315 = math.tanh %314 : vector<2x64xf32>
    %316 = arith.mulf %311, %315 : vector<2x64xf32>
    %c12 = arith.constant 12 : index
    %c0_120 = arith.constant 0 : index
    %317 = vector.load %arg10[%c12, %c0_120] : memref<16x256xf32, #tpu.memory_space<vmem>>, vector<2x256xf32>
    %318 = arith.truncf %288 : vector<2x64xf32> to vector<2x64xbf16>
    %c0_121 = arith.constant 0 : index
    %c0_122 = arith.constant 0 : index
    %319 = vector.load %arg2[%c0_121, %c0_122] : memref<64x256xbf16, #tpu.memory_space<vmem>>, vector<64x256xbf16>
    %cst_123 = arith.constant dense<0.000000e+00> : vector<2x256xf32>
    %320 = tpu.matmul %318, %319, %cst_123 {dimension_numbers = #tpu.dot_dimension_numbers<[1], [0], [0], [1], [0, 0, 1, 1], [], []>} : vector<2x64xbf16>, vector<64x256xbf16>, vector<2x256xf32> -> vector<2x256xf32>
    %321 = arith.addf %317, %320 : vector<2x256xf32>
    %322 = arith.negf %321 : vector<2x256xf32>
    %323 = math.exp %322 : vector<2x256xf32>
    %cst_124 = arith.constant 1.000000e+00 : f32
    %324 = vector.broadcast %cst_124 : f32 to vector<2x256xf32>
    %325 = arith.addf %324, %323 : vector<2x256xf32>
    %326 = arith.divf %324, %325 : vector<2x256xf32>
    %327 = vector.extract_strided_slice %326 {offsets = [0, 0], sizes = [2, 64], strides = [1, 1]} : vector<2x256xf32> to vector<2x64xf32>
    %328 = vector.extract_strided_slice %326 {offsets = [0, 64], sizes = [2, 64], strides = [1, 1]} : vector<2x256xf32> to vector<2x64xf32>
    %329 = vector.extract_strided_slice %326 {offsets = [0, 128], sizes = [2, 64], strides = [1, 1]} : vector<2x256xf32> to vector<2x64xf32>
    %cst_125 = arith.constant 2.000000e+00 : f32
    %330 = vector.broadcast %cst_125 : f32 to vector<2x64xf32>
    %331 = arith.mulf %330, %329 : vector<2x64xf32>
    %cst_126 = arith.constant 1.000000e+00 : f32
    %332 = vector.broadcast %cst_126 : f32 to vector<2x64xf32>
    %333 = arith.subf %331, %332 : vector<2x64xf32>
    %334 = vector.extract_strided_slice %326 {offsets = [0, 192], sizes = [2, 64], strides = [1, 1]} : vector<2x256xf32> to vector<2x64xf32>
    %335 = arith.mulf %328, %286 : vector<2x64xf32>
    %336 = arith.mulf %327, %333 : vector<2x64xf32>
    %337 = arith.addf %335, %336 : vector<2x64xf32>
    %338 = math.tanh %337 : vector<2x64xf32>
    %339 = arith.mulf %334, %338 : vector<2x64xf32>
    %340 = arith.truncf %339 : vector<2x64xf32> to vector<2x64xbf16>
    %c0_127 = arith.constant 0 : index
    %c0_128 = arith.constant 0 : index
    %341 = vector.load %arg4[%c0_127, %c0_128] : memref<64x256xbf16, #tpu.memory_space<vmem>>, vector<64x256xbf16>
    %cst_129 = arith.constant dense<0.000000e+00> : vector<2x256xf32>
    %342 = tpu.matmul %340, %341, %cst_129 {dimension_numbers = #tpu.dot_dimension_numbers<[1], [0], [0], [1], [0, 0, 1, 1], [], []>} : vector<2x64xbf16>, vector<64x256xbf16>, vector<2x256xf32> -> vector<2x256xf32>
    %343 = arith.truncf %316 : vector<2x64xf32> to vector<2x64xbf16>
    %c0_130 = arith.constant 0 : index
    %c0_131 = arith.constant 0 : index
    %344 = vector.load %arg5[%c0_130, %c0_131] : memref<64x256xbf16, #tpu.memory_space<vmem>>, vector<64x256xbf16>
    %cst_132 = arith.constant dense<0.000000e+00> : vector<2x256xf32>
    %345 = tpu.matmul %343, %344, %cst_132 {dimension_numbers = #tpu.dot_dimension_numbers<[1], [0], [0], [1], [0, 0, 1, 1], [], []>} : vector<2x64xbf16>, vector<64x256xbf16>, vector<2x256xf32> -> vector<2x256xf32>
    %346 = arith.addf %342, %345 : vector<2x256xf32>
    %c0_133 = arith.constant 0 : index
    %c0_134 = arith.constant 0 : index
    %347 = vector.load %arg6[%c0_133, %c0_134] : memref<1x256xf32, #tpu.memory_space<vmem>>, vector<1x256xf32>
    %348 = vector.broadcast %347 : vector<1x256xf32> to vector<2x256xf32>
    %349 = arith.addf %346, %348 : vector<2x256xf32>
    %350 = arith.negf %349 : vector<2x256xf32>
    %351 = math.exp %350 : vector<2x256xf32>
    %cst_135 = arith.constant 1.000000e+00 : f32
    %352 = vector.broadcast %cst_135 : f32 to vector<2x256xf32>
    %353 = arith.addf %352, %351 : vector<2x256xf32>
    %354 = arith.divf %352, %353 : vector<2x256xf32>
    %355 = vector.extract_strided_slice %354 {offsets = [0, 0], sizes = [2, 64], strides = [1, 1]} : vector<2x256xf32> to vector<2x64xf32>
    %356 = vector.extract_strided_slice %354 {offsets = [0, 64], sizes = [2, 64], strides = [1, 1]} : vector<2x256xf32> to vector<2x64xf32>
    %357 = vector.extract_strided_slice %354 {offsets = [0, 128], sizes = [2, 64], strides = [1, 1]} : vector<2x256xf32> to vector<2x64xf32>
    %cst_136 = arith.constant 2.000000e+00 : f32
    %358 = vector.broadcast %cst_136 : f32 to vector<2x64xf32>
    %359 = arith.mulf %358, %357 : vector<2x64xf32>
    %cst_137 = arith.constant 1.000000e+00 : f32
    %360 = vector.broadcast %cst_137 : f32 to vector<2x64xf32>
    %361 = arith.subf %359, %360 : vector<2x64xf32>
    %362 = vector.extract_strided_slice %354 {offsets = [0, 192], sizes = [2, 64], strides = [1, 1]} : vector<2x256xf32> to vector<2x64xf32>
    %363 = arith.mulf %356, %314 : vector<2x64xf32>
    %364 = arith.mulf %355, %361 : vector<2x64xf32>
    %365 = arith.addf %363, %364 : vector<2x64xf32>
    %366 = math.tanh %365 : vector<2x64xf32>
    %367 = arith.mulf %362, %366 : vector<2x64xf32>
    %c14 = arith.constant 14 : index
    %c0_138 = arith.constant 0 : index
    %368 = vector.load %arg10[%c14, %c0_138] : memref<16x256xf32, #tpu.memory_space<vmem>>, vector<2x256xf32>
    %369 = arith.truncf %339 : vector<2x64xf32> to vector<2x64xbf16>
    %c0_139 = arith.constant 0 : index
    %c0_140 = arith.constant 0 : index
    %370 = vector.load %arg2[%c0_139, %c0_140] : memref<64x256xbf16, #tpu.memory_space<vmem>>, vector<64x256xbf16>
    %cst_141 = arith.constant dense<0.000000e+00> : vector<2x256xf32>
    %371 = tpu.matmul %369, %370, %cst_141 {dimension_numbers = #tpu.dot_dimension_numbers<[1], [0], [0], [1], [0, 0, 1, 1], [], []>} : vector<2x64xbf16>, vector<64x256xbf16>, vector<2x256xf32> -> vector<2x256xf32>
    %372 = arith.addf %368, %371 : vector<2x256xf32>
    %373 = arith.negf %372 : vector<2x256xf32>
    %374 = math.exp %373 : vector<2x256xf32>
    %cst_142 = arith.constant 1.000000e+00 : f32
    %375 = vector.broadcast %cst_142 : f32 to vector<2x256xf32>
    %376 = arith.addf %375, %374 : vector<2x256xf32>
    %377 = arith.divf %375, %376 : vector<2x256xf32>
    %378 = vector.extract_strided_slice %377 {offsets = [0, 0], sizes = [2, 64], strides = [1, 1]} : vector<2x256xf32> to vector<2x64xf32>
    %379 = vector.extract_strided_slice %377 {offsets = [0, 64], sizes = [2, 64], strides = [1, 1]} : vector<2x256xf32> to vector<2x64xf32>
    %380 = vector.extract_strided_slice %377 {offsets = [0, 128], sizes = [2, 64], strides = [1, 1]} : vector<2x256xf32> to vector<2x64xf32>
    %cst_143 = arith.constant 2.000000e+00 : f32
    %381 = vector.broadcast %cst_143 : f32 to vector<2x64xf32>
    %382 = arith.mulf %381, %380 : vector<2x64xf32>
    %cst_144 = arith.constant 1.000000e+00 : f32
    %383 = vector.broadcast %cst_144 : f32 to vector<2x64xf32>
    %384 = arith.subf %382, %383 : vector<2x64xf32>
    %385 = vector.extract_strided_slice %377 {offsets = [0, 192], sizes = [2, 64], strides = [1, 1]} : vector<2x256xf32> to vector<2x64xf32>
    %386 = arith.mulf %379, %337 : vector<2x64xf32>
    %387 = arith.mulf %378, %384 : vector<2x64xf32>
    %388 = arith.addf %386, %387 : vector<2x64xf32>
    %389 = math.tanh %388 : vector<2x64xf32>
    %390 = arith.mulf %385, %389 : vector<2x64xf32>
    %391 = arith.truncf %390 : vector<2x64xf32> to vector<2x64xbf16>
    %c0_145 = arith.constant 0 : index
    %c0_146 = arith.constant 0 : index
    %392 = vector.load %arg4[%c0_145, %c0_146] : memref<64x256xbf16, #tpu.memory_space<vmem>>, vector<64x256xbf16>
    %cst_147 = arith.constant dense<0.000000e+00> : vector<2x256xf32>
    %393 = tpu.matmul %391, %392, %cst_147 {dimension_numbers = #tpu.dot_dimension_numbers<[1], [0], [0], [1], [0, 0, 1, 1], [], []>} : vector<2x64xbf16>, vector<64x256xbf16>, vector<2x256xf32> -> vector<2x256xf32>
    %394 = arith.truncf %367 : vector<2x64xf32> to vector<2x64xbf16>
    %c0_148 = arith.constant 0 : index
    %c0_149 = arith.constant 0 : index
    %395 = vector.load %arg5[%c0_148, %c0_149] : memref<64x256xbf16, #tpu.memory_space<vmem>>, vector<64x256xbf16>
    %cst_150 = arith.constant dense<0.000000e+00> : vector<2x256xf32>
    %396 = tpu.matmul %394, %395, %cst_150 {dimension_numbers = #tpu.dot_dimension_numbers<[1], [0], [0], [1], [0, 0, 1, 1], [], []>} : vector<2x64xbf16>, vector<64x256xbf16>, vector<2x256xf32> -> vector<2x256xf32>
    %397 = arith.addf %393, %396 : vector<2x256xf32>
    %c0_151 = arith.constant 0 : index
    %c0_152 = arith.constant 0 : index
    %398 = vector.load %arg6[%c0_151, %c0_152] : memref<1x256xf32, #tpu.memory_space<vmem>>, vector<1x256xf32>
    %399 = vector.broadcast %398 : vector<1x256xf32> to vector<2x256xf32>
    %400 = arith.addf %397, %399 : vector<2x256xf32>
    %401 = arith.negf %400 : vector<2x256xf32>
    %402 = math.exp %401 : vector<2x256xf32>
    %cst_153 = arith.constant 1.000000e+00 : f32
    %403 = vector.broadcast %cst_153 : f32 to vector<2x256xf32>
    %404 = arith.addf %403, %402 : vector<2x256xf32>
    %405 = arith.divf %403, %404 : vector<2x256xf32>
    %406 = vector.extract_strided_slice %405 {offsets = [0, 0], sizes = [2, 64], strides = [1, 1]} : vector<2x256xf32> to vector<2x64xf32>
    %407 = vector.extract_strided_slice %405 {offsets = [0, 64], sizes = [2, 64], strides = [1, 1]} : vector<2x256xf32> to vector<2x64xf32>
    %408 = vector.extract_strided_slice %405 {offsets = [0, 128], sizes = [2, 64], strides = [1, 1]} : vector<2x256xf32> to vector<2x64xf32>
    %cst_154 = arith.constant 2.000000e+00 : f32
    %409 = vector.broadcast %cst_154 : f32 to vector<2x64xf32>
    %410 = arith.mulf %409, %408 : vector<2x64xf32>
    %cst_155 = arith.constant 1.000000e+00 : f32
    %411 = vector.broadcast %cst_155 : f32 to vector<2x64xf32>
    %412 = arith.subf %410, %411 : vector<2x64xf32>
    %413 = vector.extract_strided_slice %405 {offsets = [0, 192], sizes = [2, 64], strides = [1, 1]} : vector<2x256xf32> to vector<2x64xf32>
    %414 = arith.mulf %407, %365 : vector<2x64xf32>
    %415 = arith.mulf %406, %412 : vector<2x64xf32>
    %416 = arith.addf %414, %415 : vector<2x64xf32>
    %417 = math.tanh %416 : vector<2x64xf32>
    %418 = arith.mulf %413, %417 : vector<2x64xf32>
    %419 = arith.truncf %418 : vector<2x64xf32> to vector<2x64xbf16>
    %c0_156 = arith.constant 0 : index
    %c0_157 = arith.constant 0 : index
    %420 = vector.load %arg7[%c0_156, %c0_157] : memref<64x9xbf16, #tpu.memory_space<vmem>>, vector<64x9xbf16>
    %cst_158 = arith.constant dense<0.000000e+00> : vector<2x9xf32>
    %421 = tpu.matmul %419, %420, %cst_158 {dimension_numbers = #tpu.dot_dimension_numbers<[1], [0], [0], [1], [0, 0, 1, 1], [], []>} : vector<2x64xbf16>, vector<64x9xbf16>, vector<2x9xf32> -> vector<2x9xf32>
    %c0_159 = arith.constant 0 : index
    %422 = memref.load %arg8[%c0_159] : memref<1xf32, #tpu.memory_space<smem>>
    %423 = vector.extract_strided_slice %421 {offsets = [0, 0], sizes = [2, 1], strides = [1, 1]} : vector<2x9xf32> to vector<2x1xf32>
    %424 = vector.broadcast %422 : f32 to vector<2x1xf32>
    %425 = arith.addf %423, %424 : vector<2x1xf32>
    %426 = vector.extract_strided_slice %421 {offsets = [0, 1], sizes = [2, 1], strides = [1, 1]} : vector<2x9xf32> to vector<2x1xf32>
    %427 = vector.extract_strided_slice %421 {offsets = [0, 2], sizes = [2, 1], strides = [1, 1]} : vector<2x9xf32> to vector<2x1xf32>
    %428 = vector.extract_strided_slice %421 {offsets = [0, 3], sizes = [2, 1], strides = [1, 1]} : vector<2x9xf32> to vector<2x1xf32>
    %429 = vector.extract_strided_slice %421 {offsets = [0, 4], sizes = [2, 1], strides = [1, 1]} : vector<2x9xf32> to vector<2x1xf32>
    %430 = vector.extract_strided_slice %421 {offsets = [0, 5], sizes = [2, 1], strides = [1, 1]} : vector<2x9xf32> to vector<2x1xf32>
    %431 = vector.extract_strided_slice %421 {offsets = [0, 6], sizes = [2, 1], strides = [1, 1]} : vector<2x9xf32> to vector<2x1xf32>
    %432 = vector.extract_strided_slice %421 {offsets = [0, 7], sizes = [2, 1], strides = [1, 1]} : vector<2x9xf32> to vector<2x1xf32>
    %433 = vector.extract_strided_slice %421 {offsets = [0, 8], sizes = [2, 1], strides = [1, 1]} : vector<2x9xf32> to vector<2x1xf32>
    %434 = arith.subf %425, %426 : vector<2x1xf32>
    %435 = arith.subf %425, %427 : vector<2x1xf32>
    %436 = arith.subf %425, %428 : vector<2x1xf32>
    %437 = arith.subf %425, %429 : vector<2x1xf32>
    %438 = arith.subf %425, %426 : vector<2x1xf32>
    %439 = arith.subf %438, %428 : vector<2x1xf32>
    %440 = arith.addf %439, %430 : vector<2x1xf32>
    %441 = arith.subf %425, %426 : vector<2x1xf32>
    %442 = arith.subf %441, %429 : vector<2x1xf32>
    %443 = arith.addf %442, %431 : vector<2x1xf32>
    %444 = arith.subf %425, %427 : vector<2x1xf32>
    %445 = arith.subf %444, %428 : vector<2x1xf32>
    %446 = arith.addf %445, %432 : vector<2x1xf32>
    %447 = arith.subf %425, %427 : vector<2x1xf32>
    %448 = arith.subf %447, %429 : vector<2x1xf32>
    %449 = arith.addf %448, %433 : vector<2x1xf32>
    %450 = arith.minimumf %425, %434 : vector<2x1xf32>
    %451 = arith.maximumf %425, %434 : vector<2x1xf32>
    %452 = arith.minimumf %450, %435 : vector<2x1xf32>
    %453 = arith.maximumf %451, %435 : vector<2x1xf32>
    %454 = arith.minimumf %452, %436 : vector<2x1xf32>
    %455 = arith.maximumf %453, %436 : vector<2x1xf32>
    %456 = arith.minimumf %454, %437 : vector<2x1xf32>
    %457 = arith.maximumf %455, %437 : vector<2x1xf32>
    %458 = arith.minimumf %456, %440 : vector<2x1xf32>
    %459 = arith.maximumf %457, %440 : vector<2x1xf32>
    %460 = arith.minimumf %458, %443 : vector<2x1xf32>
    %461 = arith.maximumf %459, %443 : vector<2x1xf32>
    %462 = arith.minimumf %460, %446 : vector<2x1xf32>
    %463 = arith.maximumf %461, %446 : vector<2x1xf32>
    %464 = arith.minimumf %462, %449 : vector<2x1xf32>
    %465 = arith.maximumf %463, %449 : vector<2x1xf32>
    %cst_160 = arith.constant dense<0x7F800000> : vector<1xf32>
    %466 = vector.multi_reduction <minimumf>, %464, %cst_160 [0] : vector<2x1xf32> to vector<1xf32>
    %467 = vector.shape_cast %466 : vector<1xf32> to vector<1x1xf32>
    %cst_161 = arith.constant dense<0xFF800000> : vector<1xf32>
    %468 = vector.multi_reduction <maximumf>, %465, %cst_161 [0] : vector<2x1xf32> to vector<1xf32>
    %469 = vector.shape_cast %468 : vector<1xf32> to vector<1x1xf32>
    %470 = arith.subf %469, %467 : vector<1x1xf32>
    %cst_162 = arith.constant 9.99999974E-6 : f32
    %471 = vector.broadcast %cst_162 : f32 to vector<1x1xf32>
    %472 = arith.addf %470, %471 : vector<1x1xf32>
    %473 = tpu.reciprocal %472 {approx = true} : vector<1x1xf32> -> vector<1x1xf32>
    %474 = tpu.iota {dimensions = array<i32: 1>} : vector<1x4096xi32>
    %c6_i32 = arith.constant 6 : i32
    %475 = vector.broadcast %c6_i32 : i32 to vector<1x4096xi32>
    %476 = arith.shrsi %474, %475 : vector<1x4096xi32>
    %c63_i32 = arith.constant 63 : i32
    %477 = vector.broadcast %c63_i32 : i32 to vector<1x4096xi32>
    %478 = arith.andi %474, %477 : vector<1x4096xi32>
    %c0_i32 = arith.constant 0 : i32
    %479 = vector.broadcast %c0_i32 : i32 to vector<1x4096xi32>
    %480 = arith.cmpi eq, %476, %479 : vector<1x4096xi32>
    %c63_i32_163 = arith.constant 63 : i32
    %481 = vector.broadcast %c63_i32_163 : i32 to vector<1x4096xi32>
    %482 = arith.cmpi eq, %476, %481 : vector<1x4096xi32>
    %c0_i32_164 = arith.constant 0 : i32
    %483 = vector.broadcast %c0_i32_164 : i32 to vector<1x4096xi32>
    %484 = arith.cmpi eq, %478, %483 : vector<1x4096xi32>
    %c63_i32_165 = arith.constant 63 : i32
    %485 = vector.broadcast %c63_i32_165 : i32 to vector<1x4096xi32>
    %486 = arith.cmpi eq, %478, %485 : vector<1x4096xi32>
    %cst_166 = arith.constant 0.000000e+00 : f32
    %487 = vector.broadcast %cst_166 : f32 to vector<2x1xf32>
    %488 = arith.subf %487, %426 : vector<2x1xf32>
    %cst_167 = arith.constant 0.000000e+00 : f32
    %489 = vector.shape_cast %480 : vector<1x4096xi1> to vector<1x4096xi1>
    %490 = vector.broadcast %489 : vector<1x4096xi1> to vector<2x4096xi1>
    %491 = vector.shape_cast %488 : vector<2x1xf32> to vector<2x1xf32>
    %492 = vector.broadcast %491 : vector<2x1xf32> to vector<2x4096xf32>
    %493 = vector.broadcast %cst_167 : f32 to vector<2x4096xf32>
    %494 = arith.select %490, %492, %493 : vector<2x4096xi1>, vector<2x4096xf32>
    %cst_168 = arith.constant 0.000000e+00 : f32
    %495 = vector.broadcast %cst_168 : f32 to vector<2x1xf32>
    %496 = arith.subf %495, %427 : vector<2x1xf32>
    %cst_169 = arith.constant 0.000000e+00 : f32
    %497 = vector.shape_cast %482 : vector<1x4096xi1> to vector<1x4096xi1>
    %498 = vector.broadcast %497 : vector<1x4096xi1> to vector<2x4096xi1>
    %499 = vector.shape_cast %496 : vector<2x1xf32> to vector<2x1xf32>
    %500 = vector.broadcast %499 : vector<2x1xf32> to vector<2x4096xf32>
    %501 = vector.broadcast %cst_169 : f32 to vector<2x4096xf32>
    %502 = arith.select %498, %500, %501 : vector<2x4096xi1>, vector<2x4096xf32>
    %503 = arith.addf %494, %502 : vector<2x4096xf32>
    %cst_170 = arith.constant 0.000000e+00 : f32
    %504 = vector.broadcast %cst_170 : f32 to vector<2x1xf32>
    %505 = arith.subf %504, %428 : vector<2x1xf32>
    %cst_171 = arith.constant 0.000000e+00 : f32
    %506 = vector.shape_cast %484 : vector<1x4096xi1> to vector<1x4096xi1>
    %507 = vector.broadcast %506 : vector<1x4096xi1> to vector<2x4096xi1>
    %508 = vector.shape_cast %505 : vector<2x1xf32> to vector<2x1xf32>
    %509 = vector.broadcast %508 : vector<2x1xf32> to vector<2x4096xf32>
    %510 = vector.broadcast %cst_171 : f32 to vector<2x4096xf32>
    %511 = arith.select %507, %509, %510 : vector<2x4096xi1>, vector<2x4096xf32>
    %512 = arith.addf %503, %511 : vector<2x4096xf32>
    %cst_172 = arith.constant 0.000000e+00 : f32
    %513 = vector.broadcast %cst_172 : f32 to vector<2x1xf32>
    %514 = arith.subf %513, %429 : vector<2x1xf32>
    %cst_173 = arith.constant 0.000000e+00 : f32
    %515 = vector.shape_cast %486 : vector<1x4096xi1> to vector<1x4096xi1>
    %516 = vector.broadcast %515 : vector<1x4096xi1> to vector<2x4096xi1>
    %517 = vector.shape_cast %514 : vector<2x1xf32> to vector<2x1xf32>
    %518 = vector.broadcast %517 : vector<2x1xf32> to vector<2x4096xf32>
    %519 = vector.broadcast %cst_173 : f32 to vector<2x4096xf32>
    %520 = arith.select %516, %518, %519 : vector<2x4096xi1>, vector<2x4096xf32>
    %521 = arith.addf %512, %520 : vector<2x4096xf32>
    %522 = arith.andi %480, %484 : vector<1x4096xi1>
    %cst_174 = arith.constant 0.000000e+00 : f32
    %523 = vector.shape_cast %522 : vector<1x4096xi1> to vector<1x4096xi1>
    %524 = vector.broadcast %523 : vector<1x4096xi1> to vector<2x4096xi1>
    %525 = vector.shape_cast %430 : vector<2x1xf32> to vector<2x1xf32>
    %526 = vector.broadcast %525 : vector<2x1xf32> to vector<2x4096xf32>
    %527 = vector.broadcast %cst_174 : f32 to vector<2x4096xf32>
    %528 = arith.select %524, %526, %527 : vector<2x4096xi1>, vector<2x4096xf32>
    %529 = arith.addf %521, %528 : vector<2x4096xf32>
    %530 = arith.andi %480, %486 : vector<1x4096xi1>
    %cst_175 = arith.constant 0.000000e+00 : f32
    %531 = vector.shape_cast %530 : vector<1x4096xi1> to vector<1x4096xi1>
    %532 = vector.broadcast %531 : vector<1x4096xi1> to vector<2x4096xi1>
    %533 = vector.shape_cast %431 : vector<2x1xf32> to vector<2x1xf32>
    %534 = vector.broadcast %533 : vector<2x1xf32> to vector<2x4096xf32>
    %535 = vector.broadcast %cst_175 : f32 to vector<2x4096xf32>
    %536 = arith.select %532, %534, %535 : vector<2x4096xi1>, vector<2x4096xf32>
    %537 = arith.addf %529, %536 : vector<2x4096xf32>
    %538 = arith.andi %482, %484 : vector<1x4096xi1>
    %cst_176 = arith.constant 0.000000e+00 : f32
    %539 = vector.shape_cast %538 : vector<1x4096xi1> to vector<1x4096xi1>
    %540 = vector.broadcast %539 : vector<1x4096xi1> to vector<2x4096xi1>
    %541 = vector.shape_cast %432 : vector<2x1xf32> to vector<2x1xf32>
    %542 = vector.broadcast %541 : vector<2x1xf32> to vector<2x4096xf32>
    %543 = vector.broadcast %cst_176 : f32 to vector<2x4096xf32>
    %544 = arith.select %540, %542, %543 : vector<2x4096xi1>, vector<2x4096xf32>
    %545 = arith.addf %537, %544 : vector<2x4096xf32>
    %546 = arith.andi %482, %486 : vector<1x4096xi1>
    %cst_177 = arith.constant 0.000000e+00 : f32
    %547 = vector.shape_cast %546 : vector<1x4096xi1> to vector<1x4096xi1>
    %548 = vector.broadcast %547 : vector<1x4096xi1> to vector<2x4096xi1>
    %549 = vector.shape_cast %433 : vector<2x1xf32> to vector<2x1xf32>
    %550 = vector.broadcast %549 : vector<2x1xf32> to vector<2x4096xf32>
    %551 = vector.broadcast %cst_177 : f32 to vector<2x4096xf32>
    %552 = arith.select %548, %550, %551 : vector<2x4096xi1>, vector<2x4096xf32>
    %553 = arith.addf %545, %552 : vector<2x4096xf32>
    %554 = vector.broadcast %467 : vector<1x1xf32> to vector<2x1xf32>
    %555 = arith.subf %425, %554 : vector<2x1xf32>
    %556 = vector.broadcast %555 : vector<2x1xf32> to vector<2x4096xf32>
    %557 = arith.addf %556, %553 : vector<2x4096xf32>
    %558 = vector.broadcast %473 : vector<1x1xf32> to vector<2x4096xf32>
    %559 = arith.mulf %557, %558 : vector<2x4096xf32>
    %c0_178 = arith.constant 0 : index
    %c0_179 = arith.constant 0 : index
    %560 = vector.load %arg9[%c0_178, %c0_179] : memref<2x4096xf32, #tpu.memory_space<vmem>>, vector<2x4096xf32>
    tpu.vector_store %arg9[%c0_178, %c0_179], %559 {strides = array<i32>} : memref<2x4096xf32, #tpu.memory_space<vmem>>, vector<2x4096xf32>,
    return
  }
}

</mosaic_0001>

<llo_original>
// kernel: tpu_custom_call.1
$region0: #{tpu_custom_call.1}
  #allocation0 [shape = 'u32[]', space=smem, size = 0x4, offset = 0x4, fixed_abs, tag = 'smem constant byte address 0x4 - core index']
  #allocation1 [shape = 'u32[72,128]{1,0:T(1,128)}', space=vmem, size = 0x9000, scoped, tag = 'internal scratch']
  #allocation2 [shape = 'f32[16,256]{1,0:T(8,128)}', space=vmem, size = 0x4000, scoped, tag = 'scratch operand']
  #allocation3 [shape = 'f32[1]{0:T(128)S(6)}', space=smem, size = 0x200, scoped, tag = 'scoped memory for tpu_custom_call.1']
  %s0 = inlined_call_operand.vmem [shape: f32[16,32], index: 0, kind: input, shape index: {}]
  %s1 = inlined_call_operand.hbm [shape: f32[32,256], index: 1, kind: input, shape index: {}]
  %s2 = inlined_call_operand.hbm [shape: bf16[64,256], index: 2, kind: input, shape index: {}]
  %s3 = inlined_call_operand.vmem [shape: f32[1,256], index: 3, kind: input, shape index: {}]
  %s4 = inlined_call_operand.hbm [shape: bf16[64,256], index: 4, kind: input, shape index: {}]
  %s5 = inlined_call_operand.hbm [shape: bf16[64,256], index: 5, kind: input, shape index: {}]
  %s6 = inlined_call_operand.vmem [shape: f32[1,256], index: 6, kind: input, shape index: {}]
  %s7 = inlined_call_operand.vmem [shape: bf16[64,9], index: 7, kind: input, shape index: {}]
  %s8 = inlined_call_operand.<no memory space> [shape: f32[1], index: 8, kind: input, shape index: {}]
  %s9 = inlined_call_operand.hbm [shape: f32[2,4096], index: 9, kind: output, shape index: {}]
  %s10 = sld [smem:[#allocation0]]
  $region62: #{tpu_custom_call.1} parent=0
    _
  %s12 = ssub.s32 1, %s10
  %s13 = scalar_select 0, %s12, %s10
  %14 = sst [smem:[#allocation3]] %s8
  $region1: #{tpu_custom_call.1} parent=0
    #allocation4 [shape = 'u8[32768]{0}', space=vmem, size = 0x8000, scoped, tag = 'input window, operand 1, single buffered']
    #allocation5 [shape = 's32[1]{0}', space=sflag, size = 0x4, scoped, tag = 'scoped memory for tpu_custom_call.1']
    #allocation6 [shape = 's32[1]{0}', space=sflag, size = 0x4, scoped, tag = 'scoped memory for tpu_custom_call.1']
    #allocation7 [shape = 'u8[32768]{0}', space=vmem, size = 0x8000, scoped, tag = 'input window, operand 2, single buffered']
    #allocation8 [shape = 's32[1]{0}', space=sflag, size = 0x4, scoped, tag = 'scoped memory for tpu_custom_call.1']
    #allocation9 [shape = 'u8[32768]{0}', space=vmem, size = 0x8000, scoped, tag = 'input window, operand 4, single buffered']
    #allocation10 [shape = 'u8[32768]{0}', space=vmem, size = 0x8000, scoped, tag = 'input window, operand 5, single buffered']
    #allocation11 [shape = 's32[1]{0}', space=sflag, size = 0x4, scoped, tag = 'scoped memory for tpu_custom_call.1']
    #allocation12 [shape = 'u8[32768]{0}', space=vmem, size = 0x8000, scoped, tag = 'output window, operand 0, single buffered']
    %15 = vsyncpa [#allocation5], 0
    %16 = vsyncpa [#allocation8], 0
    %17 = vsyncpa [#allocation11], 0
    %18 = vsyncpa [#allocation6], 0
    // Predicated region
    $region2: #{tpu_custom_call.1} parent=1 // pred_check
      _
    $region3: #{tpu_custom_call.1} parent=1 // pred_check_branch
      %20 = sbr.rel (0) target = $region5
    $region4: #{tpu_custom_call.1} parent=1 // pred_region
      _
    $region5: #{tpu_custom_call.1} parent=1 // pred_fallthru
      _
    // Predicated region
    $region6: #{tpu_custom_call.1} parent=1 // pred_check
      _
    $region7: #{tpu_custom_call.1} parent=1 // pred_check_branch
      %22 = sbr.rel (0) target = $region9
    $region8: #{tpu_custom_call.1} parent=1 // pred_region
      %24 = vsyncadd [#allocation5], 0
      %s25 = sshll.u32 %s1, 4
      %s26 = int_to_ptr.hbm [resolvable:$true] %s25
      %s27 = sshll.u32 [#allocation4], 4
      %s28 = int_to_ptr.vmem [resolvable:$true] %s27
      %33 = dma.hbm_to_vmem [thread:$0]  %s26, 1024, %s28, [#allocation5], 256, 256, 16
    $region9: #{tpu_custom_call.1} parent=1 // pred_fallthru
      _
    // Predicated region
    $region10: #{tpu_custom_call.1} parent=1 // pred_check
      _
    $region11: #{tpu_custom_call.1} parent=1 // pred_check_branch
      %35 = sbr.rel (0) target = $region13
    $region12: #{tpu_custom_call.1} parent=1 // pred_region
      %37 = vsyncadd [#allocation8], 0
      %s38 = sshll.u32 %s2, 4
      %s39 = int_to_ptr.hbm [resolvable:$true] %s38
      %s40 = sshll.u32 [#allocation7], 4
      %s41 = int_to_ptr.vmem [resolvable:$true] %s40
      %46 = dma.hbm_to_vmem [thread:$0]  %s39, 1024, %s41, [#allocation8], 128, 128, 8
    $region13: #{tpu_custom_call.1} parent=1 // pred_fallthru
      _
    // Predicated region
    $region14: #{tpu_custom_call.1} parent=1 // pred_check
      _
    $region15: #{tpu_custom_call.1} parent=1 // pred_check_branch
      %48 = sbr.rel (0) target = $region17
    $region16: #{tpu_custom_call.1} parent=1 // pred_region
      _
    $region17: #{tpu_custom_call.1} parent=1 // pred_fallthru
      _
    // Predicated region
    $region18: #{tpu_custom_call.1} parent=1 // pred_check
      _
    $region19: #{tpu_custom_call.1} parent=1 // pred_check_branch
      %50 = sbr.rel (0) target = $region21
    $region20: #{tpu_custom_call.1} parent=1 // pred_region
      %52 = vsyncadd [#allocation8], 0
      %s53 = sshll.u32 %s4, 4
      %s54 = int_to_ptr.hbm [resolvable:$true] %s53
      %s55 = sshll.u32 [#allocation9], 4
      %s56 = int_to_ptr.vmem [resolvable:$true] %s55
      %61 = dma.hbm_to_vmem [thread:$0]  %s54, 1024, %s56, [#allocation8], 128, 128, 8
    $region21: #{tpu_custom_call.1} parent=1 // pred_fallthru
      _
    // Predicated region
    $region22: #{tpu_custom_call.1} parent=1 // pred_check
      _
    $region23: #{tpu_custom_call.1} parent=1 // pred_check_branch
      %63 = sbr.rel (0) target = $region25
    $region24: #{tpu_custom_call.1} parent=1 // pred_region
      %65 = vsyncadd [#allocation11], 0
      %s66 = sshll.u32 %s5, 4
      %s67 = int_to_ptr.hbm [resolvable:$true] %s66
      %s68 = sshll.u32 [#allocation10], 4
      %s69 = int_to_ptr.vmem [resolvable:$true] %s68
      %74 = dma.hbm_to_vmem [thread:$0]  %s67, 1024, %s69, [#allocation11], 128, 128, 8
    $region25: #{tpu_custom_call.1} parent=1 // pred_fallthru
      _
    // Predicated region
    $region26: #{tpu_custom_call.1} parent=1 // pred_check
      _
    $region27: #{tpu_custom_call.1} parent=1 // pred_check_branch
      %76 = sbr.rel (0) target = $region29
    $region28: #{tpu_custom_call.1} parent=1 // pred_region
      _
    $region29: #{tpu_custom_call.1} parent=1 // pred_fallthru
      _
    // Predicated region
    $region30: #{tpu_custom_call.1} parent=1 // pred_check
      _
    $region31: #{tpu_custom_call.1} parent=1 // pred_check_branch
      %78 = sbr.rel (0) target = $region33
    $region32: #{tpu_custom_call.1} parent=1 // pred_region
      _
    $region33: #{tpu_custom_call.1} parent=1 // pred_fallthru
      _
    // Predicated region
    $region34: #{tpu_custom_call.1} parent=1 // pred_check
      _
    $region35: #{tpu_custom_call.1} parent=1 // pred_check_branch
      %80 = sbr.rel (0) target = $region37
    $region36: #{tpu_custom_call.1} parent=1 // pred_region
      _
    $region37: #{tpu_custom_call.1} parent=1 // pred_fallthru
      _
    // Predicated region
    $region38: #{tpu_custom_call.1} parent=1 // pred_check
      _
    $region39: #{tpu_custom_call.1} parent=1 // pred_check_branch
      %82 = sbr.rel (0) target = $region41
    $region40: #{tpu_custom_call.1} parent=1 // pred_region
      %84 = dma.done [#allocation5], 1024
    $region41: #{tpu_custom_call.1} parent=1 // pred_fallthru
      _
    // Predicated region
    $region42: #{tpu_custom_call.1} parent=1 // pred_check
      _
    $region43: #{tpu_custom_call.1} parent=1 // pred_check_branch
      %86 = sbr.rel (0) target = $region45
    $region44: #{tpu_custom_call.1} parent=1 // pred_region
      %88 = dma.done [#allocation8], 1024
    $region45: #{tpu_custom_call.1} parent=1 // pred_fallthru
      _
    // Predicated region
    $region46: #{tpu_custom_call.1} parent=1 // pred_check
      _
    $region47: #{tpu_custom_call.1} parent=1 // pred_check_branch
      %90 = sbr.rel (0) target = $region49
    $region48: #{tpu_custom_call.1} parent=1 // pred_region
      %92 = dma.done [#allocation8], 1024
    $region49: #{tpu_custom_call.1} parent=1 // pred_fallthru
      _
    // Predicated region
    $region50: #{tpu_custom_call.1} parent=1 // pred_check
      _
    $region51: #{tpu_custom_call.1} parent=1 // pred_check_branch
      %94 = sbr.rel (0) target = $region53
    $region52: #{tpu_custom_call.1} parent=1 // pred_region
      %96 = dma.done [#allocation11], 1024
    $region53: #{tpu_custom_call.1} parent=1 // pred_fallthru
      _
    %v98 = vld [vmem:[%s0] sm:$0xff]
    %v99 = vld [vmem:[%s0 + $0x8] sm:$0xff]
    %v100 = vld [vmem:[#allocation4] sm:$0xff]
    %v101 = vld [vmem:[#allocation4 + $0x8] sm:$0xff]
    %v102 = vld [vmem:[#allocation4 + $0x10] sm:$0xff]
    %v103 = vld [vmem:[#allocation4 + $0x18] sm:$0xff]
    %v104 = vld [vmem:[#allocation4 + $0x20] sm:$0xff]
    %v105 = vld [vmem:[#allocation4 + $0x28] sm:$0xff]
    %v106 = vld [vmem:[#allocation4 + $0x30] sm:$0xff]
    %v107 = vld [vmem:[#allocation4 + $0x38] sm:$0xff]
    %v108 = vld [vmem:[%s3] sm:$0x3]
    %v110 = vperm.slane %v108, 0
    %v111 = vperm.slane %v108, 1
    %vm114 = vcmask 261120
    %v116 = vsel %vm114, %v98, 0
    %v119 = vsel %vm114, %v99, 0
    %121 = vmatpush.msra.mxu0 0.0
    %122 = vmatpush.msra.mxu0 0.0
    %123 = vmatpush.msra.mxu0 0.0
    %124 = vmatpush.msra.mxu0 0.0
    %125 = vmatpush.msra.mxu0 0.0
    %126 = vmatpush.msra.mxu0 0.0
    %127 = vmatpush.msra.mxu0 0.0
    %128 = vmatpush.msra.mxu0 0.0
    %129 = vmatpush.msra.mxu0 0.0
    %130 = vmatpush.msra.mxu0 0.0
    %131 = vmatpush.msra.mxu0 0.0
    %132 = vmatpush.msra.mxu0 0.0
    %133 = vmatpush.msra.mxu0 %v106
    %134 = vmatpush.msra.mxu0 %v104
    %135 = vmatpush.msra.mxu0 %v102
    %136 = vmatpush.msra.mxu0 %v100
    %137 = vmatmul.f32.gmra.mxu0 %v116
    %v138 = vpop.f32.mrf.mxu0
    %v139 = vadd.f32 %v110, %v138
    %140 = vmatmul.f32.gmra.mxu0 %v119
    %v141 = vpop.f32.mrf.mxu0
    %v142 = vadd.f32 %v110, %v141
    %143 = vdwg.mxu0
    %144 = vmatpush.msra.mxu0 0.0
    %145 = vmatpush.msra.mxu0 0.0
    %146 = vmatpush.msra.mxu0 0.0
    %147 = vmatpush.msra.mxu0 0.0
    %148 = vmatpush.msra.mxu0 0.0
    %149 = vmatpush.msra.mxu0 0.0
    %150 = vmatpush.msra.mxu0 0.0
    %151 = vmatpush.msra.mxu0 0.0
    %152 = vmatpush.msra.mxu0 0.0
    %153 = vmatpush.msra.mxu0 0.0
    %154 = vmatpush.msra.mxu0 0.0
    %155 = vmatpush.msra.mxu0 0.0
    %156 = vmatpush.msra.mxu0 %v107
    %157 = vmatpush.msra.mxu0 %v105
    %158 = vmatpush.msra.mxu0 %v103
    %159 = vmatpush.msra.mxu0 %v101
    %160 = vmatmul.f32.gmra.mxu0 %v116
    %v161 = vpop.f32.mrf.mxu0
    %v162 = vadd.f32 %v111, %v161
    %163 = vmatmul.f32.gmra.mxu0 %v119
    %v164 = vpop.f32.mrf.mxu0
    %v165 = vadd.f32 %v111, %v164
    %166 = vdwg.mxu0
    %167 = vst [vmem:[#allocation2] sm:$0xff] %v139
    %168 = vst [vmem:[#allocation2 + $0x8] sm:$0xff] %v162
    %169 = vst [vmem:[#allocation2 + $0x10] sm:$0xff] %v142
    %170 = vst [vmem:[#allocation2 + $0x18] sm:$0xff] %v165
    %v171 = vld [vmem:[#allocation2] sm:$0x3]
    %v172 = vld [vmem:[#allocation2 + $0x8] sm:$0x3]
    %v173 = vld [vmem:[#allocation7] sm:$0xff]
    %v174 = vld [vmem:[#allocation7 + $0x8] sm:$0xff]
    %v175 = vld [vmem:[#allocation7 + $0x10] sm:$0xff]
    %v176 = vld [vmem:[#allocation7 + $0x18] sm:$0xff]
    %v177 = vld [vmem:[#allocation7 + $0x20] sm:$0xff]
    %v178 = vld [vmem:[#allocation7 + $0x28] sm:$0xff]
    %v179 = vld [vmem:[#allocation7 + $0x30] sm:$0xff]
    %v180 = vld [vmem:[#allocation7 + $0x38] sm:$0xff]
    %v189 = vunpack.c.l.b16 %v173
    %v190 = vunpack.c.h.b16 %v173
    %v191 = vunpack.c.l.b16 %v174
    %v192 = vunpack.c.h.b16 %v174
    %v193 = vunpack.c.l.b16 %v175
    %v194 = vunpack.c.h.b16 %v175
    %v195 = vunpack.c.l.b16 %v176
    %v196 = vunpack.c.h.b16 %v176
    %v197 = vunpack.c.l.b16 %v177
    %v198 = vunpack.c.h.b16 %v177
    %v199 = vunpack.c.l.b16 %v178
    %v200 = vunpack.c.h.b16 %v178
    %v201 = vunpack.c.l.b16 %v179
    %v202 = vunpack.c.h.b16 %v179
    %v203 = vunpack.c.l.b16 %v180
    %v204 = vunpack.c.h.b16 %v180
    %v205 = vpack.c.b16 %v191, %v189
    %v206 = vpack.c.b16 %v192, %v190
    %v207 = vpack.c.b16 %v195, %v193
    %v208 = vpack.c.b16 %v196, %v194
    %v209 = vpack.c.b16 %v199, %v197
    %v210 = vpack.c.b16 %v200, %v198
    %v211 = vpack.c.b16 %v203, %v201
    %v212 = vpack.c.b16 %v204, %v202
    %vm221 = vcmask 523264
    %v223 = vsel %vm221, 0, 0
    %225 = vmatpush.bf16.msra.mxu0 0
    %226 = vmatpush.bf16.msra.mxu0 0
    %227 = vmatpush.bf16.msra.mxu0 0
    %228 = vmatpush.bf16.msra.mxu0 0
    %229 = vmatpush.bf16.msra.mxu0 %v211
    %230 = vmatpush.bf16.msra.mxu0 %v209
    %231 = vmatpush.bf16.msra.mxu0 %v207
    %232 = vmatpush.bf16.msra.mxu0 %v205
    %233 = vmatmul.bf16.gmra.mxu0 %v223
    %v234 = vpop.f32.mrf.mxu0
    %v235 = vadd.f32 0.0, %v234
    %v236 = vpop.f32.mrf.mxu0
    %237 = vdwg.mxu0
    %238 = vmatpush.bf16.msra.mxu0 0
    %239 = vmatpush.bf16.msra.mxu0 0
    %240 = vmatpush.bf16.msra.mxu0 0
    %241 = vmatpush.bf16.msra.mxu0 0
    %242 = vmatpush.bf16.msra.mxu0 %v212
    %243 = vmatpush.bf16.msra.mxu0 %v210
    %244 = vmatpush.bf16.msra.mxu0 %v208
    %245 = vmatpush.bf16.msra.mxu0 %v206
    %246 = vmatmul.bf16.gmra.mxu0 %v223
    %v247 = vpop.f32.mrf.mxu0
    %v248 = vadd.f32 0.0, %v247
    %v249 = vpop.f32.mrf.mxu0
    %250 = vdwg.mxu0
    %v251 = vadd.f32 %v171, %v235
    %v252 = vadd.f32 %v172, %v248
    %v253 = vxor.u32 %v251, 2147483648
    %v254 = vxor.u32 %v252, 2147483648
    %v255 = vmul.f32 %v253, 1.442695
    %v256 = vpow.pop %v255
    %v257 = vmul.f32 %v254, 1.442695
    %v258 = vpow.pop %v257
    %v259 = vadd.f32 %v256, 1.0
    %v260 = vadd.f32 %v258, 1.0
    %v261 = vrcp.pop %v259
    %v262 = vmul.f32 %v259, %v261
    %v263 = vsub.f32 1.0, %v262
    %v264 = vmul.f32 %v261, %v263
    %v265 = vadd.f32 %v261, %v264
    %vm266 = vweird.f32 %v259
    %vm267 = vweird.f32 %v261
    %vm268 = vmor %vm266, %vm267
    %v269 = vsel %vm268, %v261, %v265
    %v270 = vand.u32 2147483647, %v259
    %vm271 = vcmp.eq.f32.partialorder %v270, 8.507059e+37
    %v272 = vand.u32 %v259, 2147483648
    %v273 = vor.u32 1.1754944e-38, %v272
    %v274 = vsel %vm271, %v273, %v269
    %v275 = vmul.f32 1.0, %v274
    %v276 = vrcp.pop %v260
    %v277 = vmul.f32 %v260, %v276
    %v278 = vsub.f32 1.0, %v277
    %v279 = vmul.f32 %v276, %v278
    %v280 = vadd.f32 %v276, %v279
    %vm281 = vweird.f32 %v260
    %vm282 = vweird.f32 %v276
    %vm283 = vmor %vm281, %vm282
    %v284 = vsel %vm283, %v276, %v280
    %v285 = vand.u32 2147483647, %v260
    %vm286 = vcmp.eq.f32.partialorder %v285, 8.507059e+37
    %v287 = vand.u32 %v260, 2147483648
    %v288 = vor.u32 1.1754944e-38, %v287
    %v289 = vsel %vm286, %v288, %v284
    %v290 = vmul.f32 1.0, %v289
    %v291 = vmul.f32 %v290, 2.0
    %v292 = vsub.f32 %v291, 1.0
    %v293 = vmul.f32 %v275, 0.0
    %v294 = vmul.f32 %v275, %v292
    %296 = vrot.lane.b32.xlu0 %v294, 64
    %v297 = vpop.permute.xlu0 %296
    %v299 = vadd.f32 %v293, %v297
    %v300 = vtanh.pop %v299
    %v301 = vmul.f32 %v290, %v300
    %v302 = vpack.c.bf16 %v301, %v301
    %v303 = vld [vmem:[#allocation9] sm:$0xff]
    %v304 = vld [vmem:[#allocation9 + $0x8] sm:$0xff]
    %v305 = vld [vmem:[#allocation9 + $0x10] sm:$0xff]
    %v306 = vld [vmem:[#allocation9 + $0x18] sm:$0xff]
    %v307 = vld [vmem:[#allocation9 + $0x20] sm:$0xff]
    %v308 = vld [vmem:[#allocation9 + $0x28] sm:$0xff]
    %v309 = vld [vmem:[#allocation9 + $0x30] sm:$0xff]
    %v310 = vld [vmem:[#allocation9 + $0x38] sm:$0xff]
    %v311 = vld [vmem:[#allocation10] sm:$0xff]
    %v312 = vld [vmem:[#allocation10 + $0x8] sm:$0xff]
    %v313 = vld [vmem:[#allocation10 + $0x10] sm:$0xff]
    %v314 = vld [vmem:[#allocation10 + $0x18] sm:$0xff]
    %v315 = vld [vmem:[#allocation10 + $0x20] sm:$0xff]
    %v316 = vld [vmem:[#allocation10 + $0x28] sm:$0xff]
    %v317 = vld [vmem:[#allocation10 + $0x30] sm:$0xff]
    %v318 = vld [vmem:[#allocation10 + $0x38] sm:$0xff]
    %v327 = vunpack.c.l.b16 %v311
    %v328 = vunpack.c.h.b16 %v311
    %v329 = vunpack.c.l.b16 %v312
    %v330 = vunpack.c.h.b16 %v312
    %v331 = vunpack.c.l.b16 %v313
    %v332 = vunpack.c.h.b16 %v313
    %v333 = vunpack.c.l.b16 %v314
    %v334 = vunpack.c.h.b16 %v314
    %v335 = vunpack.c.l.b16 %v315
    %v336 = vunpack.c.h.b16 %v315
    %v337 = vunpack.c.l.b16 %v316
    %v338 = vunpack.c.h.b16 %v316
    %v339 = vunpack.c.l.b16 %v317
    %v340 = vunpack.c.h.b16 %v317
    %v341 = vunpack.c.l.b16 %v318
    %v342 = vunpack.c.h.b16 %v318
    %v343 = vpack.c.b16 %v329, %v327
    %v344 = vpack.c.b16 %v330, %v328
    %v345 = vpack.c.b16 %v333, %v331
    %v346 = vpack.c.b16 %v334, %v332
    %v347 = vpack.c.b16 %v337, %v335
    %v348 = vpack.c.b16 %v338, %v336
    %v349 = vpack.c.b16 %v341, %v339
    %v350 = vpack.c.b16 %v342, %v340
    %359 = vmatpush.bf16.msra.mxu0 0
    %360 = vmatpush.bf16.msra.mxu0 0
    %361 = vmatpush.bf16.msra.mxu0 0
    %362 = vmatpush.bf16.msra.mxu0 0
    %363 = vmatpush.bf16.msra.mxu0 %v349
    %364 = vmatpush.bf16.msra.mxu0 %v347
    %365 = vmatpush.bf16.msra.mxu0 %v345
    %366 = vmatpush.bf16.msra.mxu0 %v343
    %367 = vmatmul.bf16.gmra.mxu0 %v223
    %v368 = vpop.f32.mrf.mxu0
    %v369 = vadd.f32 0.0, %v368
    %v370 = vpop.f32.mrf.mxu0
    %371 = vdwg.mxu0
    %372 = vmatpush.bf16.msra.mxu0 0
    %373 = vmatpush.bf16.msra.mxu0 0
    %374 = vmatpush.bf16.msra.mxu0 0
    %375 = vmatpush.bf16.msra.mxu0 0
    %376 = vmatpush.bf16.msra.mxu0 %v350
    %377 = vmatpush.bf16.msra.mxu0 %v348
    %378 = vmatpush.bf16.msra.mxu0 %v346
    %379 = vmatpush.bf16.msra.mxu0 %v344
    %380 = vmatmul.bf16.gmra.mxu0 %v223
    %v381 = vpop.f32.mrf.mxu0
    %v382 = vadd.f32 0.0, %v381
    %v383 = vpop.f32.mrf.mxu0
    %384 = vdwg.mxu0
    %386 = vrot.lane.b32.xlu0 %v302, 64
    %v387 = vpop.permute.xlu0 %386
    %v396 = vunpack.c.l.b16 %v303
    %v397 = vunpack.c.h.b16 %v303
    %v398 = vunpack.c.l.b16 %v304
    %v399 = vunpack.c.h.b16 %v304
    %v400 = vunpack.c.l.b16 %v305
    %v401 = vunpack.c.h.b16 %v305
    %v402 = vunpack.c.l.b16 %v306
    %v403 = vunpack.c.h.b16 %v306
    %v404 = vunpack.c.l.b16 %v307
    %v405 = vunpack.c.h.b16 %v307
    %v406 = vunpack.c.l.b16 %v308
    %v407 = vunpack.c.h.b16 %v308
    %v408 = vunpack.c.l.b16 %v309
    %v409 = vunpack.c.h.b16 %v309
    %v410 = vunpack.c.l.b16 %v310
    %v411 = vunpack.c.h.b16 %v310
    %v412 = vpack.c.b16 %v398, %v396
    %v413 = vpack.c.b16 %v399, %v397
    %v414 = vpack.c.b16 %v402, %v400
    %v415 = vpack.c.b16 %v403, %v401
    %v416 = vpack.c.b16 %v406, %v404
    %v417 = vpack.c.b16 %v407, %v405
    %v418 = vpack.c.b16 %v410, %v408
    %v419 = vpack.c.b16 %v411, %v409
    %v429 = vsel %vm221, %v387, 0
    %431 = vmatpush.bf16.msra.mxu0 0
    %432 = vmatpush.bf16.msra.mxu0 0
    %433 = vmatpush.bf16.msra.mxu0 0
    %434 = vmatpush.bf16.msra.mxu0 0
    %435 = vmatpush.bf16.msra.mxu0 %v418
    %436 = vmatpush.bf16.msra.mxu0 %v416
    %437 = vmatpush.bf16.msra.mxu0 %v414
    %438 = vmatpush.bf16.msra.mxu0 %v412
    %439 = vmatmul.bf16.gmra.mxu0 %v429
    %v440 = vpop.f32.mrf.mxu0
    %v441 = vadd.f32 %v369, %v440
    %v442 = vpop.f32.mrf.mxu0
    %443 = vdwg.mxu0
    %444 = vmatpush.bf16.msra.mxu0 0
    %445 = vmatpush.bf16.msra.mxu0 0
    %446 = vmatpush.bf16.msra.mxu0 0
    %447 = vmatpush.bf16.msra.mxu0 0
    %448 = vmatpush.bf16.msra.mxu0 %v419
    %449 = vmatpush.bf16.msra.mxu0 %v417
    %450 = vmatpush.bf16.msra.mxu0 %v415
    %451 = vmatpush.bf16.msra.mxu0 %v413
    %452 = vmatmul.bf16.gmra.mxu0 %v429
    %v453 = vpop.f32.mrf.mxu0
    %v454 = vadd.f32 %v382, %v453
    %v455 = vpop.f32.mrf.mxu0
    %456 = vdwg.mxu0
    %v457 = vld [vmem:[%s6] sm:$0x3]
    %v459 = vperm.slane %v457, 0
    %v460 = vperm.slane %v457, 1
    %v463 = vadd.f32 %v441, %v459
    %v464 = vadd.f32 %v454, %v460
    %v465 = vxor.u32 %v463, 2147483648
    %v466 = vxor.u32 %v464, 2147483648
    %v467 = vmul.f32 %v465, 1.442695
    %v468 = vpow.pop %v467
    %v469 = vmul.f32 %v466, 1.442695
    %v470 = vpow.pop %v469
    %v471 = vadd.f32 %v468, 1.0
    %v472 = vadd.f32 %v470, 1.0
    %v473 = vrcp.pop %v471
    %v474 = vmul.f32 %v471, %v473
    %v475 = vsub.f32 1.0, %v474
    %v476 = vmul.f32 %v473, %v475
    %v477 = vadd.f32 %v473, %v476
    %vm478 = vweird.f32 %v471
    %vm479 = vweird.f32 %v473
    %vm480 = vmor %vm478, %vm479
    %v481 = vsel %vm480, %v473, %v477
    %v482 = vand.u32 2147483647, %v471
    %vm483 = vcmp.eq.f32.partialorder %v482, 8.507059e+37
    %v484 = vand.u32 %v471, 2147483648
    %v485 = vor.u32 1.1754944e-38, %v484
    %v486 = vsel %vm483, %v485, %v481
    %v487 = vmul.f32 1.0, %v486
    %v488 = vrcp.pop %v472
    %v489 = vmul.f32 %v472, %v488
    %v490 = vsub.f32 1.0, %v489
    %v491 = vmul.f32 %v488, %v490
    %v492 = vadd.f32 %v488, %v491
    %vm493 = vweird.f32 %v472
    %vm494 = vweird.f32 %v488
    %vm495 = vmor %vm493, %vm494
    %v496 = vsel %vm495, %v488, %v492
    %v497 = vand.u32 2147483647, %v472
    %vm498 = vcmp.eq.f32.partialorder %v497, 8.507059e+37
    %v499 = vand.u32 %v472, 2147483648
    %v500 = vor.u32 1.1754944e-38, %v499
    %v501 = vsel %vm498, %v500, %v496
    %v502 = vmul.f32 1.0, %v501
    %v503 = vmul.f32 %v502, 2.0
    %v504 = vsub.f32 %v503, 1.0
    %v505 = vmul.f32 %v487, 0.0
    %v506 = vmul.f32 %v487, %v504
    %508 = vrot.lane.b32.xlu0 %v506, 64
    %v509 = vpop.permute.xlu0 %508
    %v511 = vadd.f32 %v505, %v509
    %v512 = vtanh.pop %v511
    %v513 = vmul.f32 %v502, %v512
    %v514 = vld [vmem:[#allocation2] sm:$0xc]
    %v515 = vld [vmem:[#allocation2 + $0x8] sm:$0xc]
    %516 = vmatpush.bf16.msra.mxu0 0
    %517 = vmatpush.bf16.msra.mxu0 0
    %518 = vmatpush.bf16.msra.mxu0 0
    %519 = vmatpush.bf16.msra.mxu0 0
    %520 = vmatpush.bf16.msra.mxu0 %v211
    %521 = vmatpush.bf16.msra.mxu0 %v209
    %522 = vmatpush.bf16.msra.mxu0 %v207
    %523 = vmatpush.bf16.msra.mxu0 %v205
    %524 = vmatmul.bf16.gmra.mxu0 %v429
    %v525 = vpop.f32.mrf.mxu0
    %v526 = vadd.f32 0.0, %v525
    %v527 = vpop.f32.mrf.mxu0
    %528 = vdwg.mxu0
    %529 = vmatpush.bf16.msra.mxu0 0
    %530 = vmatpush.bf16.msra.mxu0 0
    %531 = vmatpush.bf16.msra.mxu0 0
    %532 = vmatpush.bf16.msra.mxu0 0
    %533 = vmatpush.bf16.msra.mxu0 %v212
    %534 = vmatpush.bf16.msra.mxu0 %v210
    %535 = vmatpush.bf16.msra.mxu0 %v208
    %536 = vmatpush.bf16.msra.mxu0 %v206
    %537 = vmatmul.bf16.gmra.mxu0 %v429
    %v538 = vpop.f32.mrf.mxu0
    %v539 = vadd.f32 0.0, %v538
    %v540 = vpop.f32.mrf.mxu0
    %541 = vdwg.mxu0
    %v544 = vrot.slane %v526, 6
    %v545 = vrot.slane %v539, 6
    %v548 = vadd.f32 %v514, %v544
    %v549 = vadd.f32 %v515, %v545
    %v550 = vxor.u32 %v548, 2147483648
    %v551 = vxor.u32 %v549, 2147483648
    %v552 = vmul.f32 %v550, 1.442695
    %v553 = vpow.pop %v552
    %v554 = vmul.f32 %v551, 1.442695
    %v555 = vpow.pop %v554
    %v556 = vadd.f32 %v553, 1.0
    %v557 = vadd.f32 %v555, 1.0
    %v558 = vrcp.pop %v556
    %v559 = vmul.f32 %v556, %v558
    %v560 = vsub.f32 1.0, %v559
    %v561 = vmul.f32 %v558, %v560
    %v562 = vadd.f32 %v558, %v561
    %vm563 = vweird.f32 %v556
    %vm564 = vweird.f32 %v558
    %vm565 = vmor %vm563, %vm564
    %v566 = vsel %vm565, %v558, %v562
    %v567 = vand.u32 2147483647, %v556
    %vm568 = vcmp.eq.f32.partialorder %v567, 8.507059e+37
    %v569 = vand.u32 %v556, 2147483648
    %v570 = vor.u32 1.1754944e-38, %v569
    %v571 = vsel %vm568, %v570, %v566
    %v572 = vmul.f32 1.0, %v571
    %v573 = vrcp.pop %v557
    %v574 = vmul.f32 %v557, %v573
    %v575 = vsub.f32 1.0, %v574
    %v576 = vmul.f32 %v573, %v575
    %v577 = vadd.f32 %v573, %v576
    %vm578 = vweird.f32 %v557
    %vm579 = vweird.f32 %v573
    %vm580 = vmor %vm578, %vm579
    %v581 = vsel %vm580, %v573, %v577
    %v582 = vand.u32 2147483647, %v557
    %vm583 = vcmp.eq.f32.partialorder %v582, 8.507059e+37
    %v584 = vand.u32 %v557, 2147483648
    %v585 = vor.u32 1.1754944e-38, %v584
    %v586 = vsel %vm583, %v585, %v581
    %v587 = vmul.f32 1.0, %v586
    %v588 = vmul.f32 %v587, 2.0
    %v589 = vsub.f32 %v588, 1.0
    %v591 = vrot.slane %v299, 6
    %v593 = vmul.f32 %v572, %v591
    %v594 = vmul.f32 %v572, %v589
    %596 = vrot.lane.b32.xlu0 %v594, 64
    %v597 = vpop.permute.xlu0 %596
    %v599 = vadd.f32 %v593, %v597
    %v600 = vtanh.pop %v599
    %v601 = vmul.f32 %v587, %v600
    %v602 = vpack.c.bf16 %v601, %v601
    %v603 = vpack.c.bf16 %v513, %v513
    %605 = vrot.lane.b32.xlu0 %v603, 64
    %v606 = vpop.permute.xlu0 %605
    %v608 = vsel %vm221, %v606, 0
    %610 = vmatpush.bf16.msra.mxu0 0
    %611 = vmatpush.bf16.msra.mxu0 0
    %612 = vmatpush.bf16.msra.mxu0 0
    %613 = vmatpush.bf16.msra.mxu0 0
    %614 = vmatpush.bf16.msra.mxu0 %v349
    %615 = vmatpush.bf16.msra.mxu0 %v347
    %616 = vmatpush.bf16.msra.mxu0 %v345
    %617 = vmatpush.bf16.msra.mxu0 %v343
    %618 = vmatmul.bf16.gmra.mxu0 %v608
    %v619 = vpop.f32.mrf.mxu0
    %v620 = vadd.f32 0.0, %v619
    %v621 = vpop.f32.mrf.mxu0
    %622 = vdwg.mxu0
    %623 = vmatpush.bf16.msra.mxu0 0
    %624 = vmatpush.bf16.msra.mxu0 0
    %625 = vmatpush.bf16.msra.mxu0 0
    %626 = vmatpush.bf16.msra.mxu0 0
    %627 = vmatpush.bf16.msra.mxu0 %v350
    %628 = vmatpush.bf16.msra.mxu0 %v348
    %629 = vmatpush.bf16.msra.mxu0 %v346
    %630 = vmatpush.bf16.msra.mxu0 %v344
    %631 = vmatmul.bf16.gmra.mxu0 %v608
    %v632 = vpop.f32.mrf.mxu0
    %v633 = vadd.f32 0.0, %v632
    %v634 = vpop.f32.mrf.mxu0
    %635 = vdwg.mxu0
    %v637 = vrot.slane %v602, 1
    %638 = vrot.lane.b32.xlu0 %v637, 64
    %v639 = vpop.permute.xlu0 %638
    %v641 = vsel %vm221, %v639, 0
    %643 = vmatpush.bf16.msra.mxu0 0
    %644 = vmatpush.bf16.msra.mxu0 0
    %645 = vmatpush.bf16.msra.mxu0 0
    %646 = vmatpush.bf16.msra.mxu0 0
    %647 = vmatpush.bf16.msra.mxu0 %v418
    %648 = vmatpush.bf16.msra.mxu0 %v416
    %649 = vmatpush.bf16.msra.mxu0 %v414
    %650 = vmatpush.bf16.msra.mxu0 %v412
    %651 = vmatmul.bf16.gmra.mxu0 %v641
    %v652 = vpop.f32.mrf.mxu0
    %v653 = vadd.f32 %v620, %v652
    %v654 = vpop.f32.mrf.mxu0
    %655 = vdwg.mxu0
    %656 = vmatpush.bf16.msra.mxu0 0
    %657 = vmatpush.bf16.msra.mxu0 0
    %658 = vmatpush.bf16.msra.mxu0 0
    %659 = vmatpush.bf16.msra.mxu0 0
    %660 = vmatpush.bf16.msra.mxu0 %v419
    %661 = vmatpush.bf16.msra.mxu0 %v417
    %662 = vmatpush.bf16.msra.mxu0 %v415
    %663 = vmatpush.bf16.msra.mxu0 %v413
    %664 = vmatmul.bf16.gmra.mxu0 %v641
    %v665 = vpop.f32.mrf.mxu0
    %v666 = vadd.f32 %v633, %v665
    %v667 = vpop.f32.mrf.mxu0
    %668 = vdwg.mxu0
    %v669 = vadd.f32 %v653, %v459
    %v670 = vadd.f32 %v666, %v460
    %v671 = vxor.u32 %v669, 2147483648
    %v672 = vxor.u32 %v670, 2147483648
    %v673 = vmul.f32 %v671, 1.442695
    %v674 = vpow.pop %v673
    %v675 = vmul.f32 %v672, 1.442695
    %v676 = vpow.pop %v675
    %v677 = vadd.f32 %v674, 1.0
    %v678 = vadd.f32 %v676, 1.0
    %v679 = vrcp.pop %v677
    %v680 = vmul.f32 %v677, %v679
    %v681 = vsub.f32 1.0, %v680
    %v682 = vmul.f32 %v679, %v681
    %v683 = vadd.f32 %v679, %v682
    %vm684 = vweird.f32 %v677
    %vm685 = vweird.f32 %v679
    %vm686 = vmor %vm684, %vm685
    %v687 = vsel %vm686, %v679, %v683
    %v688 = vand.u32 2147483647, %v677
    %vm689 = vcmp.eq.f32.partialorder %v688, 8.507059e+37
    %v690 = vand.u32 %v677, 2147483648
    %v691 = vor.u32 1.1754944e-38, %v690
    %v692 = vsel %vm689, %v691, %v687
    %v693 = vmul.f32 1.0, %v692
    %v694 = vrcp.pop %v678
    %v695 = vmul.f32 %v678, %v694
    %v696 = vsub.f32 1.0, %v695
    %v697 = vmul.f32 %v694, %v696
    %v698 = vadd.f32 %v694, %v697
    %vm699 = vweird.f32 %v678
    %vm700 = vweird.f32 %v694
    %vm701 = vmor %vm699, %vm700
    %v702 = vsel %vm701, %v694, %v698
    %v703 = vand.u32 2147483647, %v678
    %vm704 = vcmp.eq.f32.partialorder %v703, 8.507059e+37
    %v705 = vand.u32 %v678, 2147483648
    %v706 = vor.u32 1.1754944e-38, %v705
    %v707 = vsel %vm704, %v706, %v702
    %v708 = vmul.f32 1.0, %v707
    %v709 = vmul.f32 %v708, 2.0
    %v710 = vsub.f32 %v709, 1.0
    %v711 = vmul.f32 %v693, %v511
    %v712 = vmul.f32 %v693, %v710
    %714 = vrot.lane.b32.xlu0 %v712, 64
    %v715 = vpop.permute.xlu0 %714
    %v717 = vadd.f32 %v711, %v715
    %v718 = vtanh.pop %v717
    %v719 = vmul.f32 %v708, %v718
    %v720 = vld [vmem:[#allocation2] sm:$0x30]
    %v721 = vld [vmem:[#allocation2 + $0x8] sm:$0x30]
    %722 = vmatpush.bf16.msra.mxu0 0
    %723 = vmatpush.bf16.msra.mxu0 0
    %724 = vmatpush.bf16.msra.mxu0 0
    %725 = vmatpush.bf16.msra.mxu0 0
    %726 = vmatpush.bf16.msra.mxu0 %v211
    %727 = vmatpush.bf16.msra.mxu0 %v209
    %728 = vmatpush.bf16.msra.mxu0 %v207
    %729 = vmatpush.bf16.msra.mxu0 %v205
    %730 = vmatmul.bf16.gmra.mxu0 %v641
    %v731 = vpop.f32.mrf.mxu0
    %v732 = vadd.f32 0.0, %v731
    %v733 = vpop.f32.mrf.mxu0
    %734 = vdwg.mxu0
    %735 = vmatpush.bf16.msra.mxu0 0
    %736 = vmatpush.bf16.msra.mxu0 0
    %737 = vmatpush.bf16.msra.mxu0 0
    %738 = vmatpush.bf16.msra.mxu0 0
    %739 = vmatpush.bf16.msra.mxu0 %v212
    %740 = vmatpush.bf16.msra.mxu0 %v210
    %741 = vmatpush.bf16.msra.mxu0 %v208
    %742 = vmatpush.bf16.msra.mxu0 %v206
    %743 = vmatmul.bf16.gmra.mxu0 %v641
    %v744 = vpop.f32.mrf.mxu0
    %v745 = vadd.f32 0.0, %v744
    %v746 = vpop.f32.mrf.mxu0
    %747 = vdwg.mxu0
    %v750 = vrot.slane %v732, 4
    %v751 = vrot.slane %v745, 4
    %v754 = vadd.f32 %v720, %v750
    %v755 = vadd.f32 %v721, %v751
    %v756 = vxor.u32 %v754, 2147483648
    %v757 = vxor.u32 %v755, 2147483648
    %v758 = vmul.f32 %v756, 1.442695
    %v759 = vpow.pop %v758
    %v760 = vmul.f32 %v757, 1.442695
    %v761 = vpow.pop %v760
    %v762 = vadd.f32 %v759, 1.0
    %v763 = vadd.f32 %v761, 1.0
    %v764 = vrcp.pop %v762
    %v765 = vmul.f32 %v762, %v764
    %v766 = vsub.f32 1.0, %v765
    %v767 = vmul.f32 %v764, %v766
    %v768 = vadd.f32 %v764, %v767
    %vm769 = vweird.f32 %v762
    %vm770 = vweird.f32 %v764
    %vm771 = vmor %vm769, %vm770
    %v772 = vsel %vm771, %v764, %v768
    %v773 = vand.u32 2147483647, %v762
    %vm774 = vcmp.eq.f32.partialorder %v773, 8.507059e+37
    %v775 = vand.u32 %v762, 2147483648
    %v776 = vor.u32 1.1754944e-38, %v775
    %v777 = vsel %vm774, %v776, %v772
    %v778 = vmul.f32 1.0, %v777
    %v779 = vrcp.pop %v763
    %v780 = vmul.f32 %v763, %v779
    %v781 = vsub.f32 1.0, %v780
    %v782 = vmul.f32 %v779, %v781
    %v783 = vadd.f32 %v779, %v782
    %vm784 = vweird.f32 %v763
    %vm785 = vweird.f32 %v779
    %vm786 = vmor %vm784, %vm785
    %v787 = vsel %vm786, %v779, %v783
    %v788 = vand.u32 2147483647, %v763
    %vm789 = vcmp.eq.f32.partialorder %v788, 8.507059e+37
    %v790 = vand.u32 %v763, 2147483648
    %v791 = vor.u32 1.1754944e-38, %v790
    %v792 = vsel %vm789, %v791, %v787
    %v793 = vmul.f32 1.0, %v792
    %v794 = vmul.f32 %v793, 2.0
    %v795 = vsub.f32 %v794, 1.0
    %v797 = vrot.slane %v599, 6
    %v799 = vmul.f32 %v778, %v797
    %v800 = vmul.f32 %v778, %v795
    %802 = vrot.lane.b32.xlu0 %v800, 64
    %v803 = vpop.permute.xlu0 %802
    %v805 = vadd.f32 %v799, %v803
    %v806 = vtanh.pop %v805
    %v807 = vmul.f32 %v793, %v806
    %v808 = vpack.c.bf16 %v807, %v807
    %v809 = vpack.c.bf16 %v719, %v719
    %811 = vrot.lane.b32.xlu0 %v809, 64
    %v812 = vpop.permute.xlu0 %811
    %v814 = vsel %vm221, %v812, 0
    %816 = vmatpush.bf16.msra.mxu0 0
    %817 = vmatpush.bf16.msra.mxu0 0
    %818 = vmatpush.bf16.msra.mxu0 0
    %819 = vmatpush.bf16.msra.mxu0 0
    %820 = vmatpush.bf16.msra.mxu0 %v349
    %821 = vmatpush.bf16.msra.mxu0 %v347
    %822 = vmatpush.bf16.msra.mxu0 %v345
    %823 = vmatpush.bf16.msra.mxu0 %v343
    %824 = vmatmul.bf16.gmra.mxu0 %v814
    %v825 = vpop.f32.mrf.mxu0
    %v826 = vadd.f32 0.0, %v825
    %v827 = vpop.f32.mrf.mxu0
    %828 = vdwg.mxu0
    %829 = vmatpush.bf16.msra.mxu0 0
    %830 = vmatpush.bf16.msra.mxu0 0
    %831 = vmatpush.bf16.msra.mxu0 0
    %832 = vmatpush.bf16.msra.mxu0 0
    %833 = vmatpush.bf16.msra.mxu0 %v350
    %834 = vmatpush.bf16.msra.mxu0 %v348
    %835 = vmatpush.bf16.msra.mxu0 %v346
    %836 = vmatpush.bf16.msra.mxu0 %v344
    %837 = vmatmul.bf16.gmra.mxu0 %v814
    %v838 = vpop.f32.mrf.mxu0
    %v839 = vadd.f32 0.0, %v838
    %v840 = vpop.f32.mrf.mxu0
    %841 = vdwg.mxu0
    %v843 = vrot.slane %v808, 2
    %844 = vrot.lane.b32.xlu0 %v843, 64
    %v845 = vpop.permute.xlu0 %844
    %v847 = vsel %vm221, %v845, 0
    %849 = vmatpush.bf16.msra.mxu0 0
    %850 = vmatpush.bf16.msra.mxu0 0
    %851 = vmatpush.bf16.msra.mxu0 0
    %852 = vmatpush.bf16.msra.mxu0 0
    %853 = vmatpush.bf16.msra.mxu0 %v418
    %854 = vmatpush.bf16.msra.mxu0 %v416
    %855 = vmatpush.bf16.msra.mxu0 %v414
    %856 = vmatpush.bf16.msra.mxu0 %v412
    %857 = vmatmul.bf16.gmra.mxu0 %v847
    %v858 = vpop.f32.mrf.mxu0
    %v859 = vadd.f32 %v826, %v858
    %v860 = vpop.f32.mrf.mxu0
    %861 = vdwg.mxu0
    %862 = vmatpush.bf16.msra.mxu0 0
    %863 = vmatpush.bf16.msra.mxu0 0
    %864 = vmatpush.bf16.msra.mxu0 0
    %865 = vmatpush.bf16.msra.mxu0 0
    %866 = vmatpush.bf16.msra.mxu0 %v419
    %867 = vmatpush.bf16.msra.mxu0 %v417
    %868 = vmatpush.bf16.msra.mxu0 %v415
    %869 = vmatpush.bf16.msra.mxu0 %v413
    %870 = vmatmul.bf16.gmra.mxu0 %v847
    %v871 = vpop.f32.mrf.mxu0
    %v872 = vadd.f32 %v839, %v871
    %v873 = vpop.f32.mrf.mxu0
    %874 = vdwg.mxu0
    %v875 = vadd.f32 %v859, %v459
    %v876 = vadd.f32 %v872, %v460
    %v877 = vxor.u32 %v875, 2147483648
    %v878 = vxor.u32 %v876, 2147483648
    %v879 = vmul.f32 %v877, 1.442695
    %v880 = vpow.pop %v879
    %v881 = vmul.f32 %v878, 1.442695
    %v882 = vpow.pop %v881
    %v883 = vadd.f32 %v880, 1.0
    %v884 = vadd.f32 %v882, 1.0
    %v885 = vrcp.pop %v883
    %v886 = vmul.f32 %v883, %v885
    %v887 = vsub.f32 1.0, %v886
    %v888 = vmul.f32 %v885, %v887
    %v889 = vadd.f32 %v885, %v888
    %vm890 = vweird.f32 %v883
    %vm891 = vweird.f32 %v885
    %vm892 = vmor %vm890, %vm891
    %v893 = vsel %vm892, %v885, %v889
    %v894 = vand.u32 2147483647, %v883
    %vm895 = vcmp.eq.f32.partialorder %v894, 8.507059e+37
    %v896 = vand.u32 %v883, 2147483648
    %v897 = vor.u32 1.1754944e-38, %v896
    %v898 = vsel %vm895, %v897, %v893
    %v899 = vmul.f32 1.0, %v898
    %v900 = vrcp.pop %v884
    %v901 = vmul.f32 %v884, %v900
    %v902 = vsub.f32 1.0, %v901
    %v903 = vmul.f32 %v900, %v902
    %v904 = vadd.f32 %v900, %v903
    %vm905 = vweird.f32 %v884
    %vm906 = vweird.f32 %v900
    %vm907 = vmor %vm905, %vm906
    %v908 = vsel %vm907, %v900, %v904
    %v909 = vand.u32 2147483647, %v884
    %vm910 = vcmp.eq.f32.partialorder %v909, 8.507059e+37
    %v911 = vand.u32 %v884, 2147483648
    %v912 = vor.u32 1.1754944e-38, %v911
    %v913 = vsel %vm910, %v912, %v908
    %v914 = vmul.f32 1.0, %v913
    %v915 = vmul.f32 %v914, 2.0
    %v916 = vsub.f32 %v915, 1.0
    %v917 = vmul.f32 %v899, %v717
    %v918 = vmul.f32 %v899, %v916
    %920 = vrot.lane.b32.xlu0 %v918, 64
    %v921 = vpop.permute.xlu0 %920
    %v923 = vadd.f32 %v917, %v921
    %v924 = vtanh.pop %v923
    %v925 = vmul.f32 %v914, %v924
    %v926 = vld [vmem:[#allocation2] sm:$0xc0]
    %v927 = vld [vmem:[#allocation2 + $0x8] sm:$0xc0]
    %928 = vmatpush.bf16.msra.mxu0 0
    %929 = vmatpush.bf16.msra.mxu0 0
    %930 = vmatpush.bf16.msra.mxu0 0
    %931 = vmatpush.bf16.msra.mxu0 0
    %932 = vmatpush.bf16.msra.mxu0 %v211
    %933 = vmatpush.bf16.msra.mxu0 %v209
    %934 = vmatpush.bf16.msra.mxu0 %v207
    %935 = vmatpush.bf16.msra.mxu0 %v205
    %936 = vmatmul.bf16.gmra.mxu0 %v847
    %v937 = vpop.f32.mrf.mxu0
    %v938 = vadd.f32 0.0, %v937
    %v939 = vpop.f32.mrf.mxu0
    %940 = vdwg.mxu0
    %941 = vmatpush.bf16.msra.mxu0 0
    %942 = vmatpush.bf16.msra.mxu0 0
    %943 = vmatpush.bf16.msra.mxu0 0
    %944 = vmatpush.bf16.msra.mxu0 0
    %945 = vmatpush.bf16.msra.mxu0 %v212
    %946 = vmatpush.bf16.msra.mxu0 %v210
    %947 = vmatpush.bf16.msra.mxu0 %v208
    %948 = vmatpush.bf16.msra.mxu0 %v206
    %949 = vmatmul.bf16.gmra.mxu0 %v847
    %v950 = vpop.f32.mrf.mxu0
    %v951 = vadd.f32 0.0, %v950
    %v952 = vpop.f32.mrf.mxu0
    %953 = vdwg.mxu0
    %v956 = vrot.slane %v938, 2
    %v957 = vrot.slane %v951, 2
    %v960 = vadd.f32 %v926, %v956
    %v961 = vadd.f32 %v927, %v957
    %v962 = vxor.u32 %v960, 2147483648
    %v963 = vxor.u32 %v961, 2147483648
    %v964 = vmul.f32 %v962, 1.442695
    %v965 = vpow.pop %v964
    %v966 = vmul.f32 %v963, 1.442695
    %v967 = vpow.pop %v966
    %v968 = vadd.f32 %v965, 1.0
    %v969 = vadd.f32 %v967, 1.0
    %v970 = vrcp.pop %v968
    %v971 = vmul.f32 %v968, %v970
    %v972 = vsub.f32 1.0, %v971
    %v973 = vmul.f32 %v970, %v972
    %v974 = vadd.f32 %v970, %v973
    %vm975 = vweird.f32 %v968
    %vm976 = vweird.f32 %v970
    %vm977 = vmor %vm975, %vm976
    %v978 = vsel %vm977, %v970, %v974
    %v979 = vand.u32 2147483647, %v968
    %vm980 = vcmp.eq.f32.partialorder %v979, 8.507059e+37
    %v981 = vand.u32 %v968, 2147483648
    %v982 = vor.u32 1.1754944e-38, %v981
    %v983 = vsel %vm980, %v982, %v978
    %v984 = vmul.f32 1.0, %v983
    %v985 = vrcp.pop %v969
    %v986 = vmul.f32 %v969, %v985
    %v987 = vsub.f32 1.0, %v986
    %v988 = vmul.f32 %v985, %v987
    %v989 = vadd.f32 %v985, %v988
    %vm990 = vweird.f32 %v969
    %vm991 = vweird.f32 %v985
    %vm992 = vmor %vm990, %vm991
    %v993 = vsel %vm992, %v985, %v989
    %v994 = vand.u32 2147483647, %v969
    %vm995 = vcmp.eq.f32.partialorder %v994, 8.507059e+37
    %v996 = vand.u32 %v969, 2147483648
    %v997 = vor.u32 1.1754944e-38, %v996
    %v998 = vsel %vm995, %v997, %v993
    %v999 = vmul.f32 1.0, %v998
    %v1000 = vmul.f32 %v999, 2.0
    %v1001 = vsub.f32 %v1000, 1.0
    %v1003 = vrot.slane %v805, 6
    %v1005 = vmul.f32 %v984, %v1003
    %v1006 = vmul.f32 %v984, %v1001
    %1008 = vrot.lane.b32.xlu0 %v1006, 64
    %v1009 = vpop.permute.xlu0 %1008
    %v1011 = vadd.f32 %v1005, %v1009
    %v1012 = vtanh.pop %v1011
    %v1013 = vmul.f32 %v999, %v1012
    %v1014 = vpack.c.bf16 %v1013, %v1013
    %v1015 = vpack.c.bf16 %v925, %v925
    %1017 = vrot.lane.b32.xlu0 %v1015, 64
    %v1018 = vpop.permute.xlu0 %1017
    %v1020 = vsel %vm221, %v1018, 0
    %1022 = vmatpush.bf16.msra.mxu0 0
    %1023 = vmatpush.bf16.msra.mxu0 0
    %1024 = vmatpush.bf16.msra.mxu0 0
    %1025 = vmatpush.bf16.msra.mxu0 0
    %1026 = vmatpush.bf16.msra.mxu0 %v349
    %1027 = vmatpush.bf16.msra.mxu0 %v347
    %1028 = vmatpush.bf16.msra.mxu0 %v345
    %1029 = vmatpush.bf16.msra.mxu0 %v343
    %1030 = vmatmul.bf16.gmra.mxu0 %v1020
    %v1031 = vpop.f32.mrf.mxu0
    %v1032 = vadd.f32 0.0, %v1031
    %v1033 = vpop.f32.mrf.mxu0
    %1034 = vdwg.mxu0
    %1035 = vmatpush.bf16.msra.mxu0 0
    %1036 = vmatpush.bf16.msra.mxu0 0
    %1037 = vmatpush.bf16.msra.mxu0 0
    %1038 = vmatpush.bf16.msra.mxu0 0
    %1039 = vmatpush.bf16.msra.mxu0 %v350
    %1040 = vmatpush.bf16.msra.mxu0 %v348
    %1041 = vmatpush.bf16.msra.mxu0 %v346
    %1042 = vmatpush.bf16.msra.mxu0 %v344
    %1043 = vmatmul.bf16.gmra.mxu0 %v1020
    %v1044 = vpop.f32.mrf.mxu0
    %v1045 = vadd.f32 0.0, %v1044
    %v1046 = vpop.f32.mrf.mxu0
    %1047 = vdwg.mxu0
    %v1049 = vrot.slane %v1014, 3
    %1050 = vrot.lane.b32.xlu0 %v1049, 64
    %v1051 = vpop.permute.xlu0 %1050
    %v1053 = vsel %vm221, %v1051, 0
    %1055 = vmatpush.bf16.msra.mxu0 0
    %1056 = vmatpush.bf16.msra.mxu0 0
    %1057 = vmatpush.bf16.msra.mxu0 0
    %1058 = vmatpush.bf16.msra.mxu0 0
    %1059 = vmatpush.bf16.msra.mxu0 %v418
    %1060 = vmatpush.bf16.msra.mxu0 %v416
    %1061 = vmatpush.bf16.msra.mxu0 %v414
    %1062 = vmatpush.bf16.msra.mxu0 %v412
    %1063 = vmatmul.bf16.gmra.mxu0 %v1053
    %v1064 = vpop.f32.mrf.mxu0
    %v1065 = vadd.f32 %v1032, %v1064
    %v1066 = vpop.f32.mrf.mxu0
    %1067 = vdwg.mxu0
    %1068 = vmatpush.bf16.msra.mxu0 0
    %1069 = vmatpush.bf16.msra.mxu0 0
    %1070 = vmatpush.bf16.msra.mxu0 0
    %1071 = vmatpush.bf16.msra.mxu0 0
    %1072 = vmatpush.bf16.msra.mxu0 %v419
    %1073 = vmatpush.bf16.msra.mxu0 %v417
    %1074 = vmatpush.bf16.msra.mxu0 %v415
    %1075 = vmatpush.bf16.msra.mxu0 %v413
    %1076 = vmatmul.bf16.gmra.mxu0 %v1053
    %v1077 = vpop.f32.mrf.mxu0
    %v1078 = vadd.f32 %v1045, %v1077
    %v1079 = vpop.f32.mrf.mxu0
    %1080 = vdwg.mxu0
    %v1081 = vadd.f32 %v1065, %v459
    %v1082 = vadd.f32 %v1078, %v460
    %v1083 = vxor.u32 %v1081, 2147483648
    %v1084 = vxor.u32 %v1082, 2147483648
    %v1085 = vmul.f32 %v1083, 1.442695
    %v1086 = vpow.pop %v1085
    %v1087 = vmul.f32 %v1084, 1.442695
    %v1088 = vpow.pop %v1087
    %v1089 = vadd.f32 %v1086, 1.0
    %v1090 = vadd.f32 %v1088, 1.0
    %v1091 = vrcp.pop %v1089
    %v1092 = vmul.f32 %v1089, %v1091
    %v1093 = vsub.f32 1.0, %v1092
    %v1094 = vmul.f32 %v1091, %v1093
    %v1095 = vadd.f32 %v1091, %v1094
    %vm1096 = vweird.f32 %v1089
    %vm1097 = vweird.f32 %v1091
    %vm1098 = vmor %vm1096, %vm1097
    %v1099 = vsel %vm1098, %v1091, %v1095
    %v1100 = vand.u32 2147483647, %v1089
    %vm1101 = vcmp.eq.f32.partialorder %v1100, 8.507059e+37
    %v1102 = vand.u32 %v1089, 2147483648
    %v1103 = vor.u32 1.1754944e-38, %v1102
    %v1104 = vsel %vm1101, %v1103, %v1099
    %v1105 = vmul.f32 1.0, %v1104
    %v1106 = vrcp.pop %v1090
    %v1107 = vmul.f32 %v1090, %v1106
    %v1108 = vsub.f32 1.0, %v1107
    %v1109 = vmul.f32 %v1106, %v1108
    %v1110 = vadd.f32 %v1106, %v1109
    %vm1111 = vweird.f32 %v1090
    %vm1112 = vweird.f32 %v1106
    %vm1113 = vmor %vm1111, %vm1112
    %v1114 = vsel %vm1113, %v1106, %v1110
    %v1115 = vand.u32 2147483647, %v1090
    %vm1116 = vcmp.eq.f32.partialorder %v1115, 8.507059e+37
    %v1117 = vand.u32 %v1090, 2147483648
    %v1118 = vor.u32 1.1754944e-38, %v1117
    %v1119 = vsel %vm1116, %v1118, %v1114
    %v1120 = vmul.f32 1.0, %v1119
    %v1121 = vmul.f32 %v1120, 2.0
    %v1122 = vsub.f32 %v1121, 1.0
    %v1123 = vmul.f32 %v1105, %v923
    %v1124 = vmul.f32 %v1105, %v1122
    %1126 = vrot.lane.b32.xlu0 %v1124, 64
    %v1127 = vpop.permute.xlu0 %1126
    %v1129 = vadd.f32 %v1123, %v1127
    %v1130 = vtanh.pop %v1129
    %v1131 = vmul.f32 %v1120, %v1130
    %v1132 = vld [vmem:[#allocation2 + $0x10] sm:$0x3]
    %v1133 = vld [vmem:[#allocation2 + $0x18] sm:$0x3]
    %1134 = vmatpush.bf16.msra.mxu0 0
    %1135 = vmatpush.bf16.msra.mxu0 0
    %1136 = vmatpush.bf16.msra.mxu0 0
    %1137 = vmatpush.bf16.msra.mxu0 0
    %1138 = vmatpush.bf16.msra.mxu0 %v211
    %1139 = vmatpush.bf16.msra.mxu0 %v209
    %1140 = vmatpush.bf16.msra.mxu0 %v207
    %1141 = vmatpush.bf16.msra.mxu0 %v205
    %1142 = vmatmul.bf16.gmra.mxu0 %v1053
    %v1143 = vpop.f32.mrf.mxu0
    %v1144 = vadd.f32 0.0, %v1143
    %v1145 = vpop.f32.mrf.mxu0
    %1146 = vdwg.mxu0
    %1147 = vmatpush.bf16.msra.mxu0 0
    %1148 = vmatpush.bf16.msra.mxu0 0
    %1149 = vmatpush.bf16.msra.mxu0 0
    %1150 = vmatpush.bf16.msra.mxu0 0
    %1151 = vmatpush.bf16.msra.mxu0 %v212
    %1152 = vmatpush.bf16.msra.mxu0 %v210
    %1153 = vmatpush.bf16.msra.mxu0 %v208
    %1154 = vmatpush.bf16.msra.mxu0 %v206
    %1155 = vmatmul.bf16.gmra.mxu0 %v1053
    %v1156 = vpop.f32.mrf.mxu0
    %v1157 = vadd.f32 0.0, %v1156
    %v1158 = vpop.f32.mrf.mxu0
    %1159 = vdwg.mxu0
    %v1160 = vadd.f32 %v1132, %v1144
    %v1161 = vadd.f32 %v1133, %v1157
    %v1162 = vxor.u32 %v1160, 2147483648
    %v1163 = vxor.u32 %v1161, 2147483648
    %v1164 = vmul.f32 %v1162, 1.442695
    %v1165 = vpow.pop %v1164
    %v1166 = vmul.f32 %v1163, 1.442695
    %v1167 = vpow.pop %v1166
    %v1168 = vadd.f32 %v1165, 1.0
    %v1169 = vadd.f32 %v1167, 1.0
    %v1170 = vrcp.pop %v1168
    %v1171 = vmul.f32 %v1168, %v1170
    %v1172 = vsub.f32 1.0, %v1171
    %v1173 = vmul.f32 %v1170, %v1172
    %v1174 = vadd.f32 %v1170, %v1173
    %vm1175 = vweird.f32 %v1168
    %vm1176 = vweird.f32 %v1170
    %vm1177 = vmor %vm1175, %vm1176
    %v1178 = vsel %vm1177, %v1170, %v1174
    %v1179 = vand.u32 2147483647, %v1168
    %vm1180 = vcmp.eq.f32.partialorder %v1179, 8.507059e+37
    %v1181 = vand.u32 %v1168, 2147483648
    %v1182 = vor.u32 1.1754944e-38, %v1181
    %v1183 = vsel %vm1180, %v1182, %v1178
    %v1184 = vmul.f32 1.0, %v1183
    %v1185 = vrcp.pop %v1169
    %v1186 = vmul.f32 %v1169, %v1185
    %v1187 = vsub.f32 1.0, %v1186
    %v1188 = vmul.f32 %v1185, %v1187
    %v1189 = vadd.f32 %v1185, %v1188
    %vm1190 = vweird.f32 %v1169
    %vm1191 = vweird.f32 %v1185
    %vm1192 = vmor %vm1190, %vm1191
    %v1193 = vsel %vm1192, %v1185, %v1189
    %v1194 = vand.u32 2147483647, %v1169
    %vm1195 = vcmp.eq.f32.partialorder %v1194, 8.507059e+37
    %v1196 = vand.u32 %v1169, 2147483648
    %v1197 = vor.u32 1.1754944e-38, %v1196
    %v1198 = vsel %vm1195, %v1197, %v1193
    %v1199 = vmul.f32 1.0, %v1198
    %v1200 = vmul.f32 %v1199, 2.0
    %v1201 = vsub.f32 %v1200, 1.0
    %v1203 = vrot.slane %v1011, 6
    %v1205 = vmul.f32 %v1184, %v1203
    %v1206 = vmul.f32 %v1184, %v1201
    %1208 = vrot.lane.b32.xlu0 %v1206, 64
    %v1209 = vpop.permute.xlu0 %1208
    %v1211 = vadd.f32 %v1205, %v1209
    %v1212 = vtanh.pop %v1211
    %v1213 = vmul.f32 %v1199, %v1212
    %v1214 = vpack.c.bf16 %v1213, %v1213
    %v1215 = vpack.c.bf16 %v1131, %v1131
    %1217 = vrot.lane.b32.xlu0 %v1215, 64
    %v1218 = vpop.permute.xlu0 %1217
    %v1220 = vsel %vm221, %v1218, 0
    %1222 = vmatpush.bf16.msra.mxu0 0
    %1223 = vmatpush.bf16.msra.mxu0 0
    %1224 = vmatpush.bf16.msra.mxu0 0
    %1225 = vmatpush.bf16.msra.mxu0 0
    %1226 = vmatpush.bf16.msra.mxu0 %v349
    %1227 = vmatpush.bf16.msra.mxu0 %v347
    %1228 = vmatpush.bf16.msra.mxu0 %v345
    %1229 = vmatpush.bf16.msra.mxu0 %v343
    %1230 = vmatmul.bf16.gmra.mxu0 %v1220
    %v1231 = vpop.f32.mrf.mxu0
    %v1232 = vadd.f32 0.0, %v1231
    %v1233 = vpop.f32.mrf.mxu0
    %1234 = vdwg.mxu0
    %1235 = vmatpush.bf16.msra.mxu0 0
    %1236 = vmatpush.bf16.msra.mxu0 0
    %1237 = vmatpush.bf16.msra.mxu0 0
    %1238 = vmatpush.bf16.msra.mxu0 0
    %1239 = vmatpush.bf16.msra.mxu0 %v350
    %1240 = vmatpush.bf16.msra.mxu0 %v348
    %1241 = vmatpush.bf16.msra.mxu0 %v346
    %1242 = vmatpush.bf16.msra.mxu0 %v344
    %1243 = vmatmul.bf16.gmra.mxu0 %v1220
    %v1244 = vpop.f32.mrf.mxu0
    %v1245 = vadd.f32 0.0, %v1244
    %v1246 = vpop.f32.mrf.mxu0
    %1247 = vdwg.mxu0
    %1249 = vrot.lane.b32.xlu0 %v1214, 64
    %v1250 = vpop.permute.xlu0 %1249
    %v1252 = vsel %vm221, %v1250, 0
    %1254 = vmatpush.bf16.msra.mxu0 0
    %1255 = vmatpush.bf16.msra.mxu0 0
    %1256 = vmatpush.bf16.msra.mxu0 0
    %1257 = vmatpush.bf16.msra.mxu0 0
    %1258 = vmatpush.bf16.msra.mxu0 %v418
    %1259 = vmatpush.bf16.msra.mxu0 %v416
    %1260 = vmatpush.bf16.msra.mxu0 %v414
    %1261 = vmatpush.bf16.msra.mxu0 %v412
    %1262 = vmatmul.bf16.gmra.mxu0 %v1252
    %v1263 = vpop.f32.mrf.mxu0
    %v1264 = vadd.f32 %v1232, %v1263
    %v1265 = vpop.f32.mrf.mxu0
    %1266 = vdwg.mxu0
    %1267 = vmatpush.bf16.msra.mxu0 0
    %1268 = vmatpush.bf16.msra.mxu0 0
    %1269 = vmatpush.bf16.msra.mxu0 0
    %1270 = vmatpush.bf16.msra.mxu0 0
    %1271 = vmatpush.bf16.msra.mxu0 %v419
    %1272 = vmatpush.bf16.msra.mxu0 %v417
    %1273 = vmatpush.bf16.msra.mxu0 %v415
    %1274 = vmatpush.bf16.msra.mxu0 %v413
    %1275 = vmatmul.bf16.gmra.mxu0 %v1252
    %v1276 = vpop.f32.mrf.mxu0
    %v1277 = vadd.f32 %v1245, %v1276
    %v1278 = vpop.f32.mrf.mxu0
    %1279 = vdwg.mxu0
    %v1280 = vadd.f32 %v1264, %v459
    %v1281 = vadd.f32 %v1277, %v460
    %v1282 = vxor.u32 %v1280, 2147483648
    %v1283 = vxor.u32 %v1281, 2147483648
    %v1284 = vmul.f32 %v1282, 1.442695
    %v1285 = vpow.pop %v1284
    %v1286 = vmul.f32 %v1283, 1.442695
    %v1287 = vpow.pop %v1286
    %v1288 = vadd.f32 %v1285, 1.0
    %v1289 = vadd.f32 %v1287, 1.0
    %v1290 = vrcp.pop %v1288
    %v1291 = vmul.f32 %v1288, %v1290
    %v1292 = vsub.f32 1.0, %v1291
    %v1293 = vmul.f32 %v1290, %v1292
    %v1294 = vadd.f32 %v1290, %v1293
    %vm1295 = vweird.f32 %v1288
    %vm1296 = vweird.f32 %v1290
    %vm1297 = vmor %vm1295, %vm1296
    %v1298 = vsel %vm1297, %v1290, %v1294
    %v1299 = vand.u32 2147483647, %v1288
    %vm1300 = vcmp.eq.f32.partialorder %v1299, 8.507059e+37
    %v1301 = vand.u32 %v1288, 2147483648
    %v1302 = vor.u32 1.1754944e-38, %v1301
    %v1303 = vsel %vm1300, %v1302, %v1298
    %v1304 = vmul.f32 1.0, %v1303
    %v1305 = vrcp.pop %v1289
    %v1306 = vmul.f32 %v1289, %v1305
    %v1307 = vsub.f32 1.0, %v1306
    %v1308 = vmul.f32 %v1305, %v1307
    %v1309 = vadd.f32 %v1305, %v1308
    %vm1310 = vweird.f32 %v1289
    %vm1311 = vweird.f32 %v1305
    %vm1312 = vmor %vm1310, %vm1311
    %v1313 = vsel %vm1312, %v1305, %v1309
    %v1314 = vand.u32 2147483647, %v1289
    %vm1315 = vcmp.eq.f32.partialorder %v1314, 8.507059e+37
    %v1316 = vand.u32 %v1289, 2147483648
    %v1317 = vor.u32 1.1754944e-38, %v1316
    %v1318 = vsel %vm1315, %v1317, %v1313
    %v1319 = vmul.f32 1.0, %v1318
    %v1320 = vmul.f32 %v1319, 2.0
    %v1321 = vsub.f32 %v1320, 1.0
    %v1322 = vmul.f32 %v1304, %v1129
    %v1323 = vmul.f32 %v1304, %v1321
    %1325 = vrot.lane.b32.xlu0 %v1323, 64
    %v1326 = vpop.permute.xlu0 %1325
    %v1328 = vadd.f32 %v1322, %v1326
    %v1329 = vtanh.pop %v1328
    %v1330 = vmul.f32 %v1319, %v1329
    %v1331 = vld [vmem:[#allocation2 + $0x10] sm:$0xc]
    %v1332 = vld [vmem:[#allocation2 + $0x18] sm:$0xc]
    %1333 = vmatpush.bf16.msra.mxu0 0
    %1334 = vmatpush.bf16.msra.mxu0 0
    %1335 = vmatpush.bf16.msra.mxu0 0
    %1336 = vmatpush.bf16.msra.mxu0 0
    %1337 = vmatpush.bf16.msra.mxu0 %v211
    %1338 = vmatpush.bf16.msra.mxu0 %v209
    %1339 = vmatpush.bf16.msra.mxu0 %v207
    %1340 = vmatpush.bf16.msra.mxu0 %v205
    %1341 = vmatmul.bf16.gmra.mxu0 %v1252
    %v1342 = vpop.f32.mrf.mxu0
    %v1343 = vadd.f32 0.0, %v1342
    %v1344 = vpop.f32.mrf.mxu0
    %1345 = vdwg.mxu0
    %1346 = vmatpush.bf16.msra.mxu0 0
    %1347 = vmatpush.bf16.msra.mxu0 0
    %1348 = vmatpush.bf16.msra.mxu0 0
    %1349 = vmatpush.bf16.msra.mxu0 0
    %1350 = vmatpush.bf16.msra.mxu0 %v212
    %1351 = vmatpush.bf16.msra.mxu0 %v210
    %1352 = vmatpush.bf16.msra.mxu0 %v208
    %1353 = vmatpush.bf16.msra.mxu0 %v206
    %1354 = vmatmul.bf16.gmra.mxu0 %v1252
    %v1355 = vpop.f32.mrf.mxu0
    %v1356 = vadd.f32 0.0, %v1355
    %v1357 = vpop.f32.mrf.mxu0
    %1358 = vdwg.mxu0
    %v1361 = vrot.slane %v1343, 6
    %v1362 = vrot.slane %v1356, 6
    %v1365 = vadd.f32 %v1331, %v1361
    %v1366 = vadd.f32 %v1332, %v1362
    %v1367 = vxor.u32 %v1365, 2147483648
    %v1368 = vxor.u32 %v1366, 2147483648
    %v1369 = vmul.f32 %v1367, 1.442695
    %v1370 = vpow.pop %v1369
    %v1371 = vmul.f32 %v1368, 1.442695
    %v1372 = vpow.pop %v1371
    %v1373 = vadd.f32 %v1370, 1.0
    %v1374 = vadd.f32 %v1372, 1.0
    %v1375 = vrcp.pop %v1373
    %v1376 = vmul.f32 %v1373, %v1375
    %v1377 = vsub.f32 1.0, %v1376
    %v1378 = vmul.f32 %v1375, %v1377
    %v1379 = vadd.f32 %v1375, %v1378
    %vm1380 = vweird.f32 %v1373
    %vm1381 = vweird.f32 %v1375
    %vm1382 = vmor %vm1380, %vm1381
    %v1383 = vsel %vm1382, %v1375, %v1379
    %v1384 = vand.u32 2147483647, %v1373
    %vm1385 = vcmp.eq.f32.partialorder %v1384, 8.507059e+37
    %v1386 = vand.u32 %v1373, 2147483648
    %v1387 = vor.u32 1.1754944e-38, %v1386
    %v1388 = vsel %vm1385, %v1387, %v1383
    %v1389 = vmul.f32 1.0, %v1388
    %v1390 = vrcp.pop %v1374
    %v1391 = vmul.f32 %v1374, %v1390
    %v1392 = vsub.f32 1.0, %v1391
    %v1393 = vmul.f32 %v1390, %v1392
    %v1394 = vadd.f32 %v1390, %v1393
    %vm1395 = vweird.f32 %v1374
    %vm1396 = vweird.f32 %v1390
    %vm1397 = vmor %vm1395, %vm1396
    %v1398 = vsel %vm1397, %v1390, %v1394
    %v1399 = vand.u32 2147483647, %v1374
    %vm1400 = vcmp.eq.f32.partialorder %v1399, 8.507059e+37
    %v1401 = vand.u32 %v1374, 2147483648
    %v1402 = vor.u32 1.1754944e-38, %v1401
    %v1403 = vsel %vm1400, %v1402, %v1398
    %v1404 = vmul.f32 1.0, %v1403
    %v1405 = vmul.f32 %v1404, 2.0
    %v1406 = vsub.f32 %v1405, 1.0
    %v1408 = vrot.slane %v1211, 6
    %v1410 = vmul.f32 %v1389, %v1408
    %v1411 = vmul.f32 %v1389, %v1406
    %1413 = vrot.lane.b32.xlu0 %v1411, 64
    %v1414 = vpop.permute.xlu0 %1413
    %v1416 = vadd.f32 %v1410, %v1414
    %v1417 = vtanh.pop %v1416
    %v1418 = vmul.f32 %v1404, %v1417
    %v1419 = vpack.c.bf16 %v1418, %v1418
    %v1420 = vpack.c.bf16 %v1330, %v1330
    %1422 = vrot.lane.b32.xlu0 %v1420, 64
    %v1423 = vpop.permute.xlu0 %1422
    %v1425 = vsel %vm221, %v1423, 0
    %1427 = vmatpush.bf16.msra.mxu0 0
    %1428 = vmatpush.bf16.msra.mxu0 0
    %1429 = vmatpush.bf16.msra.mxu0 0
    %1430 = vmatpush.bf16.msra.mxu0 0
    %1431 = vmatpush.bf16.msra.mxu0 %v349
    %1432 = vmatpush.bf16.msra.mxu0 %v347
    %1433 = vmatpush.bf16.msra.mxu0 %v345
    %1434 = vmatpush.bf16.msra.mxu0 %v343
    %1435 = vmatmul.bf16.gmra.mxu0 %v1425
    %v1436 = vpop.f32.mrf.mxu0
    %v1437 = vadd.f32 0.0, %v1436
    %v1438 = vpop.f32.mrf.mxu0
    %1439 = vdwg.mxu0
    %1440 = vmatpush.bf16.msra.mxu0 0
    %1441 = vmatpush.bf16.msra.mxu0 0
    %1442 = vmatpush.bf16.msra.mxu0 0
    %1443 = vmatpush.bf16.msra.mxu0 0
    %1444 = vmatpush.bf16.msra.mxu0 %v350
    %1445 = vmatpush.bf16.msra.mxu0 %v348
    %1446 = vmatpush.bf16.msra.mxu0 %v346
    %1447 = vmatpush.bf16.msra.mxu0 %v344
    %1448 = vmatmul.bf16.gmra.mxu0 %v1425
    %v1449 = vpop.f32.mrf.mxu0
    %v1450 = vadd.f32 0.0, %v1449
    %v1451 = vpop.f32.mrf.mxu0
    %1452 = vdwg.mxu0
    %v1454 = vrot.slane %v1419, 1
    %1455 = vrot.lane.b32.xlu0 %v1454, 64
    %v1456 = vpop.permute.xlu0 %1455
    %v1458 = vsel %vm221, %v1456, 0
    %1460 = vmatpush.bf16.msra.mxu0 0
    %1461 = vmatpush.bf16.msra.mxu0 0
    %1462 = vmatpush.bf16.msra.mxu0 0
    %1463 = vmatpush.bf16.msra.mxu0 0
    %1464 = vmatpush.bf16.msra.mxu0 %v418
    %1465 = vmatpush.bf16.msra.mxu0 %v416
    %1466 = vmatpush.bf16.msra.mxu0 %v414
    %1467 = vmatpush.bf16.msra.mxu0 %v412
    %1468 = vmatmul.bf16.gmra.mxu0 %v1458
    %v1469 = vpop.f32.mrf.mxu0
    %v1470 = vadd.f32 %v1437, %v1469
    %v1471 = vpop.f32.mrf.mxu0
    %1472 = vdwg.mxu0
    %1473 = vmatpush.bf16.msra.mxu0 0
    %1474 = vmatpush.bf16.msra.mxu0 0
    %1475 = vmatpush.bf16.msra.mxu0 0
    %1476 = vmatpush.bf16.msra.mxu0 0
    %1477 = vmatpush.bf16.msra.mxu0 %v419
    %1478 = vmatpush.bf16.msra.mxu0 %v417
    %1479 = vmatpush.bf16.msra.mxu0 %v415
    %1480 = vmatpush.bf16.msra.mxu0 %v413
    %1481 = vmatmul.bf16.gmra.mxu0 %v1458
    %v1482 = vpop.f32.mrf.mxu0
    %v1483 = vadd.f32 %v1450, %v1482
    %v1484 = vpop.f32.mrf.mxu0
    %1485 = vdwg.mxu0
    %v1486 = vadd.f32 %v1470, %v459
    %v1487 = vadd.f32 %v1483, %v460
    %v1488 = vxor.u32 %v1486, 2147483648
    %v1489 = vxor.u32 %v1487, 2147483648
    %v1490 = vmul.f32 %v1488, 1.442695
    %v1491 = vpow.pop %v1490
    %v1492 = vmul.f32 %v1489, 1.442695
    %v1493 = vpow.pop %v1492
    %v1494 = vadd.f32 %v1491, 1.0
    %v1495 = vadd.f32 %v1493, 1.0
    %v1496 = vrcp.pop %v1494
    %v1497 = vmul.f32 %v1494, %v1496
    %v1498 = vsub.f32 1.0, %v1497
    %v1499 = vmul.f32 %v1496, %v1498
    %v1500 = vadd.f32 %v1496, %v1499
    %vm1501 = vweird.f32 %v1494
    %vm1502 = vweird.f32 %v1496
    %vm1503 = vmor %vm1501, %vm1502
    %v1504 = vsel %vm1503, %v1496, %v1500
    %v1505 = vand.u32 2147483647, %v1494
    %vm1506 = vcmp.eq.f32.partialorder %v1505, 8.507059e+37
    %v1507 = vand.u32 %v1494, 2147483648
    %v1508 = vor.u32 1.1754944e-38, %v1507
    %v1509 = vsel %vm1506, %v1508, %v1504
    %v1510 = vmul.f32 1.0, %v1509
    %v1511 = vrcp.pop %v1495
    %v1512 = vmul.f32 %v1495, %v1511
    %v1513 = vsub.f32 1.0, %v1512
    %v1514 = vmul.f32 %v1511, %v1513
    %v1515 = vadd.f32 %v1511, %v1514
    %vm1516 = vweird.f32 %v1495
    %vm1517 = vweird.f32 %v1511
    %vm1518 = vmor %vm1516, %vm1517
    %v1519 = vsel %vm1518, %v1511, %v1515
    %v1520 = vand.u32 2147483647, %v1495
    %vm1521 = vcmp.eq.f32.partialorder %v1520, 8.507059e+37
    %v1522 = vand.u32 %v1495, 2147483648
    %v1523 = vor.u32 1.1754944e-38, %v1522
    %v1524 = vsel %vm1521, %v1523, %v1519
    %v1525 = vmul.f32 1.0, %v1524
    %v1526 = vmul.f32 %v1525, 2.0
    %v1527 = vsub.f32 %v1526, 1.0
    %v1528 = vmul.f32 %v1510, %v1328
    %v1529 = vmul.f32 %v1510, %v1527
    %1531 = vrot.lane.b32.xlu0 %v1529, 64
    %v1532 = vpop.permute.xlu0 %1531
    %v1534 = vadd.f32 %v1528, %v1532
    %v1535 = vtanh.pop %v1534
    %v1536 = vmul.f32 %v1525, %v1535
    %v1537 = vld [vmem:[#allocation2 + $0x10] sm:$0x30]
    %v1538 = vld [vmem:[#allocation2 + $0x18] sm:$0x30]
    %1539 = vmatpush.bf16.msra.mxu0 0
    %1540 = vmatpush.bf16.msra.mxu0 0
    %1541 = vmatpush.bf16.msra.mxu0 0
    %1542 = vmatpush.bf16.msra.mxu0 0
    %1543 = vmatpush.bf16.msra.mxu0 %v211
    %1544 = vmatpush.bf16.msra.mxu0 %v209
    %1545 = vmatpush.bf16.msra.mxu0 %v207
    %1546 = vmatpush.bf16.msra.mxu0 %v205
    %1547 = vmatmul.bf16.gmra.mxu0 %v1458
    %v1548 = vpop.f32.mrf.mxu0
    %v1549 = vadd.f32 0.0, %v1548
    %v1550 = vpop.f32.mrf.mxu0
    %1551 = vdwg.mxu0
    %1552 = vmatpush.bf16.msra.mxu0 0
    %1553 = vmatpush.bf16.msra.mxu0 0
    %1554 = vmatpush.bf16.msra.mxu0 0
    %1555 = vmatpush.bf16.msra.mxu0 0
    %1556 = vmatpush.bf16.msra.mxu0 %v212
    %1557 = vmatpush.bf16.msra.mxu0 %v210
    %1558 = vmatpush.bf16.msra.mxu0 %v208
    %1559 = vmatpush.bf16.msra.mxu0 %v206
    %1560 = vmatmul.bf16.gmra.mxu0 %v1458
    %v1561 = vpop.f32.mrf.mxu0
    %v1562 = vadd.f32 0.0, %v1561
    %v1563 = vpop.f32.mrf.mxu0
    %1564 = vdwg.mxu0
    %v1567 = vrot.slane %v1549, 4
    %v1568 = vrot.slane %v1562, 4
    %v1571 = vadd.f32 %v1537, %v1567
    %v1572 = vadd.f32 %v1538, %v1568
    %v1573 = vxor.u32 %v1571, 2147483648
    %v1574 = vxor.u32 %v1572, 2147483648
    %v1575 = vmul.f32 %v1573, 1.442695
    %v1576 = vpow.pop %v1575
    %v1577 = vmul.f32 %v1574, 1.442695
    %v1578 = vpow.pop %v1577
    %v1579 = vadd.f32 %v1576, 1.0
    %v1580 = vadd.f32 %v1578, 1.0
    %v1581 = vrcp.pop %v1579
    %v1582 = vmul.f32 %v1579, %v1581
    %v1583 = vsub.f32 1.0, %v1582
    %v1584 = vmul.f32 %v1581, %v1583
    %v1585 = vadd.f32 %v1581, %v1584
    %vm1586 = vweird.f32 %v1579
    %vm1587 = vweird.f32 %v1581
    %vm1588 = vmor %vm1586, %vm1587
    %v1589 = vsel %vm1588, %v1581, %v1585
    %v1590 = vand.u32 2147483647, %v1579
    %vm1591 = vcmp.eq.f32.partialorder %v1590, 8.507059e+37
    %v1592 = vand.u32 %v1579, 2147483648
    %v1593 = vor.u32 1.1754944e-38, %v1592
    %v1594 = vsel %vm1591, %v1593, %v1589
    %v1595 = vmul.f32 1.0, %v1594
    %v1596 = vrcp.pop %v1580
    %v1597 = vmul.f32 %v1580, %v1596
    %v1598 = vsub.f32 1.0, %v1597
    %v1599 = vmul.f32 %v1596, %v1598
    %v1600 = vadd.f32 %v1596, %v1599
    %vm1601 = vweird.f32 %v1580
    %vm1602 = vweird.f32 %v1596
    %vm1603 = vmor %vm1601, %vm1602
    %v1604 = vsel %vm1603, %v1596, %v1600
    %v1605 = vand.u32 2147483647, %v1580
    %vm1606 = vcmp.eq.f32.partialorder %v1605, 8.507059e+37
    %v1607 = vand.u32 %v1580, 2147483648
    %v1608 = vor.u32 1.1754944e-38, %v1607
    %v1609 = vsel %vm1606, %v1608, %v1604
    %v1610 = vmul.f32 1.0, %v1609
    %v1611 = vmul.f32 %v1610, 2.0
    %v1612 = vsub.f32 %v1611, 1.0
    %v1614 = vrot.slane %v1416, 6
    %v1616 = vmul.f32 %v1595, %v1614
    %v1617 = vmul.f32 %v1595, %v1612
    %1619 = vrot.lane.b32.xlu0 %v1617, 64
    %v1620 = vpop.permute.xlu0 %1619
    %v1622 = vadd.f32 %v1616, %v1620
    %v1623 = vtanh.pop %v1622
    %v1624 = vmul.f32 %v1610, %v1623
    %v1625 = vpack.c.bf16 %v1624, %v1624
    %v1626 = vpack.c.bf16 %v1536, %v1536
    %1628 = vrot.lane.b32.xlu0 %v1626, 64
    %v1629 = vpop.permute.xlu0 %1628
    %v1631 = vsel %vm221, %v1629, 0
    %1633 = vmatpush.bf16.msra.mxu0 0
    %1634 = vmatpush.bf16.msra.mxu0 0
    %1635 = vmatpush.bf16.msra.mxu0 0
    %1636 = vmatpush.bf16.msra.mxu0 0
    %1637 = vmatpush.bf16.msra.mxu0 %v349
    %1638 = vmatpush.bf16.msra.mxu0 %v347
    %1639 = vmatpush.bf16.msra.mxu0 %v345
    %1640 = vmatpush.bf16.msra.mxu0 %v343
    %1641 = vmatmul.bf16.gmra.mxu0 %v1631
    %v1642 = vpop.f32.mrf.mxu0
    %v1643 = vadd.f32 0.0, %v1642
    %v1644 = vpop.f32.mrf.mxu0
    %1645 = vdwg.mxu0
    %1646 = vmatpush.bf16.msra.mxu0 0
    %1647 = vmatpush.bf16.msra.mxu0 0
    %1648 = vmatpush.bf16.msra.mxu0 0
    %1649 = vmatpush.bf16.msra.mxu0 0
    %1650 = vmatpush.bf16.msra.mxu0 %v350
    %1651 = vmatpush.bf16.msra.mxu0 %v348
    %1652 = vmatpush.bf16.msra.mxu0 %v346
    %1653 = vmatpush.bf16.msra.mxu0 %v344
    %1654 = vmatmul.bf16.gmra.mxu0 %v1631
    %v1655 = vpop.f32.mrf.mxu0
    %v1656 = vadd.f32 0.0, %v1655
    %v1657 = vpop.f32.mrf.mxu0
    %1658 = vdwg.mxu0
    %v1660 = vrot.slane %v1625, 2
    %1661 = vrot.lane.b32.xlu0 %v1660, 64
    %v1662 = vpop.permute.xlu0 %1661
    %v1664 = vsel %vm221, %v1662, 0
    %1666 = vmatpush.bf16.msra.mxu0 0
    %1667 = vmatpush.bf16.msra.mxu0 0
    %1668 = vmatpush.bf16.msra.mxu0 0
    %1669 = vmatpush.bf16.msra.mxu0 0
    %1670 = vmatpush.bf16.msra.mxu0 %v418
    %1671 = vmatpush.bf16.msra.mxu0 %v416
    %1672 = vmatpush.bf16.msra.mxu0 %v414
    %1673 = vmatpush.bf16.msra.mxu0 %v412
    %1674 = vmatmul.bf16.gmra.mxu0 %v1664
    %v1675 = vpop.f32.mrf.mxu0
    %v1676 = vadd.f32 %v1643, %v1675
    %v1677 = vpop.f32.mrf.mxu0
    %1678 = vdwg.mxu0
    %1679 = vmatpush.bf16.msra.mxu0 0
    %1680 = vmatpush.bf16.msra.mxu0 0
    %1681 = vmatpush.bf16.msra.mxu0 0
    %1682 = vmatpush.bf16.msra.mxu0 0
    %1683 = vmatpush.bf16.msra.mxu0 %v419
    %1684 = vmatpush.bf16.msra.mxu0 %v417
    %1685 = vmatpush.bf16.msra.mxu0 %v415
    %1686 = vmatpush.bf16.msra.mxu0 %v413
    %1687 = vmatmul.bf16.gmra.mxu0 %v1664
    %v1688 = vpop.f32.mrf.mxu0
    %v1689 = vadd.f32 %v1656, %v1688
    %v1690 = vpop.f32.mrf.mxu0
    %1691 = vdwg.mxu0
    %v1692 = vadd.f32 %v1676, %v459
    %v1693 = vadd.f32 %v1689, %v460
    %v1694 = vxor.u32 %v1692, 2147483648
    %v1695 = vxor.u32 %v1693, 2147483648
    %v1696 = vmul.f32 %v1694, 1.442695
    %v1697 = vpow.pop %v1696
    %v1698 = vmul.f32 %v1695, 1.442695
    %v1699 = vpow.pop %v1698
    %v1700 = vadd.f32 %v1697, 1.0
    %v1701 = vadd.f32 %v1699, 1.0
    %v1702 = vrcp.pop %v1700
    %v1703 = vmul.f32 %v1700, %v1702
    %v1704 = vsub.f32 1.0, %v1703
    %v1705 = vmul.f32 %v1702, %v1704
    %v1706 = vadd.f32 %v1702, %v1705
    %vm1707 = vweird.f32 %v1700
    %vm1708 = vweird.f32 %v1702
    %vm1709 = vmor %vm1707, %vm1708
    %v1710 = vsel %vm1709, %v1702, %v1706
    %v1711 = vand.u32 2147483647, %v1700
    %vm1712 = vcmp.eq.f32.partialorder %v1711, 8.507059e+37
    %v1713 = vand.u32 %v1700, 2147483648
    %v1714 = vor.u32 1.1754944e-38, %v1713
    %v1715 = vsel %vm1712, %v1714, %v1710
    %v1716 = vmul.f32 1.0, %v1715
    %v1717 = vrcp.pop %v1701
    %v1718 = vmul.f32 %v1701, %v1717
    %v1719 = vsub.f32 1.0, %v1718
    %v1720 = vmul.f32 %v1717, %v1719
    %v1721 = vadd.f32 %v1717, %v1720
    %vm1722 = vweird.f32 %v1701
    %vm1723 = vweird.f32 %v1717
    %vm1724 = vmor %vm1722, %vm1723
    %v1725 = vsel %vm1724, %v1717, %v1721
    %v1726 = vand.u32 2147483647, %v1701
    %vm1727 = vcmp.eq.f32.partialorder %v1726, 8.507059e+37
    %v1728 = vand.u32 %v1701, 2147483648
    %v1729 = vor.u32 1.1754944e-38, %v1728
    %v1730 = vsel %vm1727, %v1729, %v1725
    %v1731 = vmul.f32 1.0, %v1730
    %v1732 = vmul.f32 %v1731, 2.0
    %v1733 = vsub.f32 %v1732, 1.0
    %v1734 = vmul.f32 %v1716, %v1534
    %v1735 = vmul.f32 %v1716, %v1733
    %1737 = vrot.lane.b32.xlu0 %v1735, 64
    %v1738 = vpop.permute.xlu0 %1737
    %v1740 = vadd.f32 %v1734, %v1738
    %v1741 = vtanh.pop %v1740
    %v1742 = vmul.f32 %v1731, %v1741
    %v1743 = vld [vmem:[#allocation2 + $0x10] sm:$0xc0]
    %v1744 = vld [vmem:[#allocation2 + $0x18] sm:$0xc0]
    %1745 = vmatpush.bf16.msra.mxu0 0
    %1746 = vmatpush.bf16.msra.mxu0 0
    %1747 = vmatpush.bf16.msra.mxu0 0
    %1748 = vmatpush.bf16.msra.mxu0 0
    %1749 = vmatpush.bf16.msra.mxu0 %v211
    %1750 = vmatpush.bf16.msra.mxu0 %v209
    %1751 = vmatpush.bf16.msra.mxu0 %v207
    %1752 = vmatpush.bf16.msra.mxu0 %v205
    %1753 = vmatmul.bf16.gmra.mxu0 %v1664
    %v1754 = vpop.f32.mrf.mxu0
    %v1755 = vadd.f32 0.0, %v1754
    %v1756 = vpop.f32.mrf.mxu0
    %1757 = vdwg.mxu0
    %1758 = vmatpush.bf16.msra.mxu0 0
    %1759 = vmatpush.bf16.msra.mxu0 0
    %1760 = vmatpush.bf16.msra.mxu0 0
    %1761 = vmatpush.bf16.msra.mxu0 0
    %1762 = vmatpush.bf16.msra.mxu0 %v212
    %1763 = vmatpush.bf16.msra.mxu0 %v210
    %1764 = vmatpush.bf16.msra.mxu0 %v208
    %1765 = vmatpush.bf16.msra.mxu0 %v206
    %1766 = vmatmul.bf16.gmra.mxu0 %v1664
    %v1767 = vpop.f32.mrf.mxu0
    %v1768 = vadd.f32 0.0, %v1767
    %v1769 = vpop.f32.mrf.mxu0
    %1770 = vdwg.mxu0
    %v1773 = vrot.slane %v1755, 2
    %v1774 = vrot.slane %v1768, 2
    %v1777 = vadd.f32 %v1743, %v1773
    %v1778 = vadd.f32 %v1744, %v1774
    %v1779 = vxor.u32 %v1777, 2147483648
    %v1780 = vxor.u32 %v1778, 2147483648
    %v1781 = vmul.f32 %v1779, 1.442695
    %v1782 = vpow.pop %v1781
    %v1783 = vmul.f32 %v1780, 1.442695
    %v1784 = vpow.pop %v1783
    %v1785 = vadd.f32 %v1782, 1.0
    %v1786 = vadd.f32 %v1784, 1.0
    %v1787 = vrcp.pop %v1785
    %v1788 = vmul.f32 %v1785, %v1787
    %v1789 = vsub.f32 1.0, %v1788
    %v1790 = vmul.f32 %v1787, %v1789
    %v1791 = vadd.f32 %v1787, %v1790
    %vm1792 = vweird.f32 %v1785
    %vm1793 = vweird.f32 %v1787
    %vm1794 = vmor %vm1792, %vm1793
    %v1795 = vsel %vm1794, %v1787, %v1791
    %v1796 = vand.u32 2147483647, %v1785
    %vm1797 = vcmp.eq.f32.partialorder %v1796, 8.507059e+37
    %v1798 = vand.u32 %v1785, 2147483648
    %v1799 = vor.u32 1.1754944e-38, %v1798
    %v1800 = vsel %vm1797, %v1799, %v1795
    %v1801 = vmul.f32 1.0, %v1800
    %v1802 = vrcp.pop %v1786
    %v1803 = vmul.f32 %v1786, %v1802
    %v1804 = vsub.f32 1.0, %v1803
    %v1805 = vmul.f32 %v1802, %v1804
    %v1806 = vadd.f32 %v1802, %v1805
    %vm1807 = vweird.f32 %v1786
    %vm1808 = vweird.f32 %v1802
    %vm1809 = vmor %vm1807, %vm1808
    %v1810 = vsel %vm1809, %v1802, %v1806
    %v1811 = vand.u32 2147483647, %v1786
    %vm1812 = vcmp.eq.f32.partialorder %v1811, 8.507059e+37
    %v1813 = vand.u32 %v1786, 2147483648
    %v1814 = vor.u32 1.1754944e-38, %v1813
    %v1815 = vsel %vm1812, %v1814, %v1810
    %v1816 = vmul.f32 1.0, %v1815
    %v1817 = vmul.f32 %v1816, 2.0
    %v1818 = vsub.f32 %v1817, 1.0
    %v1820 = vrot.slane %v1622, 6
    %v1822 = vmul.f32 %v1801, %v1820
    %v1823 = vmul.f32 %v1801, %v1818
    %1825 = vrot.lane.b32.xlu0 %v1823, 64
    %v1826 = vpop.permute.xlu0 %1825
    %v1828 = vadd.f32 %v1822, %v1826
    %v1829 = vtanh.pop %v1828
    %v1830 = vmul.f32 %v1816, %v1829
    %v1831 = vpack.c.bf16 %v1830, %v1830
    %v1832 = vpack.c.bf16 %v1742, %v1742
    %1834 = vrot.lane.b32.xlu0 %v1832, 64
    %v1835 = vpop.permute.xlu0 %1834
    %v1837 = vsel %vm221, %v1835, 0
    %1839 = vmatpush.bf16.msra.mxu0 0
    %1840 = vmatpush.bf16.msra.mxu0 0
    %1841 = vmatpush.bf16.msra.mxu0 0
    %1842 = vmatpush.bf16.msra.mxu0 0
    %1843 = vmatpush.bf16.msra.mxu0 %v349
    %1844 = vmatpush.bf16.msra.mxu0 %v347
    %1845 = vmatpush.bf16.msra.mxu0 %v345
    %1846 = vmatpush.bf16.msra.mxu0 %v343
    %1847 = vmatmul.bf16.gmra.mxu0 %v1837
    %v1848 = vpop.f32.mrf.mxu0
    %v1849 = vadd.f32 0.0, %v1848
    %v1850 = vpop.f32.mrf.mxu0
    %1851 = vdwg.mxu0
    %1852 = vmatpush.bf16.msra.mxu0 0
    %1853 = vmatpush.bf16.msra.mxu0 0
    %1854 = vmatpush.bf16.msra.mxu0 0
    %1855 = vmatpush.bf16.msra.mxu0 0
    %1856 = vmatpush.bf16.msra.mxu0 %v350
    %1857 = vmatpush.bf16.msra.mxu0 %v348
    %1858 = vmatpush.bf16.msra.mxu0 %v346
    %1859 = vmatpush.bf16.msra.mxu0 %v344
    %1860 = vmatmul.bf16.gmra.mxu0 %v1837
    %v1861 = vpop.f32.mrf.mxu0
    %v1862 = vadd.f32 0.0, %v1861
    %v1863 = vpop.f32.mrf.mxu0
    %1864 = vdwg.mxu0
    %v1866 = vrot.slane %v1831, 3
    %1867 = vrot.lane.b32.xlu0 %v1866, 64
    %v1868 = vpop.permute.xlu0 %1867
    %v1870 = vsel %vm221, %v1868, 0
    %1872 = vmatpush.bf16.msra.mxu0 0
    %1873 = vmatpush.bf16.msra.mxu0 0
    %1874 = vmatpush.bf16.msra.mxu0 0
    %1875 = vmatpush.bf16.msra.mxu0 0
    %1876 = vmatpush.bf16.msra.mxu0 %v418
    %1877 = vmatpush.bf16.msra.mxu0 %v416
    %1878 = vmatpush.bf16.msra.mxu0 %v414
    %1879 = vmatpush.bf16.msra.mxu0 %v412
    %1880 = vmatmul.bf16.gmra.mxu0 %v1870
    %v1881 = vpop.f32.mrf.mxu0
    %v1882 = vadd.f32 %v1849, %v1881
    %v1883 = vpop.f32.mrf.mxu0
    %1884 = vdwg.mxu0
    %1885 = vmatpush.bf16.msra.mxu0 0
    %1886 = vmatpush.bf16.msra.mxu0 0
    %1887 = vmatpush.bf16.msra.mxu0 0
    %1888 = vmatpush.bf16.msra.mxu0 0
    %1889 = vmatpush.bf16.msra.mxu0 %v419
    %1890 = vmatpush.bf16.msra.mxu0 %v417
    %1891 = vmatpush.bf16.msra.mxu0 %v415
    %1892 = vmatpush.bf16.msra.mxu0 %v413
    %1893 = vmatmul.bf16.gmra.mxu0 %v1870
    %v1894 = vpop.f32.mrf.mxu0
    %v1895 = vadd.f32 %v1862, %v1894
    %v1896 = vpop.f32.mrf.mxu0
    %1897 = vdwg.mxu0
    %v1898 = vadd.f32 %v1882, %v459
    %v1899 = vadd.f32 %v1895, %v460
    %v1900 = vxor.u32 %v1898, 2147483648
    %v1901 = vxor.u32 %v1899, 2147483648
    %v1902 = vmul.f32 %v1900, 1.442695
    %v1903 = vpow.pop %v1902
    %v1904 = vmul.f32 %v1901, 1.442695
    %v1905 = vpow.pop %v1904
    %v1906 = vadd.f32 %v1903, 1.0
    %v1907 = vadd.f32 %v1905, 1.0
    %v1908 = vrcp.pop %v1906
    %v1909 = vmul.f32 %v1906, %v1908
    %v1910 = vsub.f32 1.0, %v1909
    %v1911 = vmul.f32 %v1908, %v1910
    %v1912 = vadd.f32 %v1908, %v1911
    %vm1913 = vweird.f32 %v1906
    %vm1914 = vweird.f32 %v1908
    %vm1915 = vmor %vm1913, %vm1914
    %v1916 = vsel %vm1915, %v1908, %v1912
    %v1917 = vand.u32 2147483647, %v1906
    %vm1918 = vcmp.eq.f32.partialorder %v1917, 8.507059e+37
    %v1919 = vand.u32 %v1906, 2147483648
    %v1920 = vor.u32 1.1754944e-38, %v1919
    %v1921 = vsel %vm1918, %v1920, %v1916
    %v1922 = vmul.f32 1.0, %v1921
    %v1923 = vrcp.pop %v1907
    %v1924 = vmul.f32 %v1907, %v1923
    %v1925 = vsub.f32 1.0, %v1924
    %v1926 = vmul.f32 %v1923, %v1925
    %v1927 = vadd.f32 %v1923, %v1926
    %vm1928 = vweird.f32 %v1907
    %vm1929 = vweird.f32 %v1923
    %vm1930 = vmor %vm1928, %vm1929
    %v1931 = vsel %vm1930, %v1923, %v1927
    %v1932 = vand.u32 2147483647, %v1907
    %vm1933 = vcmp.eq.f32.partialorder %v1932, 8.507059e+37
    %v1934 = vand.u32 %v1907, 2147483648
    %v1935 = vor.u32 1.1754944e-38, %v1934
    %v1936 = vsel %vm1933, %v1935, %v1931
    %v1937 = vmul.f32 1.0, %v1936
    %v1938 = vmul.f32 %v1937, 2.0
    %v1939 = vsub.f32 %v1938, 1.0
    %v1940 = vmul.f32 %v1922, %v1740
    %v1941 = vmul.f32 %v1922, %v1939
    %1943 = vrot.lane.b32.xlu0 %v1941, 64
    %v1944 = vpop.permute.xlu0 %1943
    %v1946 = vadd.f32 %v1940, %v1944
    %v1947 = vtanh.pop %v1946
    %v1948 = vmul.f32 %v1937, %v1947
    %v1949 = vpack.c.bf16 %v1948, %v1948
    %v1950 = vld [vmem:[%s7] sm:$0xf]
    %v1951 = vld [vmem:[%s7 + $0x4] sm:$0xf]
    %v1952 = vld [vmem:[%s7 + $0x8] sm:$0xf]
    %v1953 = vld [vmem:[%s7 + $0xc] sm:$0xf]
    %v1954 = vld [vmem:[%s7 + $0x10] sm:$0xf]
    %v1955 = vld [vmem:[%s7 + $0x14] sm:$0xf]
    %v1956 = vld [vmem:[%s7 + $0x18] sm:$0xf]
    %v1957 = vld [vmem:[%s7 + $0x1c] sm:$0xf]
    %1959 = vrot.lane.b32.xlu0 %v1949, 64
    %v1960 = vpop.permute.xlu0 %1959
    %v1969 = vunpack.c.l.b16 %v1950
    %v1970 = vunpack.c.l.b16 %v1951
    %v1971 = vunpack.c.l.b16 %v1952
    %v1972 = vunpack.c.l.b16 %v1953
    %v1973 = vunpack.c.l.b16 %v1954
    %v1974 = vunpack.c.l.b16 %v1955
    %v1975 = vunpack.c.l.b16 %v1956
    %v1976 = vunpack.c.l.b16 %v1957
    %v1977 = vpack.c.b16 %v1970, %v1969
    %v1978 = vpack.c.b16 %v1972, %v1971
    %v1979 = vpack.c.b16 %v1974, %v1973
    %v1980 = vpack.c.b16 %v1976, %v1975
    %v1986 = vsel %vm221, %v1960, 0
    %1988 = vmatpush.bf16.msra.mxu0 0
    %1989 = vmatpush.bf16.msra.mxu0 0
    %1990 = vmatpush.bf16.msra.mxu0 0
    %1991 = vmatpush.bf16.msra.mxu0 0
    %1992 = vmatpush.bf16.msra.mxu0 %v1980
    %1993 = vmatpush.bf16.msra.mxu0 %v1979
    %1994 = vmatpush.bf16.msra.mxu0 %v1978
    %1995 = vmatpush.bf16.msra.mxu0 %v1977
    %1996 = vmatmul.bf16.gmra.mxu0 %v1986
    %v1997 = vpop.f32.mrf.mxu0
    %v1998 = vadd.f32 0.0, %v1997
    %v1999 = vpop.f32.mrf.mxu0
    %2000 = vdwg.mxu0
    %s2001 = sld [smem:[#allocation3]]
    %v2002 = vstv %s2001
    %v2003 = vadd.f32 %v1998, %v2002
    %2005 = vrot.lane.b32.xlu0 %v1998, 127
    %v2006 = vpop.permute.xlu0 %2005
    %v2008 = vsub.f32 %v2003, %v2006
    %2009 = vrot.lane.b32.xlu0 %v1998, 126
    %v2010 = vpop.permute.xlu0 %2009
    %v2012 = vsub.f32 %v2003, %v2010
    %2013 = vrot.lane.b32.xlu0 %v1998, 125
    %v2014 = vpop.permute.xlu0 %2013
    %v2016 = vsub.f32 %v2003, %v2014
    %2017 = vrot.lane.b32.xlu0 %v1998, 124
    %v2018 = vpop.permute.xlu0 %2017
    %v2020 = vsub.f32 %v2003, %v2018
    %v2021 = vsub.f32 %v2008, %v2014
    %2022 = vrot.lane.b32.xlu0 %v1998, 123
    %v2023 = vpop.permute.xlu0 %2022
    %v2025 = vadd.f32 %v2021, %v2023
    %v2026 = vsub.f32 %v2008, %v2018
    %2027 = vrot.lane.b32.xlu0 %v1998, 122
    %v2028 = vpop.permute.xlu0 %2027
    %v2030 = vadd.f32 %v2026, %v2028
    %v2031 = vsub.f32 %v2012, %v2014
    %2032 = vrot.lane.b32.xlu0 %v1998, 121
    %v2033 = vpop.permute.xlu0 %2032
    %v2035 = vadd.f32 %v2031, %v2033
    %v2036 = vsub.f32 %v2012, %v2018
    %2037 = vrot.lane.b32.xlu0 %v1998, 120
    %v2038 = vpop.permute.xlu0 %2037
    %v2040 = vadd.f32 %v2036, %v2038
    %v2041 = vmin.f32 %v2003, %v2008
    %v2042 = vmax.f32 %v2003, %v2008
    %v2043 = vmin.f32 %v2041, %v2012
    %v2044 = vmax.f32 %v2042, %v2012
    %v2045 = vmin.f32 %v2043, %v2016
    %v2046 = vmax.f32 %v2044, %v2016
    %v2047 = vmin.f32 %v2045, %v2020
    %v2048 = vmax.f32 %v2046, %v2020
    %v2049 = vmin.f32 %v2047, %v2025
    %v2050 = vmax.f32 %v2048, %v2025
    %v2051 = vmin.f32 %v2049, %v2030
    %v2052 = vmax.f32 %v2050, %v2030
    %v2053 = vmin.f32 %v2051, %v2035
    %v2054 = vmax.f32 %v2052, %v2035
    %v2055 = vmin.f32 %v2053, %v2040
    %v2056 = vmax.f32 %v2054, %v2040
    %vm2057 = vcmask 1024
    %v2058 = vsel %vm2057, %v2055, inf
    %v2059 = vrot.slane %v2058, 4
    %v2060 = vmin.f32 %v2058, %v2059
    %v2061 = vrot.slane %v2060, 2
    %v2062 = vmin.f32 %v2060, %v2061
    %v2063 = vrot.slane %v2062, 1
    %v2064 = vmin.f32 %v2062, %v2063
    %v2065 = vsel %vm2057, %v2056, -inf
    %v2066 = vrot.slane %v2065, 4
    %v2067 = vmax.f32 %v2065, %v2066
    %v2068 = vrot.slane %v2067, 2
    %v2069 = vmax.f32 %v2067, %v2068
    %v2070 = vrot.slane %v2069, 1
    %v2071 = vmax.f32 %v2069, %v2070
    %v2072 = vsub.f32 %v2071, %v2064
    %v2073 = vadd.f32 %v2072, 1e-05
    %v2074 = vrcp.pop %v2073
    %v2075 = vlaneseq
    %v2076 = vand.u32 %v2075, 127
    %v2077 = vadd.s32 %v2076, 128
    %v2078 = vadd.s32 %v2076, 256
    %v2079 = vadd.s32 %v2076, 384
    %v2080 = vadd.s32 %v2076, 512
    %v2081 = vadd.s32 %v2076, 640
    %v2082 = vadd.s32 %v2076, 768
    %v2083 = vadd.s32 %v2076, 896
    %v2084 = vadd.s32 %v2076, 1024
    %v2085 = vadd.s32 %v2076, 1152
    %v2086 = vadd.s32 %v2076, 1280
    %v2087 = vadd.s32 %v2076, 1408
    %v2088 = vadd.s32 %v2076, 1536
    %v2089 = vadd.s32 %v2076, 1664
    %v2090 = vadd.s32 %v2076, 1792
    %v2091 = vadd.s32 %v2076, 1920
    %v2092 = vadd.s32 %v2076, 2048
    %v2093 = vadd.s32 %v2076, 2176
    %v2094 = vadd.s32 %v2076, 2304
    %v2095 = vadd.s32 %v2076, 2432
    %v2096 = vadd.s32 %v2076, 2560
    %v2097 = vadd.s32 %v2076, 2688
    %v2098 = vadd.s32 %v2076, 2816
    %v2099 = vadd.s32 %v2076, 2944
    %v2100 = vadd.s32 %v2076, 3072
    %v2101 = vadd.s32 %v2076, 3200
    %v2102 = vadd.s32 %v2076, 3328
    %v2103 = vadd.s32 %v2076, 3456
    %v2104 = vadd.s32 %v2076, 3584
    %v2105 = vadd.s32 %v2076, 3712
    %v2106 = vadd.s32 %v2076, 3840
    %v2107 = vadd.s32 %v2076, 3968
    %v2108 = vshra.s32 %v2076, 6
    %v2109 = vshra.s32 %v2077, 6
    %v2110 = vshra.s32 %v2078, 6
    %v2111 = vshra.s32 %v2079, 6
    %v2112 = vshra.s32 %v2080, 6
    %v2113 = vshra.s32 %v2081, 6
    %v2114 = vshra.s32 %v2082, 6
    %v2115 = vshra.s32 %v2083, 6
    %v2116 = vshra.s32 %v2084, 6
    %v2117 = vshra.s32 %v2085, 6
    %v2118 = vshra.s32 %v2086, 6
    %v2119 = vshra.s32 %v2087, 6
    %v2120 = vshra.s32 %v2088, 6
    %v2121 = vshra.s32 %v2089, 6
    %v2122 = vshra.s32 %v2090, 6
    %v2123 = vshra.s32 %v2091, 6
    %v2124 = vshra.s32 %v2092, 6
    %v2125 = vshra.s32 %v2093, 6
    %v2126 = vshra.s32 %v2094, 6
    %v2127 = vshra.s32 %v2095, 6
    %v2128 = vshra.s32 %v2096, 6
    %v2129 = vshra.s32 %v2097, 6
    %v2130 = vshra.s32 %v2098, 6
    %v2131 = vshra.s32 %v2099, 6
    %v2132 = vshra.s32 %v2100, 6
    %v2133 = vshra.s32 %v2101, 6
    %v2134 = vshra.s32 %v2102, 6
    %v2135 = vshra.s32 %v2103, 6
    %v2136 = vshra.s32 %v2104, 6
    %v2137 = vshra.s32 %v2105, 6
    %v2138 = vshra.s32 %v2106, 6
    %v2139 = vshra.s32 %v2107, 6
    %v2140 = vand.u32 %v2076, 63
    %v2141 = vand.u32 %v2077, 63
    %v2142 = vand.u32 %v2078, 63
    %v2143 = vand.u32 %v2079, 63
    %v2144 = vand.u32 %v2080, 63
    %v2145 = vand.u32 %v2081, 63
    %v2146 = vand.u32 %v2082, 63
    %v2147 = vand.u32 %v2083, 63
    %v2148 = vand.u32 %v2084, 63
    %v2149 = vand.u32 %v2085, 63
    %v2150 = vand.u32 %v2086, 63
    %v2151 = vand.u32 %v2087, 63
    %v2152 = vand.u32 %v2088, 63
    %v2153 = vand.u32 %v2089, 63
    %v2154 = vand.u32 %v2090, 63
    %v2155 = vand.u32 %v2091, 63
    %v2156 = vand.u32 %v2092, 63
    %v2157 = vand.u32 %v2093, 63
    %v2158 = vand.u32 %v2094, 63
    %v2159 = vand.u32 %v2095, 63
    %v2160 = vand.u32 %v2096, 63
    %v2161 = vand.u32 %v2097, 63
    %v2162 = vand.u32 %v2098, 63
    %v2163 = vand.u32 %v2099, 63
    %v2164 = vand.u32 %v2100, 63
    %v2165 = vand.u32 %v2101, 63
    %v2166 = vand.u32 %v2102, 63
    %v2167 = vand.u32 %v2103, 63
    %v2168 = vand.u32 %v2104, 63
    %v2169 = vand.u32 %v2105, 63
    %v2170 = vand.u32 %v2106, 63
    %v2171 = vand.u32 %v2107, 63
    %vm2172 = vcmp.eq.s32.totalorder %v2108, 0
    %vm2173 = vcmp.eq.s32.totalorder %v2109, 0
    %vm2174 = vcmp.eq.s32.totalorder %v2110, 0
    %vm2175 = vcmp.eq.s32.totalorder %v2111, 0
    %vm2176 = vcmp.eq.s32.totalorder %v2112, 0
    %vm2177 = vcmp.eq.s32.totalorder %v2113, 0
    %vm2178 = vcmp.eq.s32.totalorder %v2114, 0
    %vm2179 = vcmp.eq.s32.totalorder %v2115, 0
    %vm2180 = vcmp.eq.s32.totalorder %v2116, 0
    %vm2181 = vcmp.eq.s32.totalorder %v2117, 0
    %vm2182 = vcmp.eq.s32.totalorder %v2118, 0
    %vm2183 = vcmp.eq.s32.totalorder %v2119, 0
    %vm2184 = vcmp.eq.s32.totalorder %v2120, 0
    %vm2185 = vcmp.eq.s32.totalorder %v2121, 0
    %vm2186 = vcmp.eq.s32.totalorder %v2122, 0
    %vm2187 = vcmp.eq.s32.totalorder %v2123, 0
    %vm2188 = vcmp.eq.s32.totalorder %v2124, 0
    %vm2189 = vcmp.eq.s32.totalorder %v2125, 0
    %vm2190 = vcmp.eq.s32.totalorder %v2126, 0
    %vm2191 = vcmp.eq.s32.totalorder %v2127, 0
    %vm2192 = vcmp.eq.s32.totalorder %v2128, 0
    %vm2193 = vcmp.eq.s32.totalorder %v2129, 0
    %vm2194 = vcmp.eq.s32.totalorder %v2130, 0
    %vm2195 = vcmp.eq.s32.totalorder %v2131, 0
    %vm2196 = vcmp.eq.s32.totalorder %v2132, 0
    %vm2197 = vcmp.eq.s32.totalorder %v2133, 0
    %vm2198 = vcmp.eq.s32.totalorder %v2134, 0
    %vm2199 = vcmp.eq.s32.totalorder %v2135, 0
    %vm2200 = vcmp.eq.s32.totalorder %v2136, 0
    %vm2201 = vcmp.eq.s32.totalorder %v2137, 0
    %vm2202 = vcmp.eq.s32.totalorder %v2138, 0
    %vm2203 = vcmp.eq.s32.totalorder %v2139, 0
    %vm2204 = vcmp.eq.s32.totalorder %v2108, 63
    %vm2205 = vcmp.eq.s32.totalorder %v2109, 63
    %vm2206 = vcmp.eq.s32.totalorder %v2110, 63
    %vm2207 = vcmp.eq.s32.totalorder %v2111, 63
    %vm2208 = vcmp.eq.s32.totalorder %v2112, 63
    %vm2209 = vcmp.eq.s32.totalorder %v2113, 63
    %vm2210 = vcmp.eq.s32.totalorder %v2114, 63
    %vm2211 = vcmp.eq.s32.totalorder %v2115, 63
    %vm2212 = vcmp.eq.s32.totalorder %v2116, 63
    %vm2213 = vcmp.eq.s32.totalorder %v2117, 63
    %vm2214 = vcmp.eq.s32.totalorder %v2118, 63
    %vm2215 = vcmp.eq.s32.totalorder %v2119, 63
    %vm2216 = vcmp.eq.s32.totalorder %v2120, 63
    %vm2217 = vcmp.eq.s32.totalorder %v2121, 63
    %vm2218 = vcmp.eq.s32.totalorder %v2122, 63
    %vm2219 = vcmp.eq.s32.totalorder %v2123, 63
    %vm2220 = vcmp.eq.s32.totalorder %v2124, 63
    %vm2221 = vcmp.eq.s32.totalorder %v2125, 63
    %vm2222 = vcmp.eq.s32.totalorder %v2126, 63
    %vm2223 = vcmp.eq.s32.totalorder %v2127, 63
    %vm2224 = vcmp.eq.s32.totalorder %v2128, 63
    %vm2225 = vcmp.eq.s32.totalorder %v2129, 63
    %vm2226 = vcmp.eq.s32.totalorder %v2130, 63
    %vm2227 = vcmp.eq.s32.totalorder %v2131, 63
    %vm2228 = vcmp.eq.s32.totalorder %v2132, 63
    %vm2229 = vcmp.eq.s32.totalorder %v2133, 63
    %vm2230 = vcmp.eq.s32.totalorder %v2134, 63
    %vm2231 = vcmp.eq.s32.totalorder %v2135, 63
    %vm2232 = vcmp.eq.s32.totalorder %v2136, 63
    %vm2233 = vcmp.eq.s32.totalorder %v2137, 63
    %vm2234 = vcmp.eq.s32.totalorder %v2138, 63
    %vm2235 = vcmp.eq.s32.totalorder %v2139, 63
    %vm2236 = vcmp.eq.s32.totalorder %v2140, 0
    %vm2237 = vcmp.eq.s32.totalorder %v2141, 0
    %vm2238 = vcmp.eq.s32.totalorder %v2142, 0
    %vm2239 = vcmp.eq.s32.totalorder %v2143, 0
    %vm2240 = vcmp.eq.s32.totalorder %v2144, 0
    %vm2241 = vcmp.eq.s32.totalorder %v2145, 0
    %vm2242 = vcmp.eq.s32.totalorder %v2146, 0
    %vm2243 = vcmp.eq.s32.totalorder %v2147, 0
    %vm2244 = vcmp.eq.s32.totalorder %v2148, 0
    %vm2245 = vcmp.eq.s32.totalorder %v2149, 0
    %vm2246 = vcmp.eq.s32.totalorder %v2150, 0
    %vm2247 = vcmp.eq.s32.totalorder %v2151, 0
    %vm2248 = vcmp.eq.s32.totalorder %v2152, 0
    %vm2249 = vcmp.eq.s32.totalorder %v2153, 0
    %vm2250 = vcmp.eq.s32.totalorder %v2154, 0
    %vm2251 = vcmp.eq.s32.totalorder %v2155, 0
    %vm2252 = vcmp.eq.s32.totalorder %v2156, 0
    %vm2253 = vcmp.eq.s32.totalorder %v2157, 0
    %vm2254 = vcmp.eq.s32.totalorder %v2158, 0
    %vm2255 = vcmp.eq.s32.totalorder %v2159, 0
    %vm2256 = vcmp.eq.s32.totalorder %v2160, 0
    %vm2257 = vcmp.eq.s32.totalorder %v2161, 0
    %vm2258 = vcmp.eq.s32.totalorder %v2162, 0
    %vm2259 = vcmp.eq.s32.totalorder %v2163, 0
    %vm2260 = vcmp.eq.s32.totalorder %v2164, 0
    %vm2261 = vcmp.eq.s32.totalorder %v2165, 0
    %vm2262 = vcmp.eq.s32.totalorder %v2166, 0
    %vm2263 = vcmp.eq.s32.totalorder %v2167, 0
    %vm2264 = vcmp.eq.s32.totalorder %v2168, 0
    %vm2265 = vcmp.eq.s32.totalorder %v2169, 0
    %vm2266 = vcmp.eq.s32.totalorder %v2170, 0
    %vm2267 = vcmp.eq.s32.totalorder %v2171, 0
    %vm2268 = vcmp.eq.s32.totalorder %v2140, 63
    %vm2269 = vcmp.eq.s32.totalorder %v2141, 63
    %vm2270 = vcmp.eq.s32.totalorder %v2142, 63
    %vm2271 = vcmp.eq.s32.totalorder %v2143, 63
    %vm2272 = vcmp.eq.s32.totalorder %v2144, 63
    %vm2273 = vcmp.eq.s32.totalorder %v2145, 63
    %vm2274 = vcmp.eq.s32.totalorder %v2146, 63
    %vm2275 = vcmp.eq.s32.totalorder %v2147, 63
    %vm2276 = vcmp.eq.s32.totalorder %v2148, 63
    %vm2277 = vcmp.eq.s32.totalorder %v2149, 63
    %vm2278 = vcmp.eq.s32.totalorder %v2150, 63
    %vm2279 = vcmp.eq.s32.totalorder %v2151, 63
    %vm2280 = vcmp.eq.s32.totalorder %v2152, 63
    %vm2281 = vcmp.eq.s32.totalorder %v2153, 63
    %vm2282 = vcmp.eq.s32.totalorder %v2154, 63
    %vm2283 = vcmp.eq.s32.totalorder %v2155, 63
    %vm2284 = vcmp.eq.s32.totalorder %v2156, 63
    %vm2285 = vcmp.eq.s32.totalorder %v2157, 63
    %vm2286 = vcmp.eq.s32.totalorder %v2158, 63
    %vm2287 = vcmp.eq.s32.totalorder %v2159, 63
    %vm2288 = vcmp.eq.s32.totalorder %v2160, 63
    %vm2289 = vcmp.eq.s32.totalorder %v2161, 63
    %vm2290 = vcmp.eq.s32.totalorder %v2162, 63
    %vm2291 = vcmp.eq.s32.totalorder %v2163, 63
    %vm2292 = vcmp.eq.s32.totalorder %v2164, 63
    %vm2293 = vcmp.eq.s32.totalorder %v2165, 63
    %vm2294 = vcmp.eq.s32.totalorder %v2166, 63
    %vm2295 = vcmp.eq.s32.totalorder %v2167, 63
    %vm2296 = vcmp.eq.s32.totalorder %v2168, 63
    %vm2297 = vcmp.eq.s32.totalorder %v2169, 63
    %vm2298 = vcmp.eq.s32.totalorder %v2170, 63
    %vm2299 = vcmp.eq.s32.totalorder %v2171, 63
    %v2300 = vsub.f32 0.0, %v1998
    %v2301 = vsel %vm2172, 1, 0
    %v2302 = vsel %vm2173, 1, 0
    %v2303 = vsel %vm2174, 1, 0
    %v2304 = vsel %vm2175, 1, 0
    %v2305 = vsel %vm2176, 1, 0
    %v2306 = vsel %vm2177, 1, 0
    %v2307 = vsel %vm2178, 1, 0
    %v2308 = vsel %vm2179, 1, 0
    %v2309 = vsel %vm2180, 1, 0
    %v2310 = vsel %vm2181, 1, 0
    %v2311 = vsel %vm2182, 1, 0
    %v2312 = vsel %vm2183, 1, 0
    %v2313 = vsel %vm2184, 1, 0
    %v2314 = vsel %vm2185, 1, 0
    %v2315 = vsel %vm2186, 1, 0
    %v2316 = vsel %vm2187, 1, 0
    %v2317 = vsel %vm2188, 1, 0
    %v2318 = vsel %vm2189, 1, 0
    %v2319 = vsel %vm2190, 1, 0
    %v2320 = vsel %vm2191, 1, 0
    %v2321 = vsel %vm2192, 1, 0
    %v2322 = vsel %vm2193, 1, 0
    %v2323 = vsel %vm2194, 1, 0
    %v2324 = vsel %vm2195, 1, 0
    %v2325 = vsel %vm2196, 1, 0
    %v2326 = vsel %vm2197, 1, 0
    %v2327 = vsel %vm2198, 1, 0
    %v2328 = vsel %vm2199, 1, 0
    %v2329 = vsel %vm2200, 1, 0
    %v2330 = vsel %vm2201, 1, 0
    %v2331 = vsel %vm2202, 1, 0
    %v2332 = vsel %vm2203, 1, 0
    %vm2333 = vcmp.eq.s32.totalorder %v2301, 1
    %vm2334 = vcmp.eq.s32.totalorder %v2302, 1
    %vm2335 = vcmp.eq.s32.totalorder %v2303, 1
    %vm2336 = vcmp.eq.s32.totalorder %v2304, 1
    %vm2337 = vcmp.eq.s32.totalorder %v2305, 1
    %vm2338 = vcmp.eq.s32.totalorder %v2306, 1
    %vm2339 = vcmp.eq.s32.totalorder %v2307, 1
    %vm2340 = vcmp.eq.s32.totalorder %v2308, 1
    %vm2341 = vcmp.eq.s32.totalorder %v2309, 1
    %vm2342 = vcmp.eq.s32.totalorder %v2310, 1
    %vm2343 = vcmp.eq.s32.totalorder %v2311, 1
    %vm2344 = vcmp.eq.s32.totalorder %v2312, 1
    %vm2345 = vcmp.eq.s32.totalorder %v2313, 1
    %vm2346 = vcmp.eq.s32.totalorder %v2314, 1
    %vm2347 = vcmp.eq.s32.totalorder %v2315, 1
    %vm2348 = vcmp.eq.s32.totalorder %v2316, 1
    %vm2349 = vcmp.eq.s32.totalorder %v2317, 1
    %vm2350 = vcmp.eq.s32.totalorder %v2318, 1
    %vm2351 = vcmp.eq.s32.totalorder %v2319, 1
    %vm2352 = vcmp.eq.s32.totalorder %v2320, 1
    %vm2353 = vcmp.eq.s32.totalorder %v2321, 1
    %vm2354 = vcmp.eq.s32.totalorder %v2322, 1
    %vm2355 = vcmp.eq.s32.totalorder %v2323, 1
    %vm2356 = vcmp.eq.s32.totalorder %v2324, 1
    %vm2357 = vcmp.eq.s32.totalorder %v2325, 1
    %vm2358 = vcmp.eq.s32.totalorder %v2326, 1
    %vm2359 = vcmp.eq.s32.totalorder %v2327, 1
    %vm2360 = vcmp.eq.s32.totalorder %v2328, 1
    %vm2361 = vcmp.eq.s32.totalorder %v2329, 1
    %vm2362 = vcmp.eq.s32.totalorder %v2330, 1
    %vm2363 = vcmp.eq.s32.totalorder %v2331, 1
    %vm2364 = vcmp.eq.s32.totalorder %v2332, 1
    %2366 = vset.pattern.permute.xlu0 1
    %2367 = vperm.xlu0 %2366, %v2300
    %v2368 = vpop.permute.xlu0 %2367
    %v2370 = vsel %vm2333, %v2368, 0.0
    %v2371 = vsel %vm2334, %v2368, 0.0
    %v2372 = vsel %vm2335, %v2368, 0.0
    %v2373 = vsel %vm2336, %v2368, 0.0
    %v2374 = vsel %vm2337, %v2368, 0.0
    %v2375 = vsel %vm2338, %v2368, 0.0
    %v2376 = vsel %vm2339, %v2368, 0.0
    %v2377 = vsel %vm2340, %v2368, 0.0
    %v2378 = vsel %vm2341, %v2368, 0.0
    %v2379 = vsel %vm2342, %v2368, 0.0
    %v2380 = vsel %vm2343, %v2368, 0.0
    %v2381 = vsel %vm2344, %v2368, 0.0
    %v2382 = vsel %vm2345, %v2368, 0.0
    %v2383 = vsel %vm2346, %v2368, 0.0
    %v2384 = vsel %vm2347, %v2368, 0.0
    %v2385 = vsel %vm2348, %v2368, 0.0
    %v2386 = vsel %vm2349, %v2368, 0.0
    %v2387 = vsel %vm2350, %v2368, 0.0
    %v2388 = vsel %vm2351, %v2368, 0.0
    %v2389 = vsel %vm2352, %v2368, 0.0
    %v2390 = vsel %vm2353, %v2368, 0.0
    %v2391 = vsel %vm2354, %v2368, 0.0
    %v2392 = vsel %vm2355, %v2368, 0.0
    %v2393 = vsel %vm2356, %v2368, 0.0
    %v2394 = vsel %vm2357, %v2368, 0.0
    %v2395 = vsel %vm2358, %v2368, 0.0
    %v2396 = vsel %vm2359, %v2368, 0.0
    %v2397 = vsel %vm2360, %v2368, 0.0
    %v2398 = vsel %vm2361, %v2368, 0.0
    %v2399 = vsel %vm2362, %v2368, 0.0
    %v2400 = vsel %vm2363, %v2368, 0.0
    %v2401 = vsel %vm2364, %v2368, 0.0
    %v2402 = vsel %vm2204, 1, 0
    %v2403 = vsel %vm2205, 1, 0
    %v2404 = vsel %vm2206, 1, 0
    %v2405 = vsel %vm2207, 1, 0
    %v2406 = vsel %vm2208, 1, 0
    %v2407 = vsel %vm2209, 1, 0
    %v2408 = vsel %vm2210, 1, 0
    %v2409 = vsel %vm2211, 1, 0
    %v2410 = vsel %vm2212, 1, 0
    %v2411 = vsel %vm2213, 1, 0
    %v2412 = vsel %vm2214, 1, 0
    %v2413 = vsel %vm2215, 1, 0
    %v2414 = vsel %vm2216, 1, 0
    %v2415 = vsel %vm2217, 1, 0
    %v2416 = vsel %vm2218, 1, 0
    %v2417 = vsel %vm2219, 1, 0
    %v2418 = vsel %vm2220, 1, 0
    %v2419 = vsel %vm2221, 1, 0
    %v2420 = vsel %vm2222, 1, 0
    %v2421 = vsel %vm2223, 1, 0
    %v2422 = vsel %vm2224, 1, 0
    %v2423 = vsel %vm2225, 1, 0
    %v2424 = vsel %vm2226, 1, 0
    %v2425 = vsel %vm2227, 1, 0
    %v2426 = vsel %vm2228, 1, 0
    %v2427 = vsel %vm2229, 1, 0
    %v2428 = vsel %vm2230, 1, 0
    %v2429 = vsel %vm2231, 1, 0
    %v2430 = vsel %vm2232, 1, 0
    %v2431 = vsel %vm2233, 1, 0
    %v2432 = vsel %vm2234, 1, 0
    %v2433 = vsel %vm2235, 1, 0
    %vm2434 = vcmp.eq.s32.totalorder %v2402, 1
    %vm2435 = vcmp.eq.s32.totalorder %v2403, 1
    %vm2436 = vcmp.eq.s32.totalorder %v2404, 1
    %vm2437 = vcmp.eq.s32.totalorder %v2405, 1
    %vm2438 = vcmp.eq.s32.totalorder %v2406, 1
    %vm2439 = vcmp.eq.s32.totalorder %v2407, 1
    %vm2440 = vcmp.eq.s32.totalorder %v2408, 1
    %vm2441 = vcmp.eq.s32.totalorder %v2409, 1
    %vm2442 = vcmp.eq.s32.totalorder %v2410, 1
    %vm2443 = vcmp.eq.s32.totalorder %v2411, 1
    %vm2444 = vcmp.eq.s32.totalorder %v2412, 1
    %vm2445 = vcmp.eq.s32.totalorder %v2413, 1
    %vm2446 = vcmp.eq.s32.totalorder %v2414, 1
    %vm2447 = vcmp.eq.s32.totalorder %v2415, 1
    %vm2448 = vcmp.eq.s32.totalorder %v2416, 1
    %vm2449 = vcmp.eq.s32.totalorder %v2417, 1
    %vm2450 = vcmp.eq.s32.totalorder %v2418, 1
    %vm2451 = vcmp.eq.s32.totalorder %v2419, 1
    %vm2452 = vcmp.eq.s32.totalorder %v2420, 1
    %vm2453 = vcmp.eq.s32.totalorder %v2421, 1
    %vm2454 = vcmp.eq.s32.totalorder %v2422, 1
    %vm2455 = vcmp.eq.s32.totalorder %v2423, 1
    %vm2456 = vcmp.eq.s32.totalorder %v2424, 1
    %vm2457 = vcmp.eq.s32.totalorder %v2425, 1
    %vm2458 = vcmp.eq.s32.totalorder %v2426, 1
    %vm2459 = vcmp.eq.s32.totalorder %v2427, 1
    %vm2460 = vcmp.eq.s32.totalorder %v2428, 1
    %vm2461 = vcmp.eq.s32.totalorder %v2429, 1
    %vm2462 = vcmp.eq.s32.totalorder %v2430, 1
    %vm2463 = vcmp.eq.s32.totalorder %v2431, 1
    %vm2464 = vcmp.eq.s32.totalorder %v2432, 1
    %vm2465 = vcmp.eq.s32.totalorder %v2433, 1
    %2466 = vset.pattern.permute.xlu0 2
    %2467 = vperm.xlu0 %2466, %v2300
    %v2468 = vpop.permute.xlu0 %2467
    %v2470 = vsel %vm2434, %v2468, 0.0
    %v2471 = vsel %vm2435, %v2468, 0.0
    %v2472 = vsel %vm2436, %v2468, 0.0
    %v2473 = vsel %vm2437, %v2468, 0.0
    %v2474 = vsel %vm2438, %v2468, 0.0
    %v2475 = vsel %vm2439, %v2468, 0.0
    %v2476 = vsel %vm2440, %v2468, 0.0
    %v2477 = vsel %vm2441, %v2468, 0.0
    %v2478 = vsel %vm2442, %v2468, 0.0
    %v2479 = vsel %vm2443, %v2468, 0.0
    %v2480 = vsel %vm2444, %v2468, 0.0
    %v2481 = vsel %vm2445, %v2468, 0.0
    %v2482 = vsel %vm2446, %v2468, 0.0
    %v2483 = vsel %vm2447, %v2468, 0.0
    %v2484 = vsel %vm2448, %v2468, 0.0
    %v2485 = vsel %vm2449, %v2468, 0.0
    %v2486 = vsel %vm2450, %v2468, 0.0
    %v2487 = vsel %vm2451, %v2468, 0.0
    %v2488 = vsel %vm2452, %v2468, 0.0
    %v2489 = vsel %vm2453, %v2468, 0.0
    %v2490 = vsel %vm2454, %v2468, 0.0
    %v2491 = vsel %vm2455, %v2468, 0.0
    %v2492 = vsel %vm2456, %v2468, 0.0
    %v2493 = vsel %vm2457, %v2468, 0.0
    %v2494 = vsel %vm2458, %v2468, 0.0
    %v2495 = vsel %vm2459, %v2468, 0.0
    %v2496 = vsel %vm2460, %v2468, 0.0
    %v2497 = vsel %vm2461, %v2468, 0.0
    %v2498 = vsel %vm2462, %v2468, 0.0
    %v2499 = vsel %vm2463, %v2468, 0.0
    %v2500 = vsel %vm2464, %v2468, 0.0
    %v2501 = vsel %vm2465, %v2468, 0.0
    %v2502 = vadd.f32 %v2370, %v2470
    %v2503 = vadd.f32 %v2371, %v2471
    %v2504 = vadd.f32 %v2372, %v2472
    %v2505 = vadd.f32 %v2373, %v2473
    %v2506 = vadd.f32 %v2374, %v2474
    %v2507 = vadd.f32 %v2375, %v2475
    %v2508 = vadd.f32 %v2376, %v2476
    %v2509 = vadd.f32 %v2377, %v2477
    %v2510 = vadd.f32 %v2378, %v2478
    %v2511 = vadd.f32 %v2379, %v2479
    %v2512 = vadd.f32 %v2380, %v2480
    %v2513 = vadd.f32 %v2381, %v2481
    %v2514 = vadd.f32 %v2382, %v2482
    %v2515 = vadd.f32 %v2383, %v2483
    %v2516 = vadd.f32 %v2384, %v2484
    %v2517 = vadd.f32 %v2385, %v2485
    %v2518 = vadd.f32 %v2386, %v2486
    %v2519 = vadd.f32 %v2387, %v2487
    %v2520 = vadd.f32 %v2388, %v2488
    %v2521 = vadd.f32 %v2389, %v2489
    %v2522 = vadd.f32 %v2390, %v2490
    %v2523 = vadd.f32 %v2391, %v2491
    %v2524 = vadd.f32 %v2392, %v2492
    %v2525 = vadd.f32 %v2393, %v2493
    %v2526 = vadd.f32 %v2394, %v2494
    %v2527 = vadd.f32 %v2395, %v2495
    %v2528 = vadd.f32 %v2396, %v2496
    %v2529 = vadd.f32 %v2397, %v2497
    %v2530 = vadd.f32 %v2398, %v2498
    %v2531 = vadd.f32 %v2399, %v2499
    %v2532 = vadd.f32 %v2400, %v2500
    %v2533 = vadd.f32 %v2401, %v2501
    %v2534 = vsel %vm2236, 1, 0
    %v2535 = vsel %vm2237, 1, 0
    %v2536 = vsel %vm2238, 1, 0
    %v2537 = vsel %vm2239, 1, 0
    %v2538 = vsel %vm2240, 1, 0
    %v2539 = vsel %vm2241, 1, 0
    %v2540 = vsel %vm2242, 1, 0
    %v2541 = vsel %vm2243, 1, 0
    %v2542 = vsel %vm2244, 1, 0
    %v2543 = vsel %vm2245, 1, 0
    %v2544 = vsel %vm2246, 1, 0
    %v2545 = vsel %vm2247, 1, 0
    %v2546 = vsel %vm2248, 1, 0
    %v2547 = vsel %vm2249, 1, 0
    %v2548 = vsel %vm2250, 1, 0
    %v2549 = vsel %vm2251, 1, 0
    %v2550 = vsel %vm2252, 1, 0
    %v2551 = vsel %vm2253, 1, 0
    %v2552 = vsel %vm2254, 1, 0
    %v2553 = vsel %vm2255, 1, 0
    %v2554 = vsel %vm2256, 1, 0
    %v2555 = vsel %vm2257, 1, 0
    %v2556 = vsel %vm2258, 1, 0
    %v2557 = vsel %vm2259, 1, 0
    %v2558 = vsel %vm2260, 1, 0
    %v2559 = vsel %vm2261, 1, 0
    %v2560 = vsel %vm2262, 1, 0
    %v2561 = vsel %vm2263, 1, 0
    %v2562 = vsel %vm2264, 1, 0
    %v2563 = vsel %vm2265, 1, 0
    %v2564 = vsel %vm2266, 1, 0
    %v2565 = vsel %vm2267, 1, 0
    %vm2566 = vcmp.eq.s32.totalorder %v2534, 1
    %vm2567 = vcmp.eq.s32.totalorder %v2535, 1
    %vm2568 = vcmp.eq.s32.totalorder %v2536, 1
    %vm2569 = vcmp.eq.s32.totalorder %v2537, 1
    %vm2570 = vcmp.eq.s32.totalorder %v2538, 1
    %vm2571 = vcmp.eq.s32.totalorder %v2539, 1
    %vm2572 = vcmp.eq.s32.totalorder %v2540, 1
    %vm2573 = vcmp.eq.s32.totalorder %v2541, 1
    %vm2574 = vcmp.eq.s32.totalorder %v2542, 1
    %vm2575 = vcmp.eq.s32.totalorder %v2543, 1
    %vm2576 = vcmp.eq.s32.totalorder %v2544, 1
    %vm2577 = vcmp.eq.s32.totalorder %v2545, 1
    %vm2578 = vcmp.eq.s32.totalorder %v2546, 1
    %vm2579 = vcmp.eq.s32.totalorder %v2547, 1
    %vm2580 = vcmp.eq.s32.totalorder %v2548, 1
    %vm2581 = vcmp.eq.s32.totalorder %v2549, 1
    %vm2582 = vcmp.eq.s32.totalorder %v2550, 1
    %vm2583 = vcmp.eq.s32.totalorder %v2551, 1
    %vm2584 = vcmp.eq.s32.totalorder %v2552, 1
    %vm2585 = vcmp.eq.s32.totalorder %v2553, 1
    %vm2586 = vcmp.eq.s32.totalorder %v2554, 1
    %vm2587 = vcmp.eq.s32.totalorder %v2555, 1
    %vm2588 = vcmp.eq.s32.totalorder %v2556, 1
    %vm2589 = vcmp.eq.s32.totalorder %v2557, 1
    %vm2590 = vcmp.eq.s32.totalorder %v2558, 1
    %vm2591 = vcmp.eq.s32.totalorder %v2559, 1
    %vm2592 = vcmp.eq.s32.totalorder %v2560, 1
    %vm2593 = vcmp.eq.s32.totalorder %v2561, 1
    %vm2594 = vcmp.eq.s32.totalorder %v2562, 1
    %vm2595 = vcmp.eq.s32.totalorder %v2563, 1
    %vm2596 = vcmp.eq.s32.totalorder %v2564, 1
    %vm2597 = vcmp.eq.s32.totalorder %v2565, 1
    %2598 = vset.pattern.permute.xlu0 3
    %2599 = vperm.xlu0 %2598, %v2300
    %v2600 = vpop.permute.xlu0 %2599
    %v2602 = vsel %vm2566, %v2600, 0.0
    %v2603 = vsel %vm2567, %v2600, 0.0
    %v2604 = vsel %vm2568, %v2600, 0.0
    %v2605 = vsel %vm2569, %v2600, 0.0
    %v2606 = vsel %vm2570, %v2600, 0.0
    %v2607 = vsel %vm2571, %v2600, 0.0
    %v2608 = vsel %vm2572, %v2600, 0.0
    %v2609 = vsel %vm2573, %v2600, 0.0
    %v2610 = vsel %vm2574, %v2600, 0.0
    %v2611 = vsel %vm2575, %v2600, 0.0
    %v2612 = vsel %vm2576, %v2600, 0.0
    %v2613 = vsel %vm2577, %v2600, 0.0
    %v2614 = vsel %vm2578, %v2600, 0.0
    %v2615 = vsel %vm2579, %v2600, 0.0
    %v2616 = vsel %vm2580, %v2600, 0.0
    %v2617 = vsel %vm2581, %v2600, 0.0
    %v2618 = vsel %vm2582, %v2600, 0.0
    %v2619 = vsel %vm2583, %v2600, 0.0
    %v2620 = vsel %vm2584, %v2600, 0.0
    %v2621 = vsel %vm2585, %v2600, 0.0
    %v2622 = vsel %vm2586, %v2600, 0.0
    %v2623 = vsel %vm2587, %v2600, 0.0
    %v2624 = vsel %vm2588, %v2600, 0.0
    %v2625 = vsel %vm2589, %v2600, 0.0
    %v2626 = vsel %vm2590, %v2600, 0.0
    %v2627 = vsel %vm2591, %v2600, 0.0
    %v2628 = vsel %vm2592, %v2600, 0.0
    %v2629 = vsel %vm2593, %v2600, 0.0
    %v2630 = vsel %vm2594, %v2600, 0.0
    %v2631 = vsel %vm2595, %v2600, 0.0
    %v2632 = vsel %vm2596, %v2600, 0.0
    %v2633 = vsel %vm2597, %v2600, 0.0
    %v2634 = vadd.f32 %v2502, %v2602
    %v2635 = vadd.f32 %v2503, %v2603
    %v2636 = vadd.f32 %v2504, %v2604
    %v2637 = vadd.f32 %v2505, %v2605
    %v2638 = vadd.f32 %v2506, %v2606
    %v2639 = vadd.f32 %v2507, %v2607
    %v2640 = vadd.f32 %v2508, %v2608
    %v2641 = vadd.f32 %v2509, %v2609
    %v2642 = vadd.f32 %v2510, %v2610
    %v2643 = vadd.f32 %v2511, %v2611
    %v2644 = vadd.f32 %v2512, %v2612
    %v2645 = vadd.f32 %v2513, %v2613
    %v2646 = vadd.f32 %v2514, %v2614
    %v2647 = vadd.f32 %v2515, %v2615
    %v2648 = vadd.f32 %v2516, %v2616
    %v2649 = vadd.f32 %v2517, %v2617
    %v2650 = vadd.f32 %v2518, %v2618
    %v2651 = vadd.f32 %v2519, %v2619
    %v2652 = vadd.f32 %v2520, %v2620
    %v2653 = vadd.f32 %v2521, %v2621
    %v2654 = vadd.f32 %v2522, %v2622
    %v2655 = vadd.f32 %v2523, %v2623
    %v2656 = vadd.f32 %v2524, %v2624
    %v2657 = vadd.f32 %v2525, %v2625
    %v2658 = vadd.f32 %v2526, %v2626
    %v2659 = vadd.f32 %v2527, %v2627
    %v2660 = vadd.f32 %v2528, %v2628
    %v2661 = vadd.f32 %v2529, %v2629
    %v2662 = vadd.f32 %v2530, %v2630
    %v2663 = vadd.f32 %v2531, %v2631
    %v2664 = vadd.f32 %v2532, %v2632
    %v2665 = vadd.f32 %v2533, %v2633
    %v2666 = vsel %vm2268, 1, 0
    %v2667 = vsel %vm2269, 1, 0
    %v2668 = vsel %vm2270, 1, 0
    %v2669 = vsel %vm2271, 1, 0
    %v2670 = vsel %vm2272, 1, 0
    %v2671 = vsel %vm2273, 1, 0
    %v2672 = vsel %vm2274, 1, 0
    %v2673 = vsel %vm2275, 1, 0
    %v2674 = vsel %vm2276, 1, 0
    %v2675 = vsel %vm2277, 1, 0
    %v2676 = vsel %vm2278, 1, 0
    %v2677 = vsel %vm2279, 1, 0
    %v2678 = vsel %vm2280, 1, 0
    %v2679 = vsel %vm2281, 1, 0
    %v2680 = vsel %vm2282, 1, 0
    %v2681 = vsel %vm2283, 1, 0
    %v2682 = vsel %vm2284, 1, 0
    %v2683 = vsel %vm2285, 1, 0
    %v2684 = vsel %vm2286, 1, 0
    %v2685 = vsel %vm2287, 1, 0
    %v2686 = vsel %vm2288, 1, 0
    %v2687 = vsel %vm2289, 1, 0
    %v2688 = vsel %vm2290, 1, 0
    %v2689 = vsel %vm2291, 1, 0
    %v2690 = vsel %vm2292, 1, 0
    %v2691 = vsel %vm2293, 1, 0
    %v2692 = vsel %vm2294, 1, 0
    %v2693 = vsel %vm2295, 1, 0
    %v2694 = vsel %vm2296, 1, 0
    %v2695 = vsel %vm2297, 1, 0
    %v2696 = vsel %vm2298, 1, 0
    %v2697 = vsel %vm2299, 1, 0
    %vm2698 = vcmp.eq.s32.totalorder %v2666, 1
    %vm2699 = vcmp.eq.s32.totalorder %v2667, 1
    %vm2700 = vcmp.eq.s32.totalorder %v2668, 1
    %vm2701 = vcmp.eq.s32.totalorder %v2669, 1
    %vm2702 = vcmp.eq.s32.totalorder %v2670, 1
    %vm2703 = vcmp.eq.s32.totalorder %v2671, 1
    %vm2704 = vcmp.eq.s32.totalorder %v2672, 1
    %vm2705 = vcmp.eq.s32.totalorder %v2673, 1
    %vm2706 = vcmp.eq.s32.totalorder %v2674, 1
    %vm2707 = vcmp.eq.s32.totalorder %v2675, 1
    %vm2708 = vcmp.eq.s32.totalorder %v2676, 1
    %vm2709 = vcmp.eq.s32.totalorder %v2677, 1
    %vm2710 = vcmp.eq.s32.totalorder %v2678, 1
    %vm2711 = vcmp.eq.s32.totalorder %v2679, 1
    %vm2712 = vcmp.eq.s32.totalorder %v2680, 1
    %vm2713 = vcmp.eq.s32.totalorder %v2681, 1
    %vm2714 = vcmp.eq.s32.totalorder %v2682, 1
    %vm2715 = vcmp.eq.s32.totalorder %v2683, 1
    %vm2716 = vcmp.eq.s32.totalorder %v2684, 1
    %vm2717 = vcmp.eq.s32.totalorder %v2685, 1
    %vm2718 = vcmp.eq.s32.totalorder %v2686, 1
    %vm2719 = vcmp.eq.s32.totalorder %v2687, 1
    %vm2720 = vcmp.eq.s32.totalorder %v2688, 1
    %vm2721 = vcmp.eq.s32.totalorder %v2689, 1
    %vm2722 = vcmp.eq.s32.totalorder %v2690, 1
    %vm2723 = vcmp.eq.s32.totalorder %v2691, 1
    %vm2724 = vcmp.eq.s32.totalorder %v2692, 1
    %vm2725 = vcmp.eq.s32.totalorder %v2693, 1
    %vm2726 = vcmp.eq.s32.totalorder %v2694, 1
    %vm2727 = vcmp.eq.s32.totalorder %v2695, 1
    %vm2728 = vcmp.eq.s32.totalorder %v2696, 1
    %vm2729 = vcmp.eq.s32.totalorder %v2697, 1
    %2730 = vset.pattern.permute.xlu0 4
    %2731 = vperm.xlu0 %2730, %v2300
    %v2732 = vpop.permute.xlu0 %2731
    %v2734 = vsel %vm2698, %v2732, 0.0
    %v2735 = vsel %vm2699, %v2732, 0.0
    %v2736 = vsel %vm2700, %v2732, 0.0
    %v2737 = vsel %vm2701, %v2732, 0.0
    %v2738 = vsel %vm2702, %v2732, 0.0
    %v2739 = vsel %vm2703, %v2732, 0.0
    %v2740 = vsel %vm2704, %v2732, 0.0
    %v2741 = vsel %vm2705, %v2732, 0.0
    %v2742 = vsel %vm2706, %v2732, 0.0
    %v2743 = vsel %vm2707, %v2732, 0.0
    %v2744 = vsel %vm2708, %v2732, 0.0
    %v2745 = vsel %vm2709, %v2732, 0.0
    %v2746 = vsel %vm2710, %v2732, 0.0
    %v2747 = vsel %vm2711, %v2732, 0.0
    %v2748 = vsel %vm2712, %v2732, 0.0
    %v2749 = vsel %vm2713, %v2732, 0.0
    %v2750 = vsel %vm2714, %v2732, 0.0
    %v2751 = vsel %vm2715, %v2732, 0.0
    %v2752 = vsel %vm2716, %v2732, 0.0
    %v2753 = vsel %vm2717, %v2732, 0.0
    %v2754 = vsel %vm2718, %v2732, 0.0
    %v2755 = vsel %vm2719, %v2732, 0.0
    %v2756 = vsel %vm2720, %v2732, 0.0
    %v2757 = vsel %vm2721, %v2732, 0.0
    %v2758 = vsel %vm2722, %v2732, 0.0
    %v2759 = vsel %vm2723, %v2732, 0.0
    %v2760 = vsel %vm2724, %v2732, 0.0
    %v2761 = vsel %vm2725, %v2732, 0.0
    %v2762 = vsel %vm2726, %v2732, 0.0
    %v2763 = vsel %vm2727, %v2732, 0.0
    %v2764 = vsel %vm2728, %v2732, 0.0
    %v2765 = vsel %vm2729, %v2732, 0.0
    %v2766 = vadd.f32 %v2634, %v2734
    %v2767 = vadd.f32 %v2635, %v2735
    %v2768 = vadd.f32 %v2636, %v2736
    %v2769 = vadd.f32 %v2637, %v2737
    %v2770 = vadd.f32 %v2638, %v2738
    %v2771 = vadd.f32 %v2639, %v2739
    %v2772 = vadd.f32 %v2640, %v2740
    %v2773 = vadd.f32 %v2641, %v2741
    %v2774 = vadd.f32 %v2642, %v2742
    %v2775 = vadd.f32 %v2643, %v2743
    %v2776 = vadd.f32 %v2644, %v2744
    %v2777 = vadd.f32 %v2645, %v2745
    %v2778 = vadd.f32 %v2646, %v2746
    %v2779 = vadd.f32 %v2647, %v2747
    %v2780 = vadd.f32 %v2648, %v2748
    %v2781 = vadd.f32 %v2649, %v2749
    %v2782 = vadd.f32 %v2650, %v2750
    %v2783 = vadd.f32 %v2651, %v2751
    %v2784 = vadd.f32 %v2652, %v2752
    %v2785 = vadd.f32 %v2653, %v2753
    %v2786 = vadd.f32 %v2654, %v2754
    %v2787 = vadd.f32 %v2655, %v2755
    %v2788 = vadd.f32 %v2656, %v2756
    %v2789 = vadd.f32 %v2657, %v2757
    %v2790 = vadd.f32 %v2658, %v2758
    %v2791 = vadd.f32 %v2659, %v2759
    %v2792 = vadd.f32 %v2660, %v2760
    %v2793 = vadd.f32 %v2661, %v2761
    %v2794 = vadd.f32 %v2662, %v2762
    %v2795 = vadd.f32 %v2663, %v2763
    %v2796 = vadd.f32 %v2664, %v2764
    %v2797 = vadd.f32 %v2665, %v2765
    %vm2798 = vmand %vm2172, %vm2236
    %vm2799 = vmand %vm2173, %vm2237
    %vm2800 = vmand %vm2174, %vm2238
    %vm2801 = vmand %vm2175, %vm2239
    %vm2802 = vmand %vm2176, %vm2240
    %vm2803 = vmand %vm2177, %vm2241
    %vm2804 = vmand %vm2178, %vm2242
    %vm2805 = vmand %vm2179, %vm2243
    %vm2806 = vmand %vm2180, %vm2244
    %vm2807 = vmand %vm2181, %vm2245
    %vm2808 = vmand %vm2182, %vm2246
    %vm2809 = vmand %vm2183, %vm2247
    %vm2810 = vmand %vm2184, %vm2248
    %vm2811 = vmand %vm2185, %vm2249
    %vm2812 = vmand %vm2186, %vm2250
    %vm2813 = vmand %vm2187, %vm2251
    %vm2814 = vmand %vm2188, %vm2252
    %vm2815 = vmand %vm2189, %vm2253
    %vm2816 = vmand %vm2190, %vm2254
    %vm2817 = vmand %vm2191, %vm2255
    %vm2818 = vmand %vm2192, %vm2256
    %vm2819 = vmand %vm2193, %vm2257
    %vm2820 = vmand %vm2194, %vm2258
    %vm2821 = vmand %vm2195, %vm2259
    %vm2822 = vmand %vm2196, %vm2260
    %vm2823 = vmand %vm2197, %vm2261
    %vm2824 = vmand %vm2198, %vm2262
    %vm2825 = vmand %vm2199, %vm2263
    %vm2826 = vmand %vm2200, %vm2264
    %vm2827 = vmand %vm2201, %vm2265
    %vm2828 = vmand %vm2202, %vm2266
    %vm2829 = vmand %vm2203, %vm2267
    %v2830 = vsel %vm2798, 1, 0
    %v2831 = vsel %vm2799, 1, 0
    %v2832 = vsel %vm2800, 1, 0
    %v2833 = vsel %vm2801, 1, 0
    %v2834 = vsel %vm2802, 1, 0
    %v2835 = vsel %vm2803, 1, 0
    %v2836 = vsel %vm2804, 1, 0
    %v2837 = vsel %vm2805, 1, 0
    %v2838 = vsel %vm2806, 1, 0
    %v2839 = vsel %vm2807, 1, 0
    %v2840 = vsel %vm2808, 1, 0
    %v2841 = vsel %vm2809, 1, 0
    %v2842 = vsel %vm2810, 1, 0
    %v2843 = vsel %vm2811, 1, 0
    %v2844 = vsel %vm2812, 1, 0
    %v2845 = vsel %vm2813, 1, 0
    %v2846 = vsel %vm2814, 1, 0
    %v2847 = vsel %vm2815, 1, 0
    %v2848 = vsel %vm2816, 1, 0
    %v2849 = vsel %vm2817, 1, 0
    %v2850 = vsel %vm2818, 1, 0
    %v2851 = vsel %vm2819, 1, 0
    %v2852 = vsel %vm2820, 1, 0
    %v2853 = vsel %vm2821, 1, 0
    %v2854 = vsel %vm2822, 1, 0
    %v2855 = vsel %vm2823, 1, 0
    %v2856 = vsel %vm2824, 1, 0
    %v2857 = vsel %vm2825, 1, 0
    %v2858 = vsel %vm2826, 1, 0
    %v2859 = vsel %vm2827, 1, 0
    %v2860 = vsel %vm2828, 1, 0
    %v2861 = vsel %vm2829, 1, 0
    %vm2862 = vcmp.eq.s32.totalorder %v2830, 1
    %vm2863 = vcmp.eq.s32.totalorder %v2831, 1
    %vm2864 = vcmp.eq.s32.totalorder %v2832, 1
    %vm2865 = vcmp.eq.s32.totalorder %v2833, 1
    %vm2866 = vcmp.eq.s32.totalorder %v2834, 1
    %vm2867 = vcmp.eq.s32.totalorder %v2835, 1
    %vm2868 = vcmp.eq.s32.totalorder %v2836, 1
    %vm2869 = vcmp.eq.s32.totalorder %v2837, 1
    %vm2870 = vcmp.eq.s32.totalorder %v2838, 1
    %vm2871 = vcmp.eq.s32.totalorder %v2839, 1
    %vm2872 = vcmp.eq.s32.totalorder %v2840, 1
    %vm2873 = vcmp.eq.s32.totalorder %v2841, 1
    %vm2874 = vcmp.eq.s32.totalorder %v2842, 1
    %vm2875 = vcmp.eq.s32.totalorder %v2843, 1
    %vm2876 = vcmp.eq.s32.totalorder %v2844, 1
    %vm2877 = vcmp.eq.s32.totalorder %v2845, 1
    %vm2878 = vcmp.eq.s32.totalorder %v2846, 1
    %vm2879 = vcmp.eq.s32.totalorder %v2847, 1
    %vm2880 = vcmp.eq.s32.totalorder %v2848, 1
    %vm2881 = vcmp.eq.s32.totalorder %v2849, 1
    %vm2882 = vcmp.eq.s32.totalorder %v2850, 1
    %vm2883 = vcmp.eq.s32.totalorder %v2851, 1
    %vm2884 = vcmp.eq.s32.totalorder %v2852, 1
    %vm2885 = vcmp.eq.s32.totalorder %v2853, 1
    %vm2886 = vcmp.eq.s32.totalorder %v2854, 1
    %vm2887 = vcmp.eq.s32.totalorder %v2855, 1
    %vm2888 = vcmp.eq.s32.totalorder %v2856, 1
    %vm2889 = vcmp.eq.s32.totalorder %v2857, 1
    %vm2890 = vcmp.eq.s32.totalorder %v2858, 1
    %vm2891 = vcmp.eq.s32.totalorder %v2859, 1
    %vm2892 = vcmp.eq.s32.totalorder %v2860, 1
    %vm2893 = vcmp.eq.s32.totalorder %v2861, 1
    %2894 = vset.pattern.permute.xlu0 5
    %2895 = vperm.xlu0 %2894, %v1998
    %v2896 = vpop.permute.xlu0 %2895
    %v2898 = vsel %vm2862, %v2896, 0.0
    %v2899 = vsel %vm2863, %v2896, 0.0
    %v2900 = vsel %vm2864, %v2896, 0.0
    %v2901 = vsel %vm2865, %v2896, 0.0
    %v2902 = vsel %vm2866, %v2896, 0.0
    %v2903 = vsel %vm2867, %v2896, 0.0
    %v2904 = vsel %vm2868, %v2896, 0.0
    %v2905 = vsel %vm2869, %v2896, 0.0
    %v2906 = vsel %vm2870, %v2896, 0.0
    %v2907 = vsel %vm2871, %v2896, 0.0
    %v2908 = vsel %vm2872, %v2896, 0.0
    %v2909 = vsel %vm2873, %v2896, 0.0
    %v2910 = vsel %vm2874, %v2896, 0.0
    %v2911 = vsel %vm2875, %v2896, 0.0
    %v2912 = vsel %vm2876, %v2896, 0.0
    %v2913 = vsel %vm2877, %v2896, 0.0
    %v2914 = vsel %vm2878, %v2896, 0.0
    %v2915 = vsel %vm2879, %v2896, 0.0
    %v2916 = vsel %vm2880, %v2896, 0.0
    %v2917 = vsel %vm2881, %v2896, 0.0
    %v2918 = vsel %vm2882, %v2896, 0.0
    %v2919 = vsel %vm2883, %v2896, 0.0
    %v2920 = vsel %vm2884, %v2896, 0.0
    %v2921 = vsel %vm2885, %v2896, 0.0
    %v2922 = vsel %vm2886, %v2896, 0.0
    %v2923 = vsel %vm2887, %v2896, 0.0
    %v2924 = vsel %vm2888, %v2896, 0.0
    %v2925 = vsel %vm2889, %v2896, 0.0
    %v2926 = vsel %vm2890, %v2896, 0.0
    %v2927 = vsel %vm2891, %v2896, 0.0
    %v2928 = vsel %vm2892, %v2896, 0.0
    %v2929 = vsel %vm2893, %v2896, 0.0
    %v2930 = vadd.f32 %v2766, %v2898
    %v2931 = vadd.f32 %v2767, %v2899
    %v2932 = vadd.f32 %v2768, %v2900
    %v2933 = vadd.f32 %v2769, %v2901
    %v2934 = vadd.f32 %v2770, %v2902
    %v2935 = vadd.f32 %v2771, %v2903
    %v2936 = vadd.f32 %v2772, %v2904
    %v2937 = vadd.f32 %v2773, %v2905
    %v2938 = vadd.f32 %v2774, %v2906
    %v2939 = vadd.f32 %v2775, %v2907
    %v2940 = vadd.f32 %v2776, %v2908
    %v2941 = vadd.f32 %v2777, %v2909
    %v2942 = vadd.f32 %v2778, %v2910
    %v2943 = vadd.f32 %v2779, %v2911
    %v2944 = vadd.f32 %v2780, %v2912
    %v2945 = vadd.f32 %v2781, %v2913
    %v2946 = vadd.f32 %v2782, %v2914
    %v2947 = vadd.f32 %v2783, %v2915
    %v2948 = vadd.f32 %v2784, %v2916
    %v2949 = vadd.f32 %v2785, %v2917
    %v2950 = vadd.f32 %v2786, %v2918
    %v2951 = vadd.f32 %v2787, %v2919
    %v2952 = vadd.f32 %v2788, %v2920
    %v2953 = vadd.f32 %v2789, %v2921
    %v2954 = vadd.f32 %v2790, %v2922
    %v2955 = vadd.f32 %v2791, %v2923
    %v2956 = vadd.f32 %v2792, %v2924
    %v2957 = vadd.f32 %v2793, %v2925
    %v2958 = vadd.f32 %v2794, %v2926
    %v2959 = vadd.f32 %v2795, %v2927
    %v2960 = vadd.f32 %v2796, %v2928
    %v2961 = vadd.f32 %v2797, %v2929
    %vm2962 = vmand %vm2172, %vm2268
    %vm2963 = vmand %vm2173, %vm2269
    %vm2964 = vmand %vm2174, %vm2270
    %vm2965 = vmand %vm2175, %vm2271
    %vm2966 = vmand %vm2176, %vm2272
    %vm2967 = vmand %vm2177, %vm2273
    %vm2968 = vmand %vm2178, %vm2274
    %vm2969 = vmand %vm2179, %vm2275
    %vm2970 = vmand %vm2180, %vm2276
    %vm2971 = vmand %vm2181, %vm2277
    %vm2972 = vmand %vm2182, %vm2278
    %vm2973 = vmand %vm2183, %vm2279
    %vm2974 = vmand %vm2184, %vm2280
    %vm2975 = vmand %vm2185, %vm2281
    %vm2976 = vmand %vm2186, %vm2282
    %vm2977 = vmand %vm2187, %vm2283
    %vm2978 = vmand %vm2188, %vm2284
    %vm2979 = vmand %vm2189, %vm2285
    %vm2980 = vmand %vm2190, %vm2286
    %vm2981 = vmand %vm2191, %vm2287
    %vm2982 = vmand %vm2192, %vm2288
    %vm2983 = vmand %vm2193, %vm2289
    %vm2984 = vmand %vm2194, %vm2290
    %vm2985 = vmand %vm2195, %vm2291
    %vm2986 = vmand %vm2196, %vm2292
    %vm2987 = vmand %vm2197, %vm2293
    %vm2988 = vmand %vm2198, %vm2294
    %vm2989 = vmand %vm2199, %vm2295
    %vm2990 = vmand %vm2200, %vm2296
    %vm2991 = vmand %vm2201, %vm2297
    %vm2992 = vmand %vm2202, %vm2298
    %vm2993 = vmand %vm2203, %vm2299
    %v2994 = vsel %vm2962, 1, 0
    %v2995 = vsel %vm2963, 1, 0
    %v2996 = vsel %vm2964, 1, 0
    %v2997 = vsel %vm2965, 1, 0
    %v2998 = vsel %vm2966, 1, 0
    %v2999 = vsel %vm2967, 1, 0
    %v3000 = vsel %vm2968, 1, 0
    %v3001 = vsel %vm2969, 1, 0
    %v3002 = vsel %vm2970, 1, 0
    %v3003 = vsel %vm2971, 1, 0
    %v3004 = vsel %vm2972, 1, 0
    %v3005 = vsel %vm2973, 1, 0
    %v3006 = vsel %vm2974, 1, 0
    %v3007 = vsel %vm2975, 1, 0
    %v3008 = vsel %vm2976, 1, 0
    %v3009 = vsel %vm2977, 1, 0
    %v3010 = vsel %vm2978, 1, 0
    %v3011 = vsel %vm2979, 1, 0
    %v3012 = vsel %vm2980, 1, 0
    %v3013 = vsel %vm2981, 1, 0
    %v3014 = vsel %vm2982, 1, 0
    %v3015 = vsel %vm2983, 1, 0
    %v3016 = vsel %vm2984, 1, 0
    %v3017 = vsel %vm2985, 1, 0
    %v3018 = vsel %vm2986, 1, 0
    %v3019 = vsel %vm2987, 1, 0
    %v3020 = vsel %vm2988, 1, 0
    %v3021 = vsel %vm2989, 1, 0
    %v3022 = vsel %vm2990, 1, 0
    %v3023 = vsel %vm2991, 1, 0
    %v3024 = vsel %vm2992, 1, 0
    %v3025 = vsel %vm2993, 1, 0
    %vm3026 = vcmp.eq.s32.totalorder %v2994, 1
    %vm3027 = vcmp.eq.s32.totalorder %v2995, 1
    %vm3028 = vcmp.eq.s32.totalorder %v2996, 1
    %vm3029 = vcmp.eq.s32.totalorder %v2997, 1
    %vm3030 = vcmp.eq.s32.totalorder %v2998, 1
    %vm3031 = vcmp.eq.s32.totalorder %v2999, 1
    %vm3032 = vcmp.eq.s32.totalorder %v3000, 1
    %vm3033 = vcmp.eq.s32.totalorder %v3001, 1
    %vm3034 = vcmp.eq.s32.totalorder %v3002, 1
    %vm3035 = vcmp.eq.s32.totalorder %v3003, 1
    %vm3036 = vcmp.eq.s32.totalorder %v3004, 1
    %vm3037 = vcmp.eq.s32.totalorder %v3005, 1
    %vm3038 = vcmp.eq.s32.totalorder %v3006, 1
    %vm3039 = vcmp.eq.s32.totalorder %v3007, 1
    %vm3040 = vcmp.eq.s32.totalorder %v3008, 1
    %vm3041 = vcmp.eq.s32.totalorder %v3009, 1
    %vm3042 = vcmp.eq.s32.totalorder %v3010, 1
    %vm3043 = vcmp.eq.s32.totalorder %v3011, 1
    %vm3044 = vcmp.eq.s32.totalorder %v3012, 1
    %vm3045 = vcmp.eq.s32.totalorder %v3013, 1
    %vm3046 = vcmp.eq.s32.totalorder %v3014, 1
    %vm3047 = vcmp.eq.s32.totalorder %v3015, 1
    %vm3048 = vcmp.eq.s32.totalorder %v3016, 1
    %vm3049 = vcmp.eq.s32.totalorder %v3017, 1
    %vm3050 = vcmp.eq.s32.totalorder %v3018, 1
    %vm3051 = vcmp.eq.s32.totalorder %v3019, 1
    %vm3052 = vcmp.eq.s32.totalorder %v3020, 1
    %vm3053 = vcmp.eq.s32.totalorder %v3021, 1
    %vm3054 = vcmp.eq.s32.totalorder %v3022, 1
    %vm3055 = vcmp.eq.s32.totalorder %v3023, 1
    %vm3056 = vcmp.eq.s32.totalorder %v3024, 1
    %vm3057 = vcmp.eq.s32.totalorder %v3025, 1
    %3058 = vset.pattern.permute.xlu0 6
    %3059 = vperm.xlu0 %3058, %v1998
    %v3060 = vpop.permute.xlu0 %3059
    %v3062 = vsel %vm3026, %v3060, 0.0
    %v3063 = vsel %vm3027, %v3060, 0.0
    %v3064 = vsel %vm3028, %v3060, 0.0
    %v3065 = vsel %vm3029, %v3060, 0.0
    %v3066 = vsel %vm3030, %v3060, 0.0
    %v3067 = vsel %vm3031, %v3060, 0.0
    %v3068 = vsel %vm3032, %v3060, 0.0
    %v3069 = vsel %vm3033, %v3060, 0.0
    %v3070 = vsel %vm3034, %v3060, 0.0
    %v3071 = vsel %vm3035, %v3060, 0.0
    %v3072 = vsel %vm3036, %v3060, 0.0
    %v3073 = vsel %vm3037, %v3060, 0.0
    %v3074 = vsel %vm3038, %v3060, 0.0
    %v3075 = vsel %vm3039, %v3060, 0.0
    %v3076 = vsel %vm3040, %v3060, 0.0
    %v3077 = vsel %vm3041, %v3060, 0.0
    %v3078 = vsel %vm3042, %v3060, 0.0
    %v3079 = vsel %vm3043, %v3060, 0.0
    %v3080 = vsel %vm3044, %v3060, 0.0
    %v3081 = vsel %vm3045, %v3060, 0.0
    %v3082 = vsel %vm3046, %v3060, 0.0
    %v3083 = vsel %vm3047, %v3060, 0.0
    %v3084 = vsel %vm3048, %v3060, 0.0
    %v3085 = vsel %vm3049, %v3060, 0.0
    %v3086 = vsel %vm3050, %v3060, 0.0
    %v3087 = vsel %vm3051, %v3060, 0.0
    %v3088 = vsel %vm3052, %v3060, 0.0
    %v3089 = vsel %vm3053, %v3060, 0.0
    %v3090 = vsel %vm3054, %v3060, 0.0
    %v3091 = vsel %vm3055, %v3060, 0.0
    %v3092 = vsel %vm3056, %v3060, 0.0
    %v3093 = vsel %vm3057, %v3060, 0.0
    %v3094 = vadd.f32 %v2930, %v3062
    %v3095 = vadd.f32 %v2931, %v3063
    %v3096 = vadd.f32 %v2932, %v3064
    %v3097 = vadd.f32 %v2933, %v3065
    %v3098 = vadd.f32 %v2934, %v3066
    %v3099 = vadd.f32 %v2935, %v3067
    %v3100 = vadd.f32 %v2936, %v3068
    %v3101 = vadd.f32 %v2937, %v3069
    %v3102 = vadd.f32 %v2938, %v3070
    %v3103 = vadd.f32 %v2939, %v3071
    %v3104 = vadd.f32 %v2940, %v3072
    %v3105 = vadd.f32 %v2941, %v3073
    %v3106 = vadd.f32 %v2942, %v3074
    %v3107 = vadd.f32 %v2943, %v3075
    %v3108 = vadd.f32 %v2944, %v3076
    %v3109 = vadd.f32 %v2945, %v3077
    %v3110 = vadd.f32 %v2946, %v3078
    %v3111 = vadd.f32 %v2947, %v3079
    %v3112 = vadd.f32 %v2948, %v3080
    %v3113 = vadd.f32 %v2949, %v3081
    %v3114 = vadd.f32 %v2950, %v3082
    %v3115 = vadd.f32 %v2951, %v3083
    %v3116 = vadd.f32 %v2952, %v3084
    %v3117 = vadd.f32 %v2953, %v3085
    %v3118 = vadd.f32 %v2954, %v3086
    %v3119 = vadd.f32 %v2955, %v3087
    %v3120 = vadd.f32 %v2956, %v3088
    %v3121 = vadd.f32 %v2957, %v3089
    %v3122 = vadd.f32 %v2958, %v3090
    %v3123 = vadd.f32 %v2959, %v3091
    %v3124 = vadd.f32 %v2960, %v3092
    %v3125 = vadd.f32 %v2961, %v3093
    %vm3126 = vmand %vm2204, %vm2236
    %vm3127 = vmand %vm2205, %vm2237
    %vm3128 = vmand %vm2206, %vm2238
    %vm3129 = vmand %vm2207, %vm2239
    %vm3130 = vmand %vm2208, %vm2240
    %vm3131 = vmand %vm2209, %vm2241
    %vm3132 = vmand %vm2210, %vm2242
    %vm3133 = vmand %vm2211, %vm2243
    %vm3134 = vmand %vm2212, %vm2244
    %vm3135 = vmand %vm2213, %vm2245
    %vm3136 = vmand %vm2214, %vm2246
    %vm3137 = vmand %vm2215, %vm2247
    %vm3138 = vmand %vm2216, %vm2248
    %vm3139 = vmand %vm2217, %vm2249
    %vm3140 = vmand %vm2218, %vm2250
    %vm3141 = vmand %vm2219, %vm2251
    %vm3142 = vmand %vm2220, %vm2252
    %vm3143 = vmand %vm2221, %vm2253
    %vm3144 = vmand %vm2222, %vm2254
    %vm3145 = vmand %vm2223, %vm2255
    %vm3146 = vmand %vm2224, %vm2256
    %vm3147 = vmand %vm2225, %vm2257
    %vm3148 = vmand %vm2226, %vm2258
    %vm3149 = vmand %vm2227, %vm2259
    %vm3150 = vmand %vm2228, %vm2260
    %vm3151 = vmand %vm2229, %vm2261
    %vm3152 = vmand %vm2230, %vm2262
    %vm3153 = vmand %vm2231, %vm2263
    %vm3154 = vmand %vm2232, %vm2264
    %vm3155 = vmand %vm2233, %vm2265
    %vm3156 = vmand %vm2234, %vm2266
    %vm3157 = vmand %vm2235, %vm2267
    %v3158 = vsel %vm3126, 1, 0
    %v3159 = vsel %vm3127, 1, 0
    %v3160 = vsel %vm3128, 1, 0
    %v3161 = vsel %vm3129, 1, 0
    %v3162 = vsel %vm3130, 1, 0
    %v3163 = vsel %vm3131, 1, 0
    %v3164 = vsel %vm3132, 1, 0
    %v3165 = vsel %vm3133, 1, 0
    %v3166 = vsel %vm3134, 1, 0
    %v3167 = vsel %vm3135, 1, 0
    %v3168 = vsel %vm3136, 1, 0
    %v3169 = vsel %vm3137, 1, 0
    %v3170 = vsel %vm3138, 1, 0
    %v3171 = vsel %vm3139, 1, 0
    %v3172 = vsel %vm3140, 1, 0
    %v3173 = vsel %vm3141, 1, 0
    %v3174 = vsel %vm3142, 1, 0
    %v3175 = vsel %vm3143, 1, 0
    %v3176 = vsel %vm3144, 1, 0
    %v3177 = vsel %vm3145, 1, 0
    %v3178 = vsel %vm3146, 1, 0
    %v3179 = vsel %vm3147, 1, 0
    %v3180 = vsel %vm3148, 1, 0
    %v3181 = vsel %vm3149, 1, 0
    %v3182 = vsel %vm3150, 1, 0
    %v3183 = vsel %vm3151, 1, 0
    %v3184 = vsel %vm3152, 1, 0
    %v3185 = vsel %vm3153, 1, 0
    %v3186 = vsel %vm3154, 1, 0
    %v3187 = vsel %vm3155, 1, 0
    %v3188 = vsel %vm3156, 1, 0
    %v3189 = vsel %vm3157, 1, 0
    %vm3190 = vcmp.eq.s32.totalorder %v3158, 1
    %vm3191 = vcmp.eq.s32.totalorder %v3159, 1
    %vm3192 = vcmp.eq.s32.totalorder %v3160, 1
    %vm3193 = vcmp.eq.s32.totalorder %v3161, 1
    %vm3194 = vcmp.eq.s32.totalorder %v3162, 1
    %vm3195 = vcmp.eq.s32.totalorder %v3163, 1
    %vm3196 = vcmp.eq.s32.totalorder %v3164, 1
    %vm3197 = vcmp.eq.s32.totalorder %v3165, 1
    %vm3198 = vcmp.eq.s32.totalorder %v3166, 1
    %vm3199 = vcmp.eq.s32.totalorder %v3167, 1
    %vm3200 = vcmp.eq.s32.totalorder %v3168, 1
    %vm3201 = vcmp.eq.s32.totalorder %v3169, 1
    %vm3202 = vcmp.eq.s32.totalorder %v3170, 1
    %vm3203 = vcmp.eq.s32.totalorder %v3171, 1
    %vm3204 = vcmp.eq.s32.totalorder %v3172, 1
    %vm3205 = vcmp.eq.s32.totalorder %v3173, 1
    %vm3206 = vcmp.eq.s32.totalorder %v3174, 1
    %vm3207 = vcmp.eq.s32.totalorder %v3175, 1
    %vm3208 = vcmp.eq.s32.totalorder %v3176, 1
    %vm3209 = vcmp.eq.s32.totalorder %v3177, 1
    %vm3210 = vcmp.eq.s32.totalorder %v3178, 1
    %vm3211 = vcmp.eq.s32.totalorder %v3179, 1
    %vm3212 = vcmp.eq.s32.totalorder %v3180, 1
    %vm3213 = vcmp.eq.s32.totalorder %v3181, 1
    %vm3214 = vcmp.eq.s32.totalorder %v3182, 1
    %vm3215 = vcmp.eq.s32.totalorder %v3183, 1
    %vm3216 = vcmp.eq.s32.totalorder %v3184, 1
    %vm3217 = vcmp.eq.s32.totalorder %v3185, 1
    %vm3218 = vcmp.eq.s32.totalorder %v3186, 1
    %vm3219 = vcmp.eq.s32.totalorder %v3187, 1
    %vm3220 = vcmp.eq.s32.totalorder %v3188, 1
    %vm3221 = vcmp.eq.s32.totalorder %v3189, 1
    %3222 = vset.pattern.permute.xlu0 7
    %3223 = vperm.xlu0 %3222, %v1998
    %v3224 = vpop.permute.xlu0 %3223
    %v3226 = vsel %vm3190, %v3224, 0.0
    %v3227 = vsel %vm3191, %v3224, 0.0
    %v3228 = vsel %vm3192, %v3224, 0.0
    %v3229 = vsel %vm3193, %v3224, 0.0
    %v3230 = vsel %vm3194, %v3224, 0.0
    %v3231 = vsel %vm3195, %v3224, 0.0
    %v3232 = vsel %vm3196, %v3224, 0.0
    %v3233 = vsel %vm3197, %v3224, 0.0
    %v3234 = vsel %vm3198, %v3224, 0.0
    %v3235 = vsel %vm3199, %v3224, 0.0
    %v3236 = vsel %vm3200, %v3224, 0.0
    %v3237 = vsel %vm3201, %v3224, 0.0
    %v3238 = vsel %vm3202, %v3224, 0.0
    %v3239 = vsel %vm3203, %v3224, 0.0
    %v3240 = vsel %vm3204, %v3224, 0.0
    %v3241 = vsel %vm3205, %v3224, 0.0
    %v3242 = vsel %vm3206, %v3224, 0.0
    %v3243 = vsel %vm3207, %v3224, 0.0
    %v3244 = vsel %vm3208, %v3224, 0.0
    %v3245 = vsel %vm3209, %v3224, 0.0
    %v3246 = vsel %vm3210, %v3224, 0.0
    %v3247 = vsel %vm3211, %v3224, 0.0
    %v3248 = vsel %vm3212, %v3224, 0.0
    %v3249 = vsel %vm3213, %v3224, 0.0
    %v3250 = vsel %vm3214, %v3224, 0.0
    %v3251 = vsel %vm3215, %v3224, 0.0
    %v3252 = vsel %vm3216, %v3224, 0.0
    %v3253 = vsel %vm3217, %v3224, 0.0
    %v3254 = vsel %vm3218, %v3224, 0.0
    %v3255 = vsel %vm3219, %v3224, 0.0
    %v3256 = vsel %vm3220, %v3224, 0.0
    %v3257 = vsel %vm3221, %v3224, 0.0
    %v3258 = vadd.f32 %v3094, %v3226
    %v3259 = vadd.f32 %v3095, %v3227
    %v3260 = vadd.f32 %v3096, %v3228
    %v3261 = vadd.f32 %v3097, %v3229
    %v3262 = vadd.f32 %v3098, %v3230
    %v3263 = vadd.f32 %v3099, %v3231
    %v3264 = vadd.f32 %v3100, %v3232
    %v3265 = vadd.f32 %v3101, %v3233
    %v3266 = vadd.f32 %v3102, %v3234
    %v3267 = vadd.f32 %v3103, %v3235
    %v3268 = vadd.f32 %v3104, %v3236
    %v3269 = vadd.f32 %v3105, %v3237
    %v3270 = vadd.f32 %v3106, %v3238
    %v3271 = vadd.f32 %v3107, %v3239
    %v3272 = vadd.f32 %v3108, %v3240
    %v3273 = vadd.f32 %v3109, %v3241
    %v3274 = vadd.f32 %v3110, %v3242
    %v3275 = vadd.f32 %v3111, %v3243
    %v3276 = vadd.f32 %v3112, %v3244
    %v3277 = vadd.f32 %v3113, %v3245
    %v3278 = vadd.f32 %v3114, %v3246
    %v3279 = vadd.f32 %v3115, %v3247
    %v3280 = vadd.f32 %v3116, %v3248
    %v3281 = vadd.f32 %v3117, %v3249
    %v3282 = vadd.f32 %v3118, %v3250
    %v3283 = vadd.f32 %v3119, %v3251
    %v3284 = vadd.f32 %v3120, %v3252
    %v3285 = vadd.f32 %v3121, %v3253
    %v3286 = vadd.f32 %v3122, %v3254
    %v3287 = vadd.f32 %v3123, %v3255
    %v3288 = vadd.f32 %v3124, %v3256
    %v3289 = vadd.f32 %v3125, %v3257
    %vm3290 = vmand %vm2204, %vm2268
    %vm3291 = vmand %vm2205, %vm2269
    %vm3292 = vmand %vm2206, %vm2270
    %vm3293 = vmand %vm2207, %vm2271
    %vm3294 = vmand %vm2208, %vm2272
    %vm3295 = vmand %vm2209, %vm2273
    %vm3296 = vmand %vm2210, %vm2274
    %vm3297 = vmand %vm2211, %vm2275
    %vm3298 = vmand %vm2212, %vm2276
    %vm3299 = vmand %vm2213, %vm2277
    %vm3300 = vmand %vm2214, %vm2278
    %vm3301 = vmand %vm2215, %vm2279
    %vm3302 = vmand %vm2216, %vm2280
    %vm3303 = vmand %vm2217, %vm2281
    %vm3304 = vmand %vm2218, %vm2282
    %vm3305 = vmand %vm2219, %vm2283
    %vm3306 = vmand %vm2220, %vm2284
    %vm3307 = vmand %vm2221, %vm2285
    %vm3308 = vmand %vm2222, %vm2286
    %vm3309 = vmand %vm2223, %vm2287
    %vm3310 = vmand %vm2224, %vm2288
    %vm3311 = vmand %vm2225, %vm2289
    %vm3312 = vmand %vm2226, %vm2290
    %vm3313 = vmand %vm2227, %vm2291
    %vm3314 = vmand %vm2228, %vm2292
    %vm3315 = vmand %vm2229, %vm2293
    %vm3316 = vmand %vm2230, %vm2294
    %vm3317 = vmand %vm2231, %vm2295
    %vm3318 = vmand %vm2232, %vm2296
    %vm3319 = vmand %vm2233, %vm2297
    %vm3320 = vmand %vm2234, %vm2298
    %vm3321 = vmand %vm2235, %vm2299
    %v3322 = vsel %vm3290, 1, 0
    %v3323 = vsel %vm3291, 1, 0
    %v3324 = vsel %vm3292, 1, 0
    %v3325 = vsel %vm3293, 1, 0
    %v3326 = vsel %vm3294, 1, 0
    %v3327 = vsel %vm3295, 1, 0
    %v3328 = vsel %vm3296, 1, 0
    %v3329 = vsel %vm3297, 1, 0
    %v3330 = vsel %vm3298, 1, 0
    %v3331 = vsel %vm3299, 1, 0
    %v3332 = vsel %vm3300, 1, 0
    %v3333 = vsel %vm3301, 1, 0
    %v3334 = vsel %vm3302, 1, 0
    %v3335 = vsel %vm3303, 1, 0
    %v3336 = vsel %vm3304, 1, 0
    %v3337 = vsel %vm3305, 1, 0
    %v3338 = vsel %vm3306, 1, 0
    %v3339 = vsel %vm3307, 1, 0
    %v3340 = vsel %vm3308, 1, 0
    %v3341 = vsel %vm3309, 1, 0
    %v3342 = vsel %vm3310, 1, 0
    %v3343 = vsel %vm3311, 1, 0
    %v3344 = vsel %vm3312, 1, 0
    %v3345 = vsel %vm3313, 1, 0
    %v3346 = vsel %vm3314, 1, 0
    %v3347 = vsel %vm3315, 1, 0
    %v3348 = vsel %vm3316, 1, 0
    %v3349 = vsel %vm3317, 1, 0
    %v3350 = vsel %vm3318, 1, 0
    %v3351 = vsel %vm3319, 1, 0
    %v3352 = vsel %vm3320, 1, 0
    %v3353 = vsel %vm3321, 1, 0
    %vm3354 = vcmp.eq.s32.totalorder %v3322, 1
    %vm3355 = vcmp.eq.s32.totalorder %v3323, 1
    %vm3356 = vcmp.eq.s32.totalorder %v3324, 1
    %vm3357 = vcmp.eq.s32.totalorder %v3325, 1
    %vm3358 = vcmp.eq.s32.totalorder %v3326, 1
    %vm3359 = vcmp.eq.s32.totalorder %v3327, 1
    %vm3360 = vcmp.eq.s32.totalorder %v3328, 1
    %vm3361 = vcmp.eq.s32.totalorder %v3329, 1
    %vm3362 = vcmp.eq.s32.totalorder %v3330, 1
    %vm3363 = vcmp.eq.s32.totalorder %v3331, 1
    %vm3364 = vcmp.eq.s32.totalorder %v3332, 1
    %vm3365 = vcmp.eq.s32.totalorder %v3333, 1
    %vm3366 = vcmp.eq.s32.totalorder %v3334, 1
    %vm3367 = vcmp.eq.s32.totalorder %v3335, 1
    %vm3368 = vcmp.eq.s32.totalorder %v3336, 1
    %vm3369 = vcmp.eq.s32.totalorder %v3337, 1
    %vm3370 = vcmp.eq.s32.totalorder %v3338, 1
    %vm3371 = vcmp.eq.s32.totalorder %v3339, 1
    %vm3372 = vcmp.eq.s32.totalorder %v3340, 1
    %vm3373 = vcmp.eq.s32.totalorder %v3341, 1
    %vm3374 = vcmp.eq.s32.totalorder %v3342, 1
    %vm3375 = vcmp.eq.s32.totalorder %v3343, 1
    %vm3376 = vcmp.eq.s32.totalorder %v3344, 1
    %vm3377 = vcmp.eq.s32.totalorder %v3345, 1
    %vm3378 = vcmp.eq.s32.totalorder %v3346, 1
    %vm3379 = vcmp.eq.s32.totalorder %v3347, 1
    %vm3380 = vcmp.eq.s32.totalorder %v3348, 1
    %vm3381 = vcmp.eq.s32.totalorder %v3349, 1
    %vm3382 = vcmp.eq.s32.totalorder %v3350, 1
    %vm3383 = vcmp.eq.s32.totalorder %v3351, 1
    %vm3384 = vcmp.eq.s32.totalorder %v3352, 1
    %vm3385 = vcmp.eq.s32.totalorder %v3353, 1
    %3386 = vset.pattern.permute.xlu0 8
    %3387 = vperm.xlu0 %3386, %v1998
    %v3388 = vpop.permute.xlu0 %3387
    %v3390 = vsel %vm3354, %v3388, 0.0
    %v3391 = vsel %vm3355, %v3388, 0.0
    %v3392 = vsel %vm3356, %v3388, 0.0
    %v3393 = vsel %vm3357, %v3388, 0.0
    %v3394 = vsel %vm3358, %v3388, 0.0
    %v3395 = vsel %vm3359, %v3388, 0.0
    %v3396 = vsel %vm3360, %v3388, 0.0
    %v3397 = vsel %vm3361, %v3388, 0.0
    %v3398 = vsel %vm3362, %v3388, 0.0
    %v3399 = vsel %vm3363, %v3388, 0.0
    %v3400 = vsel %vm3364, %v3388, 0.0
    %v3401 = vsel %vm3365, %v3388, 0.0
    %v3402 = vsel %vm3366, %v3388, 0.0
    %v3403 = vsel %vm3367, %v3388, 0.0
    %v3404 = vsel %vm3368, %v3388, 0.0
    %v3405 = vsel %vm3369, %v3388, 0.0
    %v3406 = vsel %vm3370, %v3388, 0.0
    %v3407 = vsel %vm3371, %v3388, 0.0
    %v3408 = vsel %vm3372, %v3388, 0.0
    %v3409 = vsel %vm3373, %v3388, 0.0
    %v3410 = vsel %vm3374, %v3388, 0.0
    %v3411 = vsel %vm3375, %v3388, 0.0
    %v3412 = vsel %vm3376, %v3388, 0.0
    %v3413 = vsel %vm3377, %v3388, 0.0
    %v3414 = vsel %vm3378, %v3388, 0.0
    %v3415 = vsel %vm3379, %v3388, 0.0
    %v3416 = vsel %vm3380, %v3388, 0.0
    %v3417 = vsel %vm3381, %v3388, 0.0
    %v3418 = vsel %vm3382, %v3388, 0.0
    %v3419 = vsel %vm3383, %v3388, 0.0
    %v3420 = vsel %vm3384, %v3388, 0.0
    %v3421 = vsel %vm3385, %v3388, 0.0
    %v3422 = vadd.f32 %v3258, %v3390
    %v3423 = vadd.f32 %v3259, %v3391
    %v3424 = vadd.f32 %v3260, %v3392
    %v3425 = vadd.f32 %v3261, %v3393
    %v3426 = vadd.f32 %v3262, %v3394
    %v3427 = vadd.f32 %v3263, %v3395
    %v3428 = vadd.f32 %v3264, %v3396
    %v3429 = vadd.f32 %v3265, %v3397
    %v3430 = vadd.f32 %v3266, %v3398
    %v3431 = vadd.f32 %v3267, %v3399
    %v3432 = vadd.f32 %v3268, %v3400
    %v3433 = vadd.f32 %v3269, %v3401
    %v3434 = vadd.f32 %v3270, %v3402
    %v3435 = vadd.f32 %v3271, %v3403
    %v3436 = vadd.f32 %v3272, %v3404
    %v3437 = vadd.f32 %v3273, %v3405
    %v3438 = vadd.f32 %v3274, %v3406
    %v3439 = vadd.f32 %v3275, %v3407
    %v3440 = vadd.f32 %v3276, %v3408
    %v3441 = vadd.f32 %v3277, %v3409
    %v3442 = vadd.f32 %v3278, %v3410
    %v3443 = vadd.f32 %v3279, %v3411
    %v3444 = vadd.f32 %v3280, %v3412
    %v3445 = vadd.f32 %v3281, %v3413
    %v3446 = vadd.f32 %v3282, %v3414
    %v3447 = vadd.f32 %v3283, %v3415
    %v3448 = vadd.f32 %v3284, %v3416
    %v3449 = vadd.f32 %v3285, %v3417
    %v3450 = vadd.f32 %v3286, %v3418
    %v3451 = vadd.f32 %v3287, %v3419
    %v3452 = vadd.f32 %v3288, %v3420
    %v3453 = vadd.f32 %v3289, %v3421
    %v3454 = vsub.f32 %v2003, %v2064
    %3456 = vset.pattern.permute.xlu0 0
    %3457 = vperm.xlu0 %3456, %v3454
    %v3458 = vpop.permute.xlu0 %3457
    %v3460 = vadd.f32 %v3458, %v3422
    %v3461 = vadd.f32 %v3458, %v3423
    %v3462 = vadd.f32 %v3458, %v3424
    %v3463 = vadd.f32 %v3458, %v3425
    %v3464 = vadd.f32 %v3458, %v3426
    %v3465 = vadd.f32 %v3458, %v3427
    %v3466 = vadd.f32 %v3458, %v3428
    %v3467 = vadd.f32 %v3458, %v3429
    %v3468 = vadd.f32 %v3458, %v3430
    %v3469 = vadd.f32 %v3458, %v3431
    %v3470 = vadd.f32 %v3458, %v3432
    %v3471 = vadd.f32 %v3458, %v3433
    %v3472 = vadd.f32 %v3458, %v3434
    %v3473 = vadd.f32 %v3458, %v3435
    %v3474 = vadd.f32 %v3458, %v3436
    %v3475 = vadd.f32 %v3458, %v3437
    %v3476 = vadd.f32 %v3458, %v3438
    %v3477 = vadd.f32 %v3458, %v3439
    %v3478 = vadd.f32 %v3458, %v3440
    %v3479 = vadd.f32 %v3458, %v3441
    %v3480 = vadd.f32 %v3458, %v3442
    %v3481 = vadd.f32 %v3458, %v3443
    %v3482 = vadd.f32 %v3458, %v3444
    %v3483 = vadd.f32 %v3458, %v3445
    %v3484 = vadd.f32 %v3458, %v3446
    %v3485 = vadd.f32 %v3458, %v3447
    %v3486 = vadd.f32 %v3458, %v3448
    %v3487 = vadd.f32 %v3458, %v3449
    %v3488 = vadd.f32 %v3458, %v3450
    %v3489 = vadd.f32 %v3458, %v3451
    %v3490 = vadd.f32 %v3458, %v3452
    %v3491 = vadd.f32 %v3458, %v3453
    %3493 = vset.pattern.permute.xlu0 0
    %3494 = vperm.xlu0 %3493, %v2074
    %v3495 = vpop.permute.xlu0 %3494
    %v3497 = vmul.f32 %v3460, %v3495
    %v3498 = vmul.f32 %v3461, %v3495
    %v3499 = vmul.f32 %v3462, %v3495
    %v3500 = vmul.f32 %v3463, %v3495
    %v3501 = vmul.f32 %v3464, %v3495
    %v3502 = vmul.f32 %v3465, %v3495
    %v3503 = vmul.f32 %v3466, %v3495
    %v3504 = vmul.f32 %v3467, %v3495
    %v3505 = vmul.f32 %v3468, %v3495
    %v3506 = vmul.f32 %v3469, %v3495
    %v3507 = vmul.f32 %v3470, %v3495
    %v3508 = vmul.f32 %v3471, %v3495
    %v3509 = vmul.f32 %v3472, %v3495
    %v3510 = vmul.f32 %v3473, %v3495
    %v3511 = vmul.f32 %v3474, %v3495
    %v3512 = vmul.f32 %v3475, %v3495
    %v3513 = vmul.f32 %v3476, %v3495
    %v3514 = vmul.f32 %v3477, %v3495
    %v3515 = vmul.f32 %v3478, %v3495
    %v3516 = vmul.f32 %v3479, %v3495
    %v3517 = vmul.f32 %v3480, %v3495
    %v3518 = vmul.f32 %v3481, %v3495
    %v3519 = vmul.f32 %v3482, %v3495
    %v3520 = vmul.f32 %v3483, %v3495
    %v3521 = vmul.f32 %v3484, %v3495
    %v3522 = vmul.f32 %v3485, %v3495
    %v3523 = vmul.f32 %v3486, %v3495
    %v3524 = vmul.f32 %v3487, %v3495
    %v3525 = vmul.f32 %v3488, %v3495
    %v3526 = vmul.f32 %v3489, %v3495
    %v3527 = vmul.f32 %v3490, %v3495
    %v3528 = vmul.f32 %v3491, %v3495
    %v3561 = vrot.slane %v3498, 6
    %v3562 = vrot.slane %v3499, 4
    %v3563 = vrot.slane %v3500, 2
    %v3564 = vrot.slane %v3502, 6
    %v3565 = vrot.slane %v3503, 4
    %v3566 = vrot.slane %v3504, 2
    %v3567 = vrot.slane %v3506, 6
    %v3568 = vrot.slane %v3507, 4
    %v3569 = vrot.slane %v3508, 2
    %v3570 = vrot.slane %v3510, 6
    %v3571 = vrot.slane %v3511, 4
    %v3572 = vrot.slane %v3512, 2
    %v3573 = vrot.slane %v3514, 6
    %v3574 = vrot.slane %v3515, 4
    %v3575 = vrot.slane %v3516, 2
    %v3576 = vrot.slane %v3518, 6
    %v3577 = vrot.slane %v3519, 4
    %v3578 = vrot.slane %v3520, 2
    %v3579 = vrot.slane %v3522, 6
    %v3580 = vrot.slane %v3523, 4
    %v3581 = vrot.slane %v3524, 2
    %v3582 = vrot.slane %v3526, 6
    %v3583 = vrot.slane %v3527, 4
    %v3584 = vrot.slane %v3528, 2
    %vm3585 = vcmask 1041408
    %v3586 = vsel %vm3585, %v3497, %v3561
    %vm3587 = vcmask 1045508
    %v3588 = vsel %vm3587, %v3562, %v3563
    %vm3589 = vcmask 1043456
    %v3590 = vsel %vm3589, %v3586, %v3588
    %v3591 = vsel %vm3585, %v3501, %v3564
    %v3592 = vsel %vm3587, %v3565, %v3566
    %v3593 = vsel %vm3589, %v3591, %v3592
    %v3594 = vsel %vm3585, %v3505, %v3567
    %v3595 = vsel %vm3587, %v3568, %v3569
    %v3596 = vsel %vm3589, %v3594, %v3595
    %v3597 = vsel %vm3585, %v3509, %v3570
    %v3598 = vsel %vm3587, %v3571, %v3572
    %v3599 = vsel %vm3589, %v3597, %v3598
    %v3600 = vsel %vm3585, %v3513, %v3573
    %v3601 = vsel %vm3587, %v3574, %v3575
    %v3602 = vsel %vm3589, %v3600, %v3601
    %v3603 = vsel %vm3585, %v3517, %v3576
    %v3604 = vsel %vm3587, %v3577, %v3578
    %v3605 = vsel %vm3589, %v3603, %v3604
    %v3606 = vsel %vm3585, %v3521, %v3579
    %v3607 = vsel %vm3587, %v3580, %v3581
    %v3608 = vsel %vm3589, %v3606, %v3607
    %v3609 = vsel %vm3585, %v3525, %v3582
    %v3610 = vsel %vm3587, %v3583, %v3584
    %v3611 = vsel %vm3589, %v3609, %v3610
    %3620 = vst [vmem:[#allocation12] sm:$0xff] %v3590
    %3621 = vst [vmem:[#allocation12 + $0x8] sm:$0xff] %v3593
    %3622 = vst [vmem:[#allocation12 + $0x10] sm:$0xff] %v3596
    %3623 = vst [vmem:[#allocation12 + $0x18] sm:$0xff] %v3599
    %3624 = vst [vmem:[#allocation12 + $0x20] sm:$0xff] %v3602
    %3625 = vst [vmem:[#allocation12 + $0x28] sm:$0xff] %v3605
    %3626 = vst [vmem:[#allocation12 + $0x30] sm:$0xff] %v3608
    %3627 = vst [vmem:[#allocation12 + $0x38] sm:$0xff] %v3611
    // Predicated region
    $region54: #{tpu_custom_call.1} parent=1 // pred_check
      _
    $region55: #{tpu_custom_call.1} parent=1 // pred_check_branch
      %3629 = sbr.rel (0) target = $region57
    $region56: #{tpu_custom_call.1} parent=1 // pred_region
      %3631 = vsyncadd [#allocation6], 0
      %s3633 = sshll.u32 [#allocation12], 4
      %s3634 = int_to_ptr.vmem [resolvable:$true] %s3633
      %s3635 = sshll.u32 %s9, 4
      %s3636 = int_to_ptr.hbm [resolvable:$true] %s3635
      %3638 = dma.vmem_to_hbm [thread:$0]  %s3634, 1024, %s3636, [#allocation6]
    $region57: #{tpu_custom_call.1} parent=1 // pred_fallthru
      _
    // Predicated region
    $region58: #{tpu_custom_call.1} parent=1 // pred_check
      _
    $region59: #{tpu_custom_call.1} parent=1 // pred_check_branch
      %3640 = sbr.rel (0) target = $region61
    $region60: #{tpu_custom_call.1} parent=1 // pred_region
      %3642 = dma.done [#allocation6], 1024
    $region61: #{tpu_custom_call.1} parent=1 // pred_fallthru
      _
    %3643 = vsyncpa [#allocation5], 1
    %3644 = vsyncpa [#allocation8], 1
    %3645 = vsyncpa [#allocation11], 1
    %3646 = vsyncpa [#allocation6], 1

</llo_original>
